<compile_context>
chip_gen: v5e
topology: v5e:2x2
jax: 0.10.0
libtpu: 0.0.40
codegen_flags: <defaults>
</compile_context>

<pallas_src>
import jax
import jax.numpy as jnp
from jax import lax
from jax.experimental import pallas as pl
from jax.experimental.pallas import tpu as pltpu


# ---------------------------------------------------------------------------
# Module "parameters" (TriangulateHead.__init__ defaults, no learnable weights)
# ---------------------------------------------------------------------------
IMG_SHAPE = (256, 256)        # [h_img, w_img]
HEATMAP_SHAPE = (64, 64)      # [h_map, w_map]
DET_CONF_THR = 0.1            # det_conf_thr (must be a number for the forward)
SOFTMAX_TEMP = 0.05
WINDOW_WIDTH = 5 * 3          # 'Uniform' window, width 15
WINDOW_HALF = WINDOW_WIDTH / 2.0
LANES = 128                   # lane-dense minor dim for the reshaped heatmap
NUM_GRID_BLOCKS = 2           # >=2 shards work across v7x's two TensorCores
MAX_MAPS_PER_BLOCK = 256      # keeps 2x double-buffered input << v5e 16 MiB scoped VMEM


# Sequential reductions, sublane-first (axis=1, VALU folds) then lane (axis=2, XLU tree).
def _rsum(v):
    return jnp.sum(jnp.sum(v, axis=1, keepdims=True), axis=2, keepdims=True)


def _rmax(v):
    return jnp.max(jnp.max(v, axis=1, keepdims=True), axis=2, keepdims=True)


def _rmin(v):
    return jnp.min(jnp.min(v, axis=1, keepdims=True), axis=2, keepdims=True)


# ---------------------------------------------------------------------------
# Kernel: SoftArgmax2D (Uniform window) + fused 2D post-processing.
#   Input block:  (B, rows, 128) lane-dense heatmaps
#   Output block: (B, 128) slab; lanes 0,1,2 = [px, py, det_conf]
# ---------------------------------------------------------------------------
def _make_softargmax_kernel(h_map, w_map, rows, lanes):
    inv_temp = 1.0 / SOFTMAX_TEMP
    half_sq = WINDOW_HALF * WINDOW_HALF
    # NOTE: replicates the reference's axis pairing exactly:
    #   kp_2d_croped[..., 0] = x * h_img / h_map ; kp_2d_croped[..., 1] = y * w_img / w_map
    # (only safe because IMG_SHAPE / HEATMAP_SHAPE are square; matches the spec verbatim)
    sx = float(IMG_SHAPE[0]) / float(h_map)
    sy = float(IMG_SHAPE[1]) / float(w_map)
    sentinel = float(h_map * w_map)           # > any valid flat index
    w_pow2 = (w_map & (w_map - 1)) == 0
    lanes_div = (lanes % w_map) == 0
    fast_path = w_pow2 and lanes_div
    w_shift = w_map.bit_length() - 1
    cols_per_row = lanes // w_map if lanes_div else 0

    def kernel(x_ref, out_ref):
        x = x_ref[...]                                     # (B, rows, lanes) f32
        b = x.shape[0]
        shape3 = (b, rows, lanes)

        # Per-element (row, col) of the original (h_map, w_map) grid, derived
        # directly from the lane / sublane iotas (no full-size flat-int temps).
        l_i = lax.broadcasted_iota(jnp.int32, shape3, 2)
        r_i = lax.broadcasted_iota(jnp.int32, shape3, 1)
        if fast_path:
            colf = (l_i & (w_map - 1)).astype(jnp.float32)
            rowf = (r_i * cols_per_row + (l_i >> w_shift)).astype(jnp.float32)
        else:
            flat_i = r_i * lanes + l_i
            colf = (flat_i % w_map).astype(jnp.float32)
            rowf = (flat_i // w_map).astype(jnp.float32)

        # Per-map max + first-occurrence argmax over the row-major flat index
        # (as float: values <= h*w=4096 are exact in f32; tie-break = lowest index).
        maxv = _rmax(x)                                    # (B,1,1)
        flatf = rowf * float(w_map) + colf
        argmax = _rmin(jnp.where(x >= maxv, flatf, sentinel))   # (B,1,1)
        if fast_path:
            a_row = jnp.floor(argmax * (1.0 / w_map))      # exact: w_map is pow2
        else:
            a_row = jnp.floor(argmax / float(w_map))
        a_col = argmax - a_row * float(w_map)

        # Uniform radial window (squared distance; no sqrt), folded into the
        # softmax numerator with a select (no f32 mask multiply).
        dx = colf - a_col
        dy = rowf - a_row
        win = (dx * dx + dy * dy) <= half_sq

        # Windowed softmax, single normalization:
        #   s = win * exp((x - maxv)/T) / sum(win * exp((x - maxv)/T))
        # (max(x/T) == maxv/T since T > 0, so the hard max is reused.)
        p = jnp.where(win, jnp.exp((x - maxv) * inv_temp), 0.0)
        inv = pl.reciprocal(_rsum(p), approx=True)
        xc = _rsum(p * colf) * inv
        yc = _rsum(p * rowf) * inv

        # torch.where(maxv > 0.01, xys, [0,0,1]); the 3rd row is then overwritten
        # by maxv in the module, so only px/py need the gate. det_conf threshold
        # fused; the vis_prob multiply lives in the wrapper epilogue.
        valid = maxv > 0.01
        px = jnp.where(valid, xc, 0.0) * sx
        py = jnp.where(valid, yc, 0.0) * sy
        det_conf = jnp.where(maxv < DET_CONF_THR, 0.0, maxv)

        lane = lax.broadcasted_iota(jnp.int32, (b, out_ref.shape[1]), 1)
        out = jnp.where(lane == 0, px[:, 0, :],
              jnp.where(lane == 1, py[:, 0, :],
              jnp.where(lane == 2, det_conf[:, 0, :], 0.0)))
        out_ref[...] = out.astype(out_ref.dtype)

    return kernel


def _soft_argmax_post(heatmap, *, num_blocks=NUM_GRID_BLOCKS,
                      max_block_b=MAX_MAPS_PER_BLOCK):
    """heatmap: (n_cams, n_joints, H, W) f32.
    Returns (n_cams, n_joints, 3) = [px, py, det_conf] (scaled, gated, thresholded)."""
    n_cams, n_joints, h_map, w_map = heatmap.shape
    n_maps = n_cams * n_joints
    assert (h_map * w_map) % LANES == 0, "heatmap H*W must be a multiple of 128"
    rows = (h_map * w_map) // LANES

    x = heatmap.reshape(n_maps, rows, LANES).astype(jnp.float32)

    # Block size: at most `num_blocks` grid steps (2 keeps both v7x TCs busy; on
    # v5e/v6e the extra step costs ~0.35 us), sublane-aligned, capped for VMEM.
    block_b = -(-n_maps // num_blocks)
    block_b = min(max_block_b, max(8, ((block_b + 7) // 8) * 8))
    n_pad = pl.cdiv(n_maps, block_b) * block_b
    if n_pad != n_maps:
        x = jnp.pad(x, ((0, n_pad - n_maps), (0, 0), (0, 0)))

    kernel = _make_softargmax_kernel(h_map, w_map, rows, LANES)
    out = pl.pallas_call(
        kernel,
        out_shape=jax.ShapeDtypeStruct((n_pad, LANES), jnp.float32),
        grid=(n_pad // block_b,),
        in_specs=[pl.BlockSpec((block_b, rows, LANES), lambda i: (i, 0, 0))],
        out_specs=pl.BlockSpec((block_b, LANES), lambda i: (i, 0)),
        compiler_params=pltpu.CompilerParams(
            dimension_semantics=("parallel",)),
    )(x)
    return out[:n_maps, :3].reshape(n_cams, n_joints, 3)


# ---------------------------------------------------------------------------
# TriangulateHead.forward
# ---------------------------------------------------------------------------
@jax.jit
def triangulate_head_forward(heatmap, proj_mats, vis_prob=None):
    """
    heatmap:   [num_cams, num_joints, H, W] float32
    proj_mats: [num_cams, 3, 4] float32
    vis_prob:  [num_cams, num_joints] float32 or None
    returns (point_3d [n_joints, 4], points [n_joints, n_cams, 2, 1])
    """
    n_cams, n_joints, _, _ = heatmap.shape
    if vis_prob is None:
        vis_prob = jnp.ones((n_cams, n_joints), jnp.float32)

    # --- SoftArgmax2D + scaling / gating / det_conf threshold (Pallas kernel) ---
    pxyc = _soft_argmax_post(heatmap)                      # (n_cams, n_joints, 3)
    px = pxyc[..., 0]
    py = pxyc[..., 1]
    conf = pxyc[..., 2] * vis_prob.astype(jnp.float32)     # det_conf * vis_prob

    points = jnp.stack([px, py], axis=-1)                  # (n_cams, n_joints, 2)
    points_j = jnp.transpose(points, (1, 0, 2))            # (n_joints, n_cams, 2)
    conf_j = jnp.transpose(conf, (1, 0))                   # (n_joints, n_cams)

    # --- DLT system A (plain JAX; ~1 KiB elementwise, XLA fuses it) ---
    proj = proj_mats.astype(jnp.float32)                   # (n_cams, 3, 4)
    a = proj[None, :, 2:3, :] * points_j[:, :, :, None] - proj[None, :, 0:2, :]
    a = a * conf_j[:, :, None, None]
    a = a.reshape(n_joints, n_cams * 2, 4)

    # TODO(synk): torch.svd has no Pallas TPU equivalent; batched 4-col SVD done in plain JAX.
    _, s, vh = jnp.linalg.svd(a, full_matrices=False)
    point_3d_homo = -vh[:, -1, :]                          # last right singular vector
    point_3d = point_3d_homo[:, :3] / point_3d_homo[:, 3:4]
    res_triang = s[:, -1:]
    point_3d = jnp.concatenate([point_3d, res_triang], axis=1)   # (n_joints, 4)

    points_out = points_j[..., None]                       # (n_joints, n_cams, 2, 1)
    return point_3d, points_out


if __name__ == "__main__":
    key = jax.random.PRNGKey(0)
    k_hm, k_pm = jax.random.split(key)

    num_cams, num_joints = 4, 8
    H, W = HEATMAP_SHAPE
    heatmap = jax.random.normal(k_hm, (num_cams, num_joints, H, W), jnp.float32)
    proj_mats = jax.random.normal(k_pm, (num_cams, 3, 4), jnp.float32)

    point_3d, points = triangulate_head_forward(heatmap, proj_mats)
    jax.block_until_ready((point_3d, points))

    assert point_3d.shape == (num_joints, 4)
    assert points.shape == (num_joints, num_cams, 2, 1)
    print("KERNEL_OK")
</pallas_src>

<mosaic_0001>
module attributes {stable_mosaic.version = 11 : i64} {
  func.func @kernel(%arg0: i32, %arg1: memref<16x32x128xf32, #tpu.memory_space<vmem>>, %arg2: memref<16x128xf32, #tpu.memory_space<vmem>>) attributes {dimension_semantics = [#tpu.dimension_semantics<parallel>], iteration_bounds = array<i64: 2>, scalar_prefetch = 0 : i64, scratch_operands = 0 : i64, tpu.core_type = #tpu.core_type<tc>, window_params = [{transform_indices = @transform_0, window_bounds = array<i64: 16, 32, 128>}, {transform_indices = @transform_1, window_bounds = array<i64: 16, 128>}]} {
    %c0 = arith.constant 0 : index
    %c0_0 = arith.constant 0 : index
    %c0_1 = arith.constant 0 : index
    %0 = vector.load %arg1[%c0, %c0_0, %c0_1] : memref<16x32x128xf32, #tpu.memory_space<vmem>>, vector<16x32x128xf32>
    %1 = tpu.iota {dimensions = array<i32: 2>} : vector<16x32x128xi32>
    %2 = tpu.iota {dimensions = array<i32: 1>} : vector<16x32x128xi32>
    %c63_i32 = arith.constant 63 : i32
    %3 = vector.broadcast %c63_i32 : i32 to vector<16x32x128xi32>
    %4 = arith.andi %1, %3 : vector<16x32x128xi32>
    %5 = arith.sitofp %4 : vector<16x32x128xi32> to vector<16x32x128xf32>
    %c2_i32 = arith.constant 2 : i32
    %6 = vector.broadcast %c2_i32 : i32 to vector<16x32x128xi32>
    %7 = arith.muli %2, %6 : vector<16x32x128xi32>
    %c6_i32 = arith.constant 6 : i32
    %8 = vector.broadcast %c6_i32 : i32 to vector<16x32x128xi32>
    %9 = arith.shrsi %1, %8 : vector<16x32x128xi32>
    %10 = arith.addi %7, %9 : vector<16x32x128xi32>
    %11 = arith.sitofp %10 : vector<16x32x128xi32> to vector<16x32x128xf32>
    %cst = arith.constant dense<0xFF800000> : vector<16x128xf32>
    %12 = vector.multi_reduction <maximumf>, %0, %cst [1] : vector<16x32x128xf32> to vector<16x128xf32>
    %13 = vector.shape_cast %12 : vector<16x128xf32> to vector<16x1x128xf32>
    %cst_2 = arith.constant dense<0xFF800000> : vector<16x1xf32>
    %14 = vector.multi_reduction <maximumf>, %13, %cst_2 [2] : vector<16x1x128xf32> to vector<16x1xf32>
    %15 = vector.shape_cast %14 : vector<16x1xf32> to vector<16x1x1xf32>
    %cst_3 = arith.constant 6.400000e+01 : f32
    %16 = vector.broadcast %cst_3 : f32 to vector<16x32x128xf32>
    %17 = arith.mulf %11, %16 : vector<16x32x128xf32>
    %18 = arith.addf %17, %5 : vector<16x32x128xf32>
    %19 = vector.broadcast %15 : vector<16x1x1xf32> to vector<16x32x128xf32>
    %20 = arith.cmpf oge, %0, %19 : vector<16x32x128xf32>
    %cst_4 = arith.constant 4.096000e+03 : f32
    %21 = vector.broadcast %cst_4 : f32 to vector<16x32x128xf32>
    %22 = arith.select %20, %18, %21 : vector<16x32x128xi1>, vector<16x32x128xf32>
    %cst_5 = arith.constant dense<0x7F800000> : vector<16x128xf32>
    %23 = vector.multi_reduction <minimumf>, %22, %cst_5 [1] : vector<16x32x128xf32> to vector<16x128xf32>
    %24 = vector.shape_cast %23 : vector<16x128xf32> to vector<16x1x128xf32>
    %cst_6 = arith.constant dense<0x7F800000> : vector<16x1xf32>
    %25 = vector.multi_reduction <minimumf>, %24, %cst_6 [2] : vector<16x1x128xf32> to vector<16x1xf32>
    %26 = vector.shape_cast %25 : vector<16x1xf32> to vector<16x1x1xf32>
    %cst_7 = arith.constant 1.562500e-02 : f32
    %27 = vector.broadcast %cst_7 : f32 to vector<16x1x1xf32>
    %28 = arith.mulf %26, %27 : vector<16x1x1xf32>
    %29 = math.floor %28 : vector<16x1x1xf32>
    %cst_8 = arith.constant 6.400000e+01 : f32
    %30 = vector.broadcast %cst_8 : f32 to vector<16x1x1xf32>
    %31 = arith.mulf %29, %30 : vector<16x1x1xf32>
    %32 = arith.subf %26, %31 : vector<16x1x1xf32>
    %33 = vector.broadcast %32 : vector<16x1x1xf32> to vector<16x32x128xf32>
    %34 = arith.subf %5, %33 : vector<16x32x128xf32>
    %35 = vector.broadcast %29 : vector<16x1x1xf32> to vector<16x32x128xf32>
    %36 = arith.subf %11, %35 : vector<16x32x128xf32>
    %37 = arith.mulf %34, %34 : vector<16x32x128xf32>
    %38 = arith.mulf %36, %36 : vector<16x32x128xf32>
    %39 = arith.addf %37, %38 : vector<16x32x128xf32>
    %cst_9 = arith.constant 5.625000e+01 : f32
    %40 = vector.broadcast %cst_9 : f32 to vector<16x32x128xf32>
    %41 = arith.cmpf ole, %39, %40 : vector<16x32x128xf32>
    %42 = vector.broadcast %15 : vector<16x1x1xf32> to vector<16x32x128xf32>
    %43 = arith.subf %0, %42 : vector<16x32x128xf32>
    %cst_10 = arith.constant 2.000000e+01 : f32
    %44 = vector.broadcast %cst_10 : f32 to vector<16x32x128xf32>
    %45 = arith.mulf %43, %44 : vector<16x32x128xf32>
    %46 = math.exp %45 : vector<16x32x128xf32>
    %cst_11 = arith.constant 0.000000e+00 : f32
    %47 = vector.broadcast %cst_11 : f32 to vector<16x32x128xf32>
    %48 = arith.select %41, %46, %47 : vector<16x32x128xi1>, vector<16x32x128xf32>
    %cst_12 = arith.constant dense<0.000000e+00> : vector<16x128xf32>
    %49 = vector.multi_reduction <add>, %48, %cst_12 [1] : vector<16x32x128xf32> to vector<16x128xf32>
    %50 = vector.shape_cast %49 : vector<16x128xf32> to vector<16x1x128xf32>
    %cst_13 = arith.constant dense<0.000000e+00> : vector<16x1xf32>
    %51 = vector.multi_reduction <add>, %50, %cst_13 [2] : vector<16x1x128xf32> to vector<16x1xf32>
    %52 = vector.shape_cast %51 : vector<16x1xf32> to vector<16x1x1xf32>
    %53 = tpu.reciprocal %52 {approx = true} : vector<16x1x1xf32> -> vector<16x1x1xf32>
    %54 = arith.mulf %48, %5 : vector<16x32x128xf32>
    %cst_14 = arith.constant dense<0.000000e+00> : vector<16x128xf32>
    %55 = vector.multi_reduction <add>, %54, %cst_14 [1] : vector<16x32x128xf32> to vector<16x128xf32>
    %56 = vector.shape_cast %55 : vector<16x128xf32> to vector<16x1x128xf32>
    %cst_15 = arith.constant dense<0.000000e+00> : vector<16x1xf32>
    %57 = vector.multi_reduction <add>, %56, %cst_15 [2] : vector<16x1x128xf32> to vector<16x1xf32>
    %58 = vector.shape_cast %57 : vector<16x1xf32> to vector<16x1x1xf32>
    %59 = arith.mulf %58, %53 : vector<16x1x1xf32>
    %60 = arith.mulf %48, %11 : vector<16x32x128xf32>
    %cst_16 = arith.constant dense<0.000000e+00> : vector<16x128xf32>
    %61 = vector.multi_reduction <add>, %60, %cst_16 [1] : vector<16x32x128xf32> to vector<16x128xf32>
    %62 = vector.shape_cast %61 : vector<16x128xf32> to vector<16x1x128xf32>
    %cst_17 = arith.constant dense<0.000000e+00> : vector<16x1xf32>
    %63 = vector.multi_reduction <add>, %62, %cst_17 [2] : vector<16x1x128xf32> to vector<16x1xf32>
    %64 = vector.shape_cast %63 : vector<16x1xf32> to vector<16x1x1xf32>
    %65 = arith.mulf %64, %53 : vector<16x1x1xf32>
    %cst_18 = arith.constant 0.00999999977 : f32
    %66 = vector.broadcast %cst_18 : f32 to vector<16x1x1xf32>
    %67 = arith.cmpf ogt, %15, %66 : vector<16x1x1xf32>
    %cst_19 = arith.constant 0.000000e+00 : f32
    %68 = vector.broadcast %cst_19 : f32 to vector<16x1x1xf32>
    %69 = arith.select %67, %59, %68 : vector<16x1x1xi1>, vector<16x1x1xf32>
    %cst_20 = arith.constant 4.000000e+00 : f32
    %70 = vector.broadcast %cst_20 : f32 to vector<16x1x1xf32>
    %71 = arith.mulf %69, %70 : vector<16x1x1xf32>
    %cst_21 = arith.constant 0.000000e+00 : f32
    %72 = vector.broadcast %cst_21 : f32 to vector<16x1x1xf32>
    %73 = arith.select %67, %65, %72 : vector<16x1x1xi1>, vector<16x1x1xf32>
    %cst_22 = arith.constant 4.000000e+00 : f32
    %74 = vector.broadcast %cst_22 : f32 to vector<16x1x1xf32>
    %75 = arith.mulf %73, %74 : vector<16x1x1xf32>
    %cst_23 = arith.constant 1.000000e-01 : f32
    %76 = vector.broadcast %cst_23 : f32 to vector<16x1x1xf32>
    %77 = arith.cmpf olt, %15, %76 : vector<16x1x1xf32>
    %cst_24 = arith.constant 0.000000e+00 : f32
    %78 = vector.broadcast %cst_24 : f32 to vector<16x1x1xf32>
    %79 = arith.select %77, %78, %15 : vector<16x1x1xi1>, vector<16x1x1xf32>
    %80 = tpu.iota {dimensions = array<i32: 1>} : vector<16x128xi32>
    %c0_i32 = arith.constant 0 : i32
    %81 = vector.broadcast %c0_i32 : i32 to vector<16x128xi32>
    %82 = arith.cmpi eq, %80, %81 : vector<16x128xi32>
    %83 = vector.shape_cast %71 : vector<16x1x1xf32> to vector<16x1xf32>
    %c1_i32 = arith.constant 1 : i32
    %84 = vector.broadcast %c1_i32 : i32 to vector<16x128xi32>
    %85 = arith.cmpi eq, %80, %84 : vector<16x128xi32>
    %86 = vector.shape_cast %75 : vector<16x1x1xf32> to vector<16x1xf32>
    %c2_i32_25 = arith.constant 2 : i32
    %87 = vector.broadcast %c2_i32_25 : i32 to vector<16x128xi32>
    %88 = arith.cmpi eq, %80, %87 : vector<16x128xi32>
    %89 = vector.shape_cast %79 : vector<16x1x1xf32> to vector<16x1xf32>
    %cst_26 = arith.constant 0.000000e+00 : f32
    %90 = vector.shape_cast %89 : vector<16x1xf32> to vector<16x1xf32>
    %91 = vector.broadcast %90 : vector<16x1xf32> to vector<16x128xf32>
    %92 = vector.broadcast %cst_26 : f32 to vector<16x128xf32>
    %93 = arith.select %88, %91, %92 : vector<16x128xi1>, vector<16x128xf32>
    %94 = vector.shape_cast %86 : vector<16x1xf32> to vector<16x1xf32>
    %95 = vector.broadcast %94 : vector<16x1xf32> to vector<16x128xf32>
    %96 = arith.select %85, %95, %93 : vector<16x128xi1>, vector<16x128xf32>
    %97 = vector.shape_cast %83 : vector<16x1xf32> to vector<16x1xf32>
    %98 = vector.broadcast %97 : vector<16x1xf32> to vector<16x128xf32>
    %99 = arith.select %82, %98, %96 : vector<16x128xi1>, vector<16x128xf32>
    %c0_27 = arith.constant 0 : index
    %c0_28 = arith.constant 0 : index
    %100 = vector.load %arg2[%c0_27, %c0_28] : memref<16x128xf32, #tpu.memory_space<vmem>>, vector<16x128xf32>
    tpu.vector_store %arg2[%c0_27, %c0_28], %99 {strides = array<i32>} : memref<16x128xf32, #tpu.memory_space<vmem>>, vector<16x128xf32>,
    return
  }
  func.func @transform_0(%arg0: i32) -> (i32, i32, i32) {
    %c0_i32 = arith.constant 0 : i32
    %c0_i32_0 = arith.constant 0 : i32
    %c0_i32_1 = arith.constant 0 : i32
    return %arg0, %c0_i32, %c0_i32_0 : i32, i32, i32
  }
  func.func @transform_1(%arg0: i32) -> (i32, i32) {
    %c0_i32 = arith.constant 0 : i32
    %c0_i32_0 = arith.constant 0 : i32
    return %arg0, %c0_i32 : i32, i32
  }
}

</mosaic_0001>

<llo_original>
// kernel: custom-call.33
$region0: #{custom-call.33}
  %s0 = inlined_call_operand.vmem [shape: f32[8,8,4], index: 0, kind: input, shape index: {}]
  %s1 = inlined_call_operand.vmem [shape: f32[8,8,4], index: 1, kind: output, shape index: {0}]
  %s2 = inlined_call_operand.hbm [shape: f32[8,4], index: 2, kind: output, shape index: {1}]
  %3 = xla_tuple %s1, %s2
  $region1: #{custom-call.33} parent=0
    #allocation0 [shape = 'u8[8192]{0}', space=vmem, size = 0x2000, scoped, tag = 'operand span for operand 0']
    #allocation1 [shape = 'u8[8192]{0}', space=vmem, size = 0x2000, scoped, tag = 'operand span for operand 1']
    #allocation2 [shape = 'u8[8192]{0}', space=vmem, size = 0x2000, scoped, tag = 'operand span for operand 2']
    #allocation3 [shape = 's32[2]{0}', space=sflag, size = 0x8, scoped, tag = 'scoped memory for custom-call.33']
    %4 = vsyncpa [#allocation3], 0
    %s5 = scalar_lea.sflag [#allocation3], 1
    %6 = vsyncpa %s5, 0
    loop: start=0, step=1, limit=10
    $region2: #{custom-call.33} parent=1 // loop_pre_header
      _
    $region3: #{custom-call.33} parent=1 // loop_header
      %s8 = sphi 0, %s12
      %p9 = scmp.ge.s32.totalorder %s8, 10
      %s15 = sphi 0, %s34
      %s16 = sphi 0, %s30
      %s17 = sphi 0, %s26
      %s18 = sphi 0, %s15
      %s19 = sphi 0, %s16
      %s20 = sphi 0, %s17
      %s21 = sphi 0, %s18
      %s22 = sphi 0, %s19
      %s23 = sphi 0, %s20
      %s49 = sphi 0, %s51
      %s52 = sphi 0, %s49
      %s53 = sphi 0, %s52
      %s69 = sphi 0, %s53
    $region4: #{custom-call.33} parent=1 // loop_header_branch
      %11 = sbr.rel (%p9) target = $region8
    $region5: #{custom-call.33} parent=1 // loop_body
      %s13 = ssub.s32 %s8, 1
      %s14 = ssub.s32 %s8, 2
      %s24 = sadd.s32 1, %s17
      %p25 = scmp.ge.s32.totalorder %s24, 1
      %s26 = scalar_select %p25, 0, %s24
      %s27 = sadd.s32 1, %s16
      %s28 = scalar_select %p25, %s27, %s16
      %p29 = scmp.ge.s32.totalorder %s28, 1
      %s30 = scalar_select %p29, 0, %s28
      %s31 = sadd.s32 1, %s15
      %s32 = scalar_select %p29, %s31, %s15
      %p33 = scmp.ge.s32.totalorder %s32, 8
      %s34 = scalar_select %p33, 0, %s32
      %p35 = scmp.lt.s32.totalorder %s15, 0
      %s36 = ssub.s32 0, %s15
      %s37 = scalar_select %p35, %s36, %s15
      %s38 = sshrl.u32 %s37, 3
      %s39 = ssub.s32 0, %s38
      %s40 = scalar_select %p35, %s39, %s38
      %p41 = scmp.lt.s32.totalorder %s34, 0
      %s42 = ssub.s32 0, %s34
      %s43 = scalar_select %p41, %s42, %s34
      %s44 = sshrl.u32 %s43, 3
      %s45 = ssub.s32 0, %s44
      %s46 = scalar_select %p41, %s45, %s44
      %s47 = ssub.s32 %s40, %s46
      %p48 = scmp.eq.s32.totalorder %s47, 0
      %s50 = sadd.s32 %s49, 1
      %s51 = scalar_select %p48, %s49, %s50
      %p54 = pneg %p48
      %p55 = scmp.eq.s32.totalorder %s8, 7
      %p56 = por %p54, %p55
      %p57 = scmp.ne.s32.totalorder %s49, %s52
      %p58 = scmp.eq.s32.totalorder %s8, 0
      %p59 = por %p57, %p58
      %p60 = scmp.ne.s32.totalorder %s49, %s52
      %p61 = scmp.eq.s32.totalorder %s13, 7
      %p62 = por %p60, %p61
      %p63 = scmp.ne.s32.totalorder %s52, %s53
      %p64 = scmp.eq.s32.totalorder %s13, 0
      %p65 = por %p63, %p64
      %p66 = scmp.ne.s32.totalorder %s52, %s53
      %p67 = scmp.eq.s32.totalorder %s14, 7
      %p68 = por %p66, %p67
      %p70 = scmp.ne.s32.totalorder %s53, %s69
      %p71 = scmp.eq.s32.totalorder %s14, 0
      %p72 = por %p70, %p71
      %p73 = scmp.le.s32.totalorder 1, %s8
      %p74 = scmp.lt.s32.totalorder %s8, 9
      %p75 = pnand %p73, %p74
      %p76 = pneg %p75
      // Predicated region
      $region9: #{custom-call.33} parent=5 // pred_check
        _
      $region10: #{custom-call.33} parent=5 // pred_check_branch
        %78 = sbr.rel (%p75) target = $region12
      $region11: #{custom-call.33} parent=5 // pred_region
        %s79 = ssub.s32 %s8, 1
      $region12: #{custom-call.33} parent=5 // pred_fallthru
        _
      %p80 = scmp.lt.s32.totalorder %s8, 8
      // Predicated region
      $region13: #{custom-call.33} parent=5 // pred_check
        %p81 = pneg %p80
      $region14: #{custom-call.33} parent=5 // pred_check_branch
        %83 = sbr.rel (%p81) target = $region16
      $region15: #{custom-call.33} parent=5 // pred_region
        %s84 = sand.u32 %s8, 1
        %s85 = sand.u32 %s8, 1
        %s86 = smul.addr %s85, 8
        %s87 = scalar_lea.vmem [#allocation0], %s86
        %s88 = sadd.s32 %s17, %s16
        %s89 = sadd.s32 %s88, %s15
        %s90 = smul.addr %s89, 8
        %s91 = scalar_lea.vmem %s0, %s90
        // Predicated region
        $region17: #{custom-call.33} parent=15 // pred_check
          _
        $region18: #{custom-call.33} parent=15 // pred_check_branch
          %93 = sbr.rel (0) target = $region20
        $region19: #{custom-call.33} parent=15 // pred_region
          // Predicated region
          $region21: #{custom-call.33} parent=19 // pred_check
            _
          $region22: #{custom-call.33} parent=19 // pred_check_branch
            %95 = sbr.rel (0) target = $region24
          $region23: #{custom-call.33} parent=19 // pred_region
            // Predicated region
            $region36: #{custom-call.33} parent=23 // pred_check
              _
            $region37: #{custom-call.33} parent=23 // pred_check_branch
              %111 = sbr.rel (0) target = $region39
            $region38: #{custom-call.33} parent=23 // pred_region
              loop: start=0, step=1, limit=1
              $region40: #{custom-call.33} parent=38 // loop_pre_header
                _
              $region41: #{custom-call.33} parent=38 // loop_header
                %s113 = sphi 0, %s117
                %p114 = scmp.ge.s32.totalorder %s113, 1
                %s118 = sphi %s91, %s91
                %s119 = sphi %s87, %s87
              $region42: #{custom-call.33} parent=38 // loop_header_branch
                %116 = sbr.rel (%p114) target = $region46
              $region43: #{custom-call.33} parent=38 // loop_body
                %v120 = vld [vmem:[%s118] sm:$0xff]
                %121 = vst [vmem:[%s119] sm:$0xff] %v120
              $region44: #{custom-call.33} parent=38 // loop_footer
                %s117 = sadd.s32 1, %s113
              $region45: #{custom-call.33} parent=38 // loop_footer_branch
                %112 = sbr.rel target = $region41
              $region46: #{custom-call.33} parent=38 // loop_exit
                _
            $region39: #{custom-call.33} parent=23 // pred_fallthru
              _
            // Predicated region
            $region47: #{custom-call.33} parent=23 // pred_check
              _
            $region48: #{custom-call.33} parent=23 // pred_check_branch
              %123 = sbr.rel target = $region50
            $region49: #{custom-call.33} parent=23 // pred_region
              _
            $region50: #{custom-call.33} parent=23 // pred_fallthru
              _
          $region24: #{custom-call.33} parent=19 // pred_fallthru
            _
          // Predicated region
          $region25: #{custom-call.33} parent=19 // pred_check
            _
          $region26: #{custom-call.33} parent=19 // pred_check_branch
            %97 = sbr.rel target = $region28
          $region27: #{custom-call.33} parent=19 // pred_region
            %s99 = ssub.s32 256, 1
            loop: start=0, step=1, limit=1
            $region29: #{custom-call.33} parent=27 // loop_pre_header
              _
            $region30: #{custom-call.33} parent=27 // loop_header
              %s101 = sphi 0, %s105
              %p102 = scmp.ge.s32.totalorder %s101, 1
              %s106 = sphi %s91, %s91
              %s107 = sphi %s87, %s87
            $region31: #{custom-call.33} parent=27 // loop_header_branch
              %104 = sbr.rel (%p102) target = $region35
            $region32: #{custom-call.33} parent=27 // loop_body
              %v108 = vld [vmem:[%s106] sm:%s99]
              %109 = vst [vmem:[%s107] sm:%s99] %v108
            $region33: #{custom-call.33} parent=27 // loop_footer
              %s105 = sadd.s32 1, %s101
            $region34: #{custom-call.33} parent=27 // loop_footer_branch
              %100 = sbr.rel target = $region30
            $region35: #{custom-call.33} parent=27 // loop_exit
              _
          $region28: #{custom-call.33} parent=19 // pred_fallthru
            _
        $region20: #{custom-call.33} parent=15 // pred_fallthru
          _
        %124 = vnop
      $region16: #{custom-call.33} parent=5 // pred_fallthru
        _
      %p125 = scmp.le.s32.totalorder 1, %s8
      %p126 = scmp.lt.s32.totalorder %s8, 9
      %p127 = pnand %p125, %p126
      %p128 = pneg %p127
      // Predicated region
      $region51: #{custom-call.33} parent=5 // pred_check
        _
      $region52: #{custom-call.33} parent=5 // pred_check_branch
        %130 = sbr.rel (%p127) target = $region54
      $region53: #{custom-call.33} parent=5 // pred_region
        #allocation4 [shape = 'f32[8,128]{1,0}', space=vmem, size = 0x1000, scoped, tag = 'scratch for Householder reflectors']
        %s131 = ssub.s32 %s8, 1
        %s132 = sand.u32 %s13, 1
        %s133 = sand.u32 %s13, 1
        %s134 = smul.addr %s133, 8
        %s135 = scalar_lea.vmem [#allocation0], %s134
        %s136 = sand.u32 %s13, 1
        %s137 = sand.u32 %s13, 1
        %s138 = smul.addr %s137, 8
        %s139 = scalar_lea.vmem [#allocation0], %s138
        %s140 = sand.u32 %s13, 1
        %s141 = sand.u32 %s13, 1
        %s142 = smul.addr %s141, 8
        %s143 = scalar_lea.vmem [#allocation1], %s142
        %p144 = pneg %p65
        %p145 = pneg %p62
        %s146 = sand.u32 %s52, 1
        %s147 = scalar_lea.sflag [#allocation3], %s146
        %s148 = sand.u32 %s52, 1
        %s149 = smul.addr %s148, 8
        %s150 = scalar_lea.vmem [#allocation2], %s149
        %p151 = scmp.lt.s32.totalorder %s18, 0
        %s152 = ssub.s32 0, %s18
        %s153 = scalar_select %p151, %s152, %s18
        %s154 = sshrl.u32 %s153, 3
        %s155 = ssub.s32 0, %s154
        %s156 = scalar_select %p151, %s155, %s154
        %s157 = sand.u32 %s18, 7
        %s158 = scalar_lea.vmem %s150, %s157 [#allocation2]
        %v159 = vld [vmem:[%s135] sm:$0xff]
        %160 = vst [vmem:[%s143] sm:$0xff] %v159
        %161 = vst [vmem:[%s158] sm:$0x1] 0.0
        loop: start=0, step=1, limit=4
        $region55: #{custom-call.33} parent=53 // loop_pre_header
          _
        $region56: #{custom-call.33} parent=53 // loop_header
          %s163 = sphi 0, %s167
          %p164 = scmp.ge.s32.totalorder %s163, 4
        $region57: #{custom-call.33} parent=53 // loop_header_branch
          %166 = sbr.rel (%p164) target = $region61
        $region58: #{custom-call.33} parent=53 // loop_body
          %v168 = vld [vmem:[%s143] sm:$0xff]
          %v169 = vlaneseq
          %v170 = vshrl.u32 %v169, 7
          %v172 = vstv %s163
          %vm173 = vcmp.gt.s32.totalorder %v170, %v172
          %vm174 = vcmp.lt.s32.totalorder %v170, 8
          %vm175 = vmand %vm173, %vm174
          %v176 = vsel %vm175, %v168, 0.0
          %v177 = vmul.f32 %v176, %v176
          %v178 = vrot.slane %v177, 4
          %v179 = vadd.f32 %v177, %v178
          %v180 = vrot.slane %v179, 2
          %v181 = vadd.f32 %v179, %v180
          %v182 = vrot.slane %v181, 1
          %v183 = vadd.f32 %v181, %v182
          %v184 = vrsqrt.pop %v183
          %v185 = vmul.f32 %v184, %v183
          %v186 = vmul.f32 %v185, %v184
          %v187 = vmul.f32 0.5, %v186
          %v188 = vsub.f32 1.5, %v187
          %v189 = vmul.f32 %v184, %v188
          %v190 = vmul.f32 %v183, %v189
          %vm191 = vcmp.eq.f32.partialorder %v183, inf
          %v192 = vsel %vm191, %v183, %v190
          %vm193 = vcmp.eq.f32.partialorder %v183, 0.0
          %v194 = vand.u32 %v183, 2147483648
          %v195 = vsel %vm193, %v194, %v192
          %vm196 = vcmp.eq.f32.partialorder %v183, 0.0
          %s197 = sshrl.u32 %s163, 3
          %s198 = sand.u32 %s163, 7
          %s199 = smul.addr %s197, 8
          %s200 = sadd.s32 %s198, %s199
          %s201 = scalar_lea.vmem %s143, %s200 [#allocation1]
          %v202 = vld [vmem:[%s201] ss:$0 sm:$0xff]
          %v203 = vand.u32 2147483647, %v202
          %v204 = vmax.f32 %v203, 0.0
          %v205 = vand.u32 2147483647, %v195
          %v206 = vmax.f32 %v204, %v205
          %v207 = vrcp.pop %v206
          %v208 = vmul.f32 %v206, %v207
          %v209 = vsub.f32 1.0, %v208
          %v210 = vmul.f32 %v207, %v209
          %v211 = vadd.f32 %v207, %v210
          %vm212 = vweird.f32 %v206
          %vm213 = vweird.f32 %v207
          %vm214 = vmor %vm212, %vm213
          %v215 = vsel %vm214, %v207, %v211
          %v216 = vand.u32 2147483647, %v206
          %vm217 = vcmp.eq.f32.partialorder %v216, 8.507059e+37
          %v218 = vand.u32 %v206, 2147483648
          %v219 = vor.u32 1.1754944e-38, %v218
          %v220 = vsel %vm217, %v219, %v215
          %v221 = vmul.f32 %v203, %v220
          %v222 = vmul.f32 %v221, %v221
          %v223 = vrcp.pop %v206
          %v224 = vmul.f32 %v206, %v223
          %v225 = vsub.f32 1.0, %v224
          %v226 = vmul.f32 %v223, %v225
          %v227 = vadd.f32 %v223, %v226
          %vm228 = vweird.f32 %v206
          %vm229 = vweird.f32 %v223
          %vm230 = vmor %vm228, %vm229
          %v231 = vsel %vm230, %v223, %v227
          %v232 = vand.u32 2147483647, %v206
          %vm233 = vcmp.eq.f32.partialorder %v232, 8.507059e+37
          %v234 = vand.u32 %v206, 2147483648
          %v235 = vor.u32 1.1754944e-38, %v234
          %v236 = vsel %vm233, %v235, %v231
          %v237 = vmul.f32 0.0, %v236
          %v238 = vmul.f32 %v237, %v237
          %v239 = vadd.f32 %v222, %v238
          %v240 = vrcp.pop %v206
          %v241 = vmul.f32 %v206, %v240
          %v242 = vsub.f32 1.0, %v241
          %v243 = vmul.f32 %v240, %v242
          %v244 = vadd.f32 %v240, %v243
          %vm245 = vweird.f32 %v206
          %vm246 = vweird.f32 %v240
          %vm247 = vmor %vm245, %vm246
          %v248 = vsel %vm247, %v240, %v244
          %v249 = vand.u32 2147483647, %v206
          %vm250 = vcmp.eq.f32.partialorder %v249, 8.507059e+37
          %v251 = vand.u32 %v206, 2147483648
          %v252 = vor.u32 1.1754944e-38, %v251
          %v253 = vsel %vm250, %v252, %v248
          %v254 = vmul.f32 %v205, %v253
          %v255 = vmul.f32 %v254, %v254
          %v256 = vadd.f32 %v239, %v255
          %vm257 = vcmp.eq.f32.partialorder %v206, 0.0
          %v258 = vrsqrt.pop %v256
          %v259 = vmul.f32 %v258, %v256
          %v260 = vmul.f32 %v259, %v258
          %v261 = vmul.f32 0.5, %v260
          %v262 = vsub.f32 1.5, %v261
          %v263 = vmul.f32 %v258, %v262
          %v264 = vmul.f32 %v256, %v263
          %vm265 = vcmp.eq.f32.partialorder %v256, inf
          %v266 = vsel %vm265, %v256, %v264
          %vm267 = vcmp.eq.f32.partialorder %v256, 0.0
          %v268 = vand.u32 %v256, 2147483648
          %v269 = vsel %vm267, %v268, %v266
          %v270 = vmul.f32 %v206, %v269
          %v271 = vsel %vm257, 0.0, %v270
          %vm272 = vcmp.lt.f32.partialorder %v202, 0.0
          %v273 = vxor.u32 %v271, 2147483648
          %v274 = vsel %vm272, %v271, %v273
          %v275 = vsub.f32 %v274, %v202
          %v276 = vrcp.pop %v274
          %v277 = vmul.f32 %v274, %v276
          %v278 = vsub.f32 1.0, %v277
          %v279 = vmul.f32 %v276, %v278
          %v280 = vadd.f32 %v276, %v279
          %vm281 = vweird.f32 %v274
          %vm282 = vweird.f32 %v276
          %vm283 = vmor %vm281, %vm282
          %v284 = vsel %vm283, %v276, %v280
          %v285 = vand.u32 2147483647, %v274
          %vm286 = vcmp.eq.f32.partialorder %v285, 8.507059e+37
          %v287 = vand.u32 %v274, 2147483648
          %v288 = vor.u32 1.1754944e-38, %v287
          %v289 = vsel %vm286, %v288, %v284
          %v290 = vmul.f32 %v275, %v289
          %v291 = vsel %vm196, %v202, %v274
          %v292 = vsel %vm196, 0.0, %v290
          %v293 = vsub.f32 %v202, %v291
          %s294 = smov %s143
          %v295 = vlaneseq
          %v296 = vshrl.u32 %v295, 7
          %v297 = vmov %v296
          %v298 = vld [vmem:[%s294] sm:$0xff]
          %v300 = vstv %s163
          %vm301 = vcmp.gt.s32.totalorder %v297, %v300
          %vm302 = vcmp.lt.s32.totalorder %v297, 8
          %vm303 = vmand %vm301, %vm302
          %v304 = vsel %vm303, %v298, 0.0
          %v305 = vrcp.pop %v293
          %v306 = vmul.f32 %v293, %v305
          %v307 = vsub.f32 1.0, %v306
          %v308 = vmul.f32 %v305, %v307
          %v309 = vadd.f32 %v305, %v308
          %vm310 = vweird.f32 %v293
          %vm311 = vweird.f32 %v305
          %vm312 = vmor %vm310, %vm311
          %v313 = vsel %vm312, %v305, %v309
          %v314 = vand.u32 2147483647, %v293
          %vm315 = vcmp.eq.f32.partialorder %v314, 8.507059e+37
          %v316 = vand.u32 %v293, 2147483648
          %v317 = vor.u32 1.1754944e-38, %v316
          %v318 = vsel %vm315, %v317, %v313
          %v319 = vmul.f32 %v304, %v318
          %v320 = vsel %vm196, 0.0, %v319
          %v321 = vstv %s163
          %v322 = vlaneseq
          %v323 = vand.u32 %v322, 127
          %vm324 = vcmp.eq.s32.totalorder %v323, %v321
          %v325 = vsel %vm324, %v320, 0.0
          %326 = vadd.xlane.f32.xlu0 %v325
          %v327 = vpop.xlane.xlu0 %326
          %328 = vst [vmem:[#allocation4] sm:$0xff] %v327
          %s329 = scalar_lea.vmem [#allocation4], %s163
          %330 = vst [vmem:[%s329] sm:$0x1] 1.0
          %v331 = vstv %s163
          %v332 = vlaneseq
          %v333 = vand.u32 %v332, 127
          %vm334 = vcmp.eq.s32.totalorder %v333, %v331
          %v335 = vsel %vm334, %v292, 0.0
          %336 = vadd.xlane.f32.xlu0 %v335
          %v337 = vpop.xlane.xlu0 %336
          %v338 = vstv %s163
          %v339 = vlaneseq
          %v340 = vand.u32 %v339, 127
          %vm341 = vcmp.eq.s32.totalorder %v340, %v338
          %v342 = vld [vmem:[%s158] ss:$0 sm:$0xff]
          %v343 = vsel %vm341, %v337, %v342
          %344 = vst [vmem:[%s158] sm:$0x1] %v343
          %s345 = smov %s143
          %s346 = smov [#allocation4]
          %v347 = vlaneseq
          %v348 = vshrl.u32 %v347, 7
          %v349 = vmov %v348
          %v351 = vld [vmem:[%s346] sm:$0xff]
          %v352 = vld [vmem:[%s345] sm:$0xff]
          %v353 = vmul.f32 %v351, %v352
          %vm354 = vcmp.lt.s32.totalorder %v349, 8
          %v355 = vsel %vm354, %v353, 0.0
          %v356 = vrot.slane %v355, 4
          %v357 = vadd.f32 %v355, %v356
          %v358 = vrot.slane %v357, 2
          %v359 = vadd.f32 %v357, %v358
          %v360 = vrot.slane %v359, 1
          %v361 = vadd.f32 %v359, %v360
          %s362 = smov %s345
          %s363 = smov %s346
          %v364 = vlaneseq
          %v365 = vshrl.u32 %v364, 7
          %v366 = vmov %v365
          %v367 = vmul.f32 %v361, %v337
          %v369 = vlaneseq
          %v370 = vand.u32 %v369, 127
          %v371 = vld [vmem:[%s363] sm:$0xff]
          %v372 = vmul.f32 %v371, %v367
          %v373 = vld [vmem:[%s362] sm:$0xff]
          %v374 = vstv %s163
          %vm375 = vcmp.gt.s32.totalorder %v370, %v374
          %v376 = vsub.f32 %v373, %v372
          %v377 = vsel %vm375, %v376, %v373
          %v378 = vstv %s163
          %v379 = vlaneseq
          %v380 = vand.u32 %v379, 127
          %vm381 = vcmp.eq.s32.totalorder %v380, %v378
          %v382 = vstv %s163
          %vm383 = vcmp.ge.s32.totalorder %v366, %v382
          %vm384 = vmand %vm381, %vm383
          %v385 = vsel %vm384, %v371, %v377
          %386 = vst [vmem:[%s362] sm:$0xff] %v385
          %s387 = scalar_lea.vmem %s362, %s163
          %v388 = vld [vmem:[%s387] ss:$0 sm:$0xff]
          %v389 = vstv %s163
          %v390 = vlaneseq
          %v391 = vand.u32 %v390, 127
          %vm392 = vcmp.eq.s32.totalorder %v391, %v389
          %v393 = vsel %vm392, %v291, %v388
          %394 = vst [vmem:[%s387] sm:$0x1] %v393
        $region59: #{custom-call.33} parent=53 // loop_footer
          %s167 = sadd.s32 1, %s163
        $region60: #{custom-call.33} parent=53 // loop_footer_branch
          %162 = sbr.rel target = $region56
        $region61: #{custom-call.33} parent=53 // loop_exit
          _
        %s395 = sand.u32 %s13, 1
        %s396 = sand.u32 %s13, 1
        %s397 = smul.addr %s396, 8
        %s398 = scalar_lea.vmem [#allocation1], %s397
        %s399 = sand.u32 %s52, 1
        %s400 = scalar_lea.sflag [#allocation3], %s399
        %s401 = sand.u32 %s52, 1
        %s402 = smul.addr %s401, 8
        %s403 = scalar_lea.vmem [#allocation2], %s402
        %s404 = sadd.s32 %s20, %s19
        %s405 = sadd.s32 %s404, %s18
        %s406 = smul.addr %s405, 8
        %s407 = scalar_lea.vmem %s1, %s406
        // Predicated region
        $region62: #{custom-call.33} parent=53 // pred_check
          _
        $region63: #{custom-call.33} parent=53 // pred_check_branch
          %409 = sbr.rel (0) target = $region65
        $region64: #{custom-call.33} parent=53 // pred_region
          // Predicated region
          $region66: #{custom-call.33} parent=64 // pred_check
            _
          $region67: #{custom-call.33} parent=64 // pred_check_branch
            %411 = sbr.rel (0) target = $region69
          $region68: #{custom-call.33} parent=64 // pred_region
            // Predicated region
            $region81: #{custom-call.33} parent=68 // pred_check
              _
            $region82: #{custom-call.33} parent=68 // pred_check_branch
              %427 = sbr.rel (0) target = $region84
            $region83: #{custom-call.33} parent=68 // pred_region
              loop: start=0, step=1, limit=1
              $region85: #{custom-call.33} parent=83 // loop_pre_header
                _
              $region86: #{custom-call.33} parent=83 // loop_header
                %s429 = sphi 0, %s433
                %p430 = scmp.ge.s32.totalorder %s429, 1
                %s434 = sphi %s398, %s398
                %s435 = sphi %s407, %s407
              $region87: #{custom-call.33} parent=83 // loop_header_branch
                %432 = sbr.rel (%p430) target = $region91
              $region88: #{custom-call.33} parent=83 // loop_body
                %v436 = vld [vmem:[%s434] sm:$0xff]
                %437 = vst [vmem:[%s435] sm:$0xff] %v436
              $region89: #{custom-call.33} parent=83 // loop_footer
                %s433 = sadd.s32 1, %s429
              $region90: #{custom-call.33} parent=83 // loop_footer_branch
                %428 = sbr.rel target = $region86
              $region91: #{custom-call.33} parent=83 // loop_exit
                _
            $region84: #{custom-call.33} parent=68 // pred_fallthru
              _
            // Predicated region
            $region92: #{custom-call.33} parent=68 // pred_check
              _
            $region93: #{custom-call.33} parent=68 // pred_check_branch
              %439 = sbr.rel target = $region95
            $region94: #{custom-call.33} parent=68 // pred_region
              _
            $region95: #{custom-call.33} parent=68 // pred_fallthru
              _
          $region69: #{custom-call.33} parent=64 // pred_fallthru
            _
          // Predicated region
          $region70: #{custom-call.33} parent=64 // pred_check
            _
          $region71: #{custom-call.33} parent=64 // pred_check_branch
            %413 = sbr.rel target = $region73
          $region72: #{custom-call.33} parent=64 // pred_region
            %s415 = ssub.s32 256, 1
            loop: start=0, step=1, limit=1
            $region74: #{custom-call.33} parent=72 // loop_pre_header
              _
            $region75: #{custom-call.33} parent=72 // loop_header
              %s417 = sphi 0, %s421
              %p418 = scmp.ge.s32.totalorder %s417, 1
              %s422 = sphi %s398, %s398
              %s423 = sphi %s407, %s407
            $region76: #{custom-call.33} parent=72 // loop_header_branch
              %420 = sbr.rel (%p418) target = $region80
            $region77: #{custom-call.33} parent=72 // loop_body
              %v424 = vld [vmem:[%s422] sm:%s415]
              %425 = vst [vmem:[%s423] sm:%s415] %v424
            $region78: #{custom-call.33} parent=72 // loop_footer
              %s421 = sadd.s32 1, %s417
            $region79: #{custom-call.33} parent=72 // loop_footer_branch
              %416 = sbr.rel target = $region75
            $region80: #{custom-call.33} parent=72 // loop_exit
              _
          $region73: #{custom-call.33} parent=64 // pred_fallthru
            _
        $region65: #{custom-call.33} parent=53 // pred_fallthru
          _
        %440 = vnop
        // Predicated region
        $region96: #{custom-call.33} parent=53 // pred_check
          %p441 = pneg %p62
        $region97: #{custom-call.33} parent=53 // pred_check_branch
          %443 = sbr.rel (%p441) target = $region99
        $region98: #{custom-call.33} parent=53 // pred_region
          %p444 = scmp.lt.s32.totalorder %s18, 0
          %s445 = ssub.s32 0, %s18
          %s446 = scalar_select %p444, %s445, %s18
          %s447 = sshrl.u32 %s446, 3
          %s448 = ssub.s32 0, %s447
          %s449 = scalar_select %p444, %s448, %s447
          %451 = vsyncadd %s400, 0
          %s452 = smul.addr %s449, 8
          %s453 = scalar_lea.hbm %s2, %s452
          %s455 = sshll.u32 %s403, 4
          %s456 = int_to_ptr.vmem [resolvable:$true] %s455
          %s457 = sshll.u32 %s453, 4
          %s458 = int_to_ptr.hbm [resolvable:$true] %s457
          %460 = dma.vmem_to_hbm [thread:$0]  %s456, 128, %s458, %s400
        $region99: #{custom-call.33} parent=53 // pred_fallthru
          _
      $region54: #{custom-call.33} parent=5 // pred_fallthru
        _
      %p461 = scmp.le.s32.totalorder 2, %s8
      // Predicated region
      $region100: #{custom-call.33} parent=5 // pred_check
        %p462 = pneg %p461
      $region101: #{custom-call.33} parent=5 // pred_check_branch
        %464 = sbr.rel (%p462) target = $region103
      $region102: #{custom-call.33} parent=5 // pred_region
        %s465 = ssub.s32 %s8, 2
        %s466 = sand.u32 %s14, 1
        %s467 = sand.u32 %s14, 1
        %s468 = smul.addr %s467, 8
        %s469 = scalar_lea.vmem [#allocation1], %s468
        // Predicated region
        $region104: #{custom-call.33} parent=102 // pred_check
          %p470 = pneg %p68
        $region105: #{custom-call.33} parent=102 // pred_check_branch
          %472 = sbr.rel (%p470) target = $region107
        $region106: #{custom-call.33} parent=102 // pred_region
          %s473 = sand.u32 %s53, 1
          %s474 = scalar_lea.sflag [#allocation3], %s473
          %s475 = sand.u32 %s53, 1
          %s476 = smul.addr %s475, 8
          %s477 = scalar_lea.vmem [#allocation2], %s476
          %479 = dma.done %s474, 128
        $region107: #{custom-call.33} parent=102 // pred_fallthru
          _
      $region103: #{custom-call.33} parent=5 // pred_fallthru
        _
    $region6: #{custom-call.33} parent=1 // loop_footer
      %s12 = sadd.s32 1, %s8
    $region7: #{custom-call.33} parent=1 // loop_footer_branch
      %7 = sbr.rel target = $region3
    $region8: #{custom-call.33} parent=1 // loop_exit
      _
    %480 = vsyncpa [#allocation3], 1
    %s481 = scalar_lea.sflag [#allocation3], 1
    %482 = vsyncpa %s481, 1

// kernel: custom-call.41
$region0: #{custom-call.41}
  %s0 = inlined_call_operand.vmem [shape: f32[8,8,4], index: 0, kind: input, shape index: {}]
  %s1 = inlined_call_operand.vmem [shape: f32[8,8,4], index: 1, kind: output, shape index: {0}]
  %s2 = inlined_call_operand.vmem [shape: f32[8,4], index: 2, kind: output, shape index: {1}]
  %3 = xla_tuple %s1, %s2
  $region1: #{custom-call.41} parent=0
    #allocation0 [shape = 'u8[8192]{0}', space=vmem, size = 0x2000, scoped, tag = 'operand span for operand 0']
    #allocation1 [shape = 'u8[8192]{0}', space=vmem, size = 0x2000, scoped, tag = 'operand span for operand 1']
    #allocation2 [shape = 'u8[8192]{0}', space=vmem, size = 0x2000, scoped, tag = 'operand span for operand 2']
    loop: start=0, step=1, limit=10
    $region2: #{custom-call.41} parent=1 // loop_pre_header
      _
    $region3: #{custom-call.41} parent=1 // loop_header
      %s5 = sphi 0, %s9
      %p6 = scmp.ge.s32.totalorder %s5, 10
      %s12 = sphi 0, %s31
      %s13 = sphi 0, %s27
      %s14 = sphi 0, %s23
      %s15 = sphi 0, %s12
      %s16 = sphi 0, %s13
      %s17 = sphi 0, %s14
      %s18 = sphi 0, %s15
      %s19 = sphi 0, %s16
      %s20 = sphi 0, %s17
      %s46 = sphi 0, %s48
      %s49 = sphi 0, %s46
      %s50 = sphi 0, %s49
      %s66 = sphi 0, %s50
    $region4: #{custom-call.41} parent=1 // loop_header_branch
      %8 = sbr.rel (%p6) target = $region8
    $region5: #{custom-call.41} parent=1 // loop_body
      %s10 = ssub.s32 %s5, 1
      %s11 = ssub.s32 %s5, 2
      %s21 = sadd.s32 1, %s14
      %p22 = scmp.ge.s32.totalorder %s21, 1
      %s23 = scalar_select %p22, 0, %s21
      %s24 = sadd.s32 1, %s13
      %s25 = scalar_select %p22, %s24, %s13
      %p26 = scmp.ge.s32.totalorder %s25, 1
      %s27 = scalar_select %p26, 0, %s25
      %s28 = sadd.s32 1, %s12
      %s29 = scalar_select %p26, %s28, %s12
      %p30 = scmp.ge.s32.totalorder %s29, 8
      %s31 = scalar_select %p30, 0, %s29
      %p32 = scmp.lt.s32.totalorder %s12, 0
      %s33 = ssub.s32 0, %s12
      %s34 = scalar_select %p32, %s33, %s12
      %s35 = sshrl.u32 %s34, 3
      %s36 = ssub.s32 0, %s35
      %s37 = scalar_select %p32, %s36, %s35
      %p38 = scmp.lt.s32.totalorder %s31, 0
      %s39 = ssub.s32 0, %s31
      %s40 = scalar_select %p38, %s39, %s31
      %s41 = sshrl.u32 %s40, 3
      %s42 = ssub.s32 0, %s41
      %s43 = scalar_select %p38, %s42, %s41
      %s44 = ssub.s32 %s37, %s43
      %p45 = scmp.eq.s32.totalorder %s44, 0
      %s47 = sadd.s32 %s46, 1
      %s48 = scalar_select %p45, %s46, %s47
      %p51 = pneg %p45
      %p52 = scmp.eq.s32.totalorder %s5, 7
      %p53 = por %p51, %p52
      %p54 = scmp.ne.s32.totalorder %s46, %s49
      %p55 = scmp.eq.s32.totalorder %s5, 0
      %p56 = por %p54, %p55
      %p57 = scmp.ne.s32.totalorder %s46, %s49
      %p58 = scmp.eq.s32.totalorder %s10, 7
      %p59 = por %p57, %p58
      %p60 = scmp.ne.s32.totalorder %s49, %s50
      %p61 = scmp.eq.s32.totalorder %s10, 0
      %p62 = por %p60, %p61
      %p63 = scmp.ne.s32.totalorder %s49, %s50
      %p64 = scmp.eq.s32.totalorder %s11, 7
      %p65 = por %p63, %p64
      %p67 = scmp.ne.s32.totalorder %s50, %s66
      %p68 = scmp.eq.s32.totalorder %s11, 0
      %p69 = por %p67, %p68
      %p70 = scmp.le.s32.totalorder 1, %s5
      %p71 = scmp.lt.s32.totalorder %s5, 9
      %p72 = pnand %p70, %p71
      %p73 = pneg %p72
      // Predicated region
      $region9: #{custom-call.41} parent=5 // pred_check
        _
      $region10: #{custom-call.41} parent=5 // pred_check_branch
        %75 = sbr.rel (%p72) target = $region12
      $region11: #{custom-call.41} parent=5 // pred_region
        %s76 = ssub.s32 %s5, 1
      $region12: #{custom-call.41} parent=5 // pred_fallthru
        _
      %p77 = scmp.lt.s32.totalorder %s5, 8
      // Predicated region
      $region13: #{custom-call.41} parent=5 // pred_check
        %p78 = pneg %p77
      $region14: #{custom-call.41} parent=5 // pred_check_branch
        %80 = sbr.rel (%p78) target = $region16
      $region15: #{custom-call.41} parent=5 // pred_region
        %s81 = sand.u32 %s5, 1
        %s82 = sand.u32 %s5, 1
        %s83 = smul.addr %s82, 8
        %s84 = scalar_lea.vmem [#allocation0], %s83
        %s85 = sadd.s32 %s14, %s13
        %s86 = sadd.s32 %s85, %s12
        %s87 = smul.addr %s86, 8
        %s88 = scalar_lea.vmem %s0, %s87
        // Predicated region
        $region17: #{custom-call.41} parent=15 // pred_check
          _
        $region18: #{custom-call.41} parent=15 // pred_check_branch
          %90 = sbr.rel (0) target = $region20
        $region19: #{custom-call.41} parent=15 // pred_region
          // Predicated region
          $region21: #{custom-call.41} parent=19 // pred_check
            _
          $region22: #{custom-call.41} parent=19 // pred_check_branch
            %92 = sbr.rel (0) target = $region24
          $region23: #{custom-call.41} parent=19 // pred_region
            // Predicated region
            $region36: #{custom-call.41} parent=23 // pred_check
              _
            $region37: #{custom-call.41} parent=23 // pred_check_branch
              %108 = sbr.rel (0) target = $region39
            $region38: #{custom-call.41} parent=23 // pred_region
              loop: start=0, step=1, limit=1
              $region40: #{custom-call.41} parent=38 // loop_pre_header
                _
              $region41: #{custom-call.41} parent=38 // loop_header
                %s110 = sphi 0, %s114
                %p111 = scmp.ge.s32.totalorder %s110, 1
                %s115 = sphi %s88, %s88
                %s116 = sphi %s84, %s84
              $region42: #{custom-call.41} parent=38 // loop_header_branch
                %113 = sbr.rel (%p111) target = $region46
              $region43: #{custom-call.41} parent=38 // loop_body
                %v117 = vld [vmem:[%s115] sm:$0xff]
                %118 = vst [vmem:[%s116] sm:$0xff] %v117
              $region44: #{custom-call.41} parent=38 // loop_footer
                %s114 = sadd.s32 1, %s110
              $region45: #{custom-call.41} parent=38 // loop_footer_branch
                %109 = sbr.rel target = $region41
              $region46: #{custom-call.41} parent=38 // loop_exit
                _
            $region39: #{custom-call.41} parent=23 // pred_fallthru
              _
            // Predicated region
            $region47: #{custom-call.41} parent=23 // pred_check
              _
            $region48: #{custom-call.41} parent=23 // pred_check_branch
              %120 = sbr.rel target = $region50
            $region49: #{custom-call.41} parent=23 // pred_region
              _
            $region50: #{custom-call.41} parent=23 // pred_fallthru
              _
          $region24: #{custom-call.41} parent=19 // pred_fallthru
            _
          // Predicated region
          $region25: #{custom-call.41} parent=19 // pred_check
            _
          $region26: #{custom-call.41} parent=19 // pred_check_branch
            %94 = sbr.rel target = $region28
          $region27: #{custom-call.41} parent=19 // pred_region
            %s96 = ssub.s32 256, 1
            loop: start=0, step=1, limit=1
            $region29: #{custom-call.41} parent=27 // loop_pre_header
              _
            $region30: #{custom-call.41} parent=27 // loop_header
              %s98 = sphi 0, %s102
              %p99 = scmp.ge.s32.totalorder %s98, 1
              %s103 = sphi %s88, %s88
              %s104 = sphi %s84, %s84
            $region31: #{custom-call.41} parent=27 // loop_header_branch
              %101 = sbr.rel (%p99) target = $region35
            $region32: #{custom-call.41} parent=27 // loop_body
              %v105 = vld [vmem:[%s103] sm:%s96]
              %106 = vst [vmem:[%s104] sm:%s96] %v105
            $region33: #{custom-call.41} parent=27 // loop_footer
              %s102 = sadd.s32 1, %s98
            $region34: #{custom-call.41} parent=27 // loop_footer_branch
              %97 = sbr.rel target = $region30
            $region35: #{custom-call.41} parent=27 // loop_exit
              _
          $region28: #{custom-call.41} parent=19 // pred_fallthru
            _
        $region20: #{custom-call.41} parent=15 // pred_fallthru
          _
        %121 = vnop
      $region16: #{custom-call.41} parent=5 // pred_fallthru
        _
      %p122 = scmp.le.s32.totalorder 1, %s5
      %p123 = scmp.lt.s32.totalorder %s5, 9
      %p124 = pnand %p122, %p123
      %p125 = pneg %p124
      // Predicated region
      $region51: #{custom-call.41} parent=5 // pred_check
        _
      $region52: #{custom-call.41} parent=5 // pred_check_branch
        %127 = sbr.rel (%p124) target = $region54
      $region53: #{custom-call.41} parent=5 // pred_region
        #allocation3 [shape = 'f32[8,128]{1,0}', space=vmem, size = 0x1000, scoped, tag = 'scratch for Householder reflectors']
        %s128 = ssub.s32 %s5, 1
        %s129 = sand.u32 %s10, 1
        %s130 = sand.u32 %s10, 1
        %s131 = smul.addr %s130, 8
        %s132 = scalar_lea.vmem [#allocation0], %s131
        %s133 = sand.u32 %s10, 1
        %s134 = sand.u32 %s10, 1
        %s135 = smul.addr %s134, 8
        %s136 = scalar_lea.vmem [#allocation0], %s135
        %s137 = sand.u32 %s10, 1
        %s138 = sand.u32 %s10, 1
        %s139 = smul.addr %s138, 8
        %s140 = scalar_lea.vmem [#allocation1], %s139
        %p141 = pneg %p62
        %p142 = pneg %p59
        %s143 = sand.u32 %s49, 1
        %s144 = sand.u32 %s49, 1
        %s145 = smul.addr %s144, 8
        %s146 = scalar_lea.vmem [#allocation2], %s145
        %p147 = scmp.lt.s32.totalorder %s15, 0
        %s148 = ssub.s32 0, %s15
        %s149 = scalar_select %p147, %s148, %s15
        %s150 = sshrl.u32 %s149, 3
        %s151 = ssub.s32 0, %s150
        %s152 = scalar_select %p147, %s151, %s150
        %s153 = sand.u32 %s15, 7
        %s154 = scalar_lea.vmem %s146, %s153 [#allocation2]
        %v155 = vld [vmem:[%s132] sm:$0xff]
        %156 = vst [vmem:[%s140] sm:$0xff] %v155
        %157 = vst [vmem:[%s154] sm:$0x1] 0.0
        loop: start=0, step=1, limit=4
        $region55: #{custom-call.41} parent=53 // loop_pre_header
          _
        $region56: #{custom-call.41} parent=53 // loop_header
          %s159 = sphi 0, %s163
          %p160 = scmp.ge.s32.totalorder %s159, 4
        $region57: #{custom-call.41} parent=53 // loop_header_branch
          %162 = sbr.rel (%p160) target = $region61
        $region58: #{custom-call.41} parent=53 // loop_body
          %v164 = vld [vmem:[%s140] sm:$0xff]
          %v165 = vlaneseq
          %v166 = vshrl.u32 %v165, 7
          %v168 = vstv %s159
          %vm169 = vcmp.gt.s32.totalorder %v166, %v168
          %vm170 = vcmp.lt.s32.totalorder %v166, 8
          %vm171 = vmand %vm169, %vm170
          %v172 = vsel %vm171, %v164, 0.0
          %v173 = vmul.f32 %v172, %v172
          %v174 = vrot.slane %v173, 4
          %v175 = vadd.f32 %v173, %v174
          %v176 = vrot.slane %v175, 2
          %v177 = vadd.f32 %v175, %v176
          %v178 = vrot.slane %v177, 1
          %v179 = vadd.f32 %v177, %v178
          %v180 = vrsqrt.pop %v179
          %v181 = vmul.f32 %v180, %v179
          %v182 = vmul.f32 %v181, %v180
          %v183 = vmul.f32 0.5, %v182
          %v184 = vsub.f32 1.5, %v183
          %v185 = vmul.f32 %v180, %v184
          %v186 = vmul.f32 %v179, %v185
          %vm187 = vcmp.eq.f32.partialorder %v179, inf
          %v188 = vsel %vm187, %v179, %v186
          %vm189 = vcmp.eq.f32.partialorder %v179, 0.0
          %v190 = vand.u32 %v179, 2147483648
          %v191 = vsel %vm189, %v190, %v188
          %vm192 = vcmp.eq.f32.partialorder %v179, 0.0
          %s193 = sshrl.u32 %s159, 3
          %s194 = sand.u32 %s159, 7
          %s195 = smul.addr %s193, 8
          %s196 = sadd.s32 %s194, %s195
          %s197 = scalar_lea.vmem %s140, %s196 [#allocation1]
          %v198 = vld [vmem:[%s197] ss:$0 sm:$0xff]
          %v199 = vand.u32 2147483647, %v198
          %v200 = vmax.f32 %v199, 0.0
          %v201 = vand.u32 2147483647, %v191
          %v202 = vmax.f32 %v200, %v201
          %v203 = vrcp.pop %v202
          %v204 = vmul.f32 %v202, %v203
          %v205 = vsub.f32 1.0, %v204
          %v206 = vmul.f32 %v203, %v205
          %v207 = vadd.f32 %v203, %v206
          %vm208 = vweird.f32 %v202
          %vm209 = vweird.f32 %v203
          %vm210 = vmor %vm208, %vm209
          %v211 = vsel %vm210, %v203, %v207
          %v212 = vand.u32 2147483647, %v202
          %vm213 = vcmp.eq.f32.partialorder %v212, 8.507059e+37
          %v214 = vand.u32 %v202, 2147483648
          %v215 = vor.u32 1.1754944e-38, %v214
          %v216 = vsel %vm213, %v215, %v211
          %v217 = vmul.f32 %v199, %v216
          %v218 = vmul.f32 %v217, %v217
          %v219 = vrcp.pop %v202
          %v220 = vmul.f32 %v202, %v219
          %v221 = vsub.f32 1.0, %v220
          %v222 = vmul.f32 %v219, %v221
          %v223 = vadd.f32 %v219, %v222
          %vm224 = vweird.f32 %v202
          %vm225 = vweird.f32 %v219
          %vm226 = vmor %vm224, %vm225
          %v227 = vsel %vm226, %v219, %v223
          %v228 = vand.u32 2147483647, %v202
          %vm229 = vcmp.eq.f32.partialorder %v228, 8.507059e+37
          %v230 = vand.u32 %v202, 2147483648
          %v231 = vor.u32 1.1754944e-38, %v230
          %v232 = vsel %vm229, %v231, %v227
          %v233 = vmul.f32 0.0, %v232
          %v234 = vmul.f32 %v233, %v233
          %v235 = vadd.f32 %v218, %v234
          %v236 = vrcp.pop %v202
          %v237 = vmul.f32 %v202, %v236
          %v238 = vsub.f32 1.0, %v237
          %v239 = vmul.f32 %v236, %v238
          %v240 = vadd.f32 %v236, %v239
          %vm241 = vweird.f32 %v202
          %vm242 = vweird.f32 %v236
          %vm243 = vmor %vm241, %vm242
          %v244 = vsel %vm243, %v236, %v240
          %v245 = vand.u32 2147483647, %v202
          %vm246 = vcmp.eq.f32.partialorder %v245, 8.507059e+37
          %v247 = vand.u32 %v202, 2147483648
          %v248 = vor.u32 1.1754944e-38, %v247
          %v249 = vsel %vm246, %v248, %v244
          %v250 = vmul.f32 %v201, %v249
          %v251 = vmul.f32 %v250, %v250
          %v252 = vadd.f32 %v235, %v251
          %vm253 = vcmp.eq.f32.partialorder %v202, 0.0
          %v254 = vrsqrt.pop %v252
          %v255 = vmul.f32 %v254, %v252
          %v256 = vmul.f32 %v255, %v254
          %v257 = vmul.f32 0.5, %v256
          %v258 = vsub.f32 1.5, %v257
          %v259 = vmul.f32 %v254, %v258
          %v260 = vmul.f32 %v252, %v259
          %vm261 = vcmp.eq.f32.partialorder %v252, inf
          %v262 = vsel %vm261, %v252, %v260
          %vm263 = vcmp.eq.f32.partialorder %v252, 0.0
          %v264 = vand.u32 %v252, 2147483648
          %v265 = vsel %vm263, %v264, %v262
          %v266 = vmul.f32 %v202, %v265
          %v267 = vsel %vm253, 0.0, %v266
          %vm268 = vcmp.lt.f32.partialorder %v198, 0.0
          %v269 = vxor.u32 %v267, 2147483648
          %v270 = vsel %vm268, %v267, %v269
          %v271 = vsub.f32 %v270, %v198
          %v272 = vrcp.pop %v270
          %v273 = vmul.f32 %v270, %v272
          %v274 = vsub.f32 1.0, %v273
          %v275 = vmul.f32 %v272, %v274
          %v276 = vadd.f32 %v272, %v275
          %vm277 = vweird.f32 %v270
          %vm278 = vweird.f32 %v272
          %vm279 = vmor %vm277, %vm278
          %v280 = vsel %vm279, %v272, %v276
          %v281 = vand.u32 2147483647, %v270
          %vm282 = vcmp.eq.f32.partialorder %v281, 8.507059e+37
          %v283 = vand.u32 %v270, 2147483648
          %v284 = vor.u32 1.1754944e-38, %v283
          %v285 = vsel %vm282, %v284, %v280
          %v286 = vmul.f32 %v271, %v285
          %v287 = vsel %vm192, %v198, %v270
          %v288 = vsel %vm192, 0.0, %v286
          %v289 = vsub.f32 %v198, %v287
          %s290 = smov %s140
          %v291 = vlaneseq
          %v292 = vshrl.u32 %v291, 7
          %v293 = vmov %v292
          %v294 = vld [vmem:[%s290] sm:$0xff]
          %v296 = vstv %s159
          %vm297 = vcmp.gt.s32.totalorder %v293, %v296
          %vm298 = vcmp.lt.s32.totalorder %v293, 8
          %vm299 = vmand %vm297, %vm298
          %v300 = vsel %vm299, %v294, 0.0
          %v301 = vrcp.pop %v289
          %v302 = vmul.f32 %v289, %v301
          %v303 = vsub.f32 1.0, %v302
          %v304 = vmul.f32 %v301, %v303
          %v305 = vadd.f32 %v301, %v304
          %vm306 = vweird.f32 %v289
          %vm307 = vweird.f32 %v301
          %vm308 = vmor %vm306, %vm307
          %v309 = vsel %vm308, %v301, %v305
          %v310 = vand.u32 2147483647, %v289
          %vm311 = vcmp.eq.f32.partialorder %v310, 8.507059e+37
          %v312 = vand.u32 %v289, 2147483648
          %v313 = vor.u32 1.1754944e-38, %v312
          %v314 = vsel %vm311, %v313, %v309
          %v315 = vmul.f32 %v300, %v314
          %v316 = vsel %vm192, 0.0, %v315
          %v317 = vstv %s159
          %v318 = vlaneseq
          %v319 = vand.u32 %v318, 127
          %vm320 = vcmp.eq.s32.totalorder %v319, %v317
          %v321 = vsel %vm320, %v316, 0.0
          %322 = vadd.xlane.f32.xlu0 %v321
          %v323 = vpop.xlane.xlu0 %322
          %324 = vst [vmem:[#allocation3] sm:$0xff] %v323
          %s325 = scalar_lea.vmem [#allocation3], %s159
          %326 = vst [vmem:[%s325] sm:$0x1] 1.0
          %v327 = vstv %s159
          %v328 = vlaneseq
          %v329 = vand.u32 %v328, 127
          %vm330 = vcmp.eq.s32.totalorder %v329, %v327
          %v331 = vsel %vm330, %v288, 0.0
          %332 = vadd.xlane.f32.xlu0 %v331
          %v333 = vpop.xlane.xlu0 %332
          %v334 = vstv %s159
          %v335 = vlaneseq
          %v336 = vand.u32 %v335, 127
          %vm337 = vcmp.eq.s32.totalorder %v336, %v334
          %v338 = vld [vmem:[%s154] ss:$0 sm:$0xff]
          %v339 = vsel %vm337, %v333, %v338
          %340 = vst [vmem:[%s154] sm:$0x1] %v339
          %s341 = smov %s140
          %s342 = smov [#allocation3]
          %v343 = vlaneseq
          %v344 = vshrl.u32 %v343, 7
          %v345 = vmov %v344
          %v347 = vld [vmem:[%s342] sm:$0xff]
          %v348 = vld [vmem:[%s341] sm:$0xff]
          %v349 = vmul.f32 %v347, %v348
          %vm350 = vcmp.lt.s32.totalorder %v345, 8
          %v351 = vsel %vm350, %v349, 0.0
          %v352 = vrot.slane %v351, 4
          %v353 = vadd.f32 %v351, %v352
          %v354 = vrot.slane %v353, 2
          %v355 = vadd.f32 %v353, %v354
          %v356 = vrot.slane %v355, 1
          %v357 = vadd.f32 %v355, %v356
          %s358 = smov %s341
          %s359 = smov %s342
          %v360 = vlaneseq
          %v361 = vshrl.u32 %v360, 7
          %v362 = vmov %v361
          %v363 = vmul.f32 %v357, %v333
          %v365 = vlaneseq
          %v366 = vand.u32 %v365, 127
          %v367 = vld [vmem:[%s359] sm:$0xff]
          %v368 = vmul.f32 %v367, %v363
          %v369 = vld [vmem:[%s358] sm:$0xff]
          %v370 = vstv %s159
          %vm371 = vcmp.gt.s32.totalorder %v366, %v370
          %v372 = vsub.f32 %v369, %v368
          %v373 = vsel %vm371, %v372, %v369
          %v374 = vstv %s159
          %v375 = vlaneseq
          %v376 = vand.u32 %v375, 127
          %vm377 = vcmp.eq.s32.totalorder %v376, %v374
          %v378 = vstv %s159
          %vm379 = vcmp.ge.s32.totalorder %v362, %v378
          %vm380 = vmand %vm377, %vm379
          %v381 = vsel %vm380, %v367, %v373
          %382 = vst [vmem:[%s358] sm:$0xff] %v381
          %s383 = scalar_lea.vmem %s358, %s159
          %v384 = vld [vmem:[%s383] ss:$0 sm:$0xff]
          %v385 = vstv %s159
          %v386 = vlaneseq
          %v387 = vand.u32 %v386, 127
          %vm388 = vcmp.eq.s32.totalorder %v387, %v385
          %v389 = vsel %vm388, %v287, %v384
          %390 = vst [vmem:[%s383] sm:$0x1] %v389
        $region59: #{custom-call.41} parent=53 // loop_footer
          %s163 = sadd.s32 1, %s159
        $region60: #{custom-call.41} parent=53 // loop_footer_branch
          %158 = sbr.rel target = $region56
        $region61: #{custom-call.41} parent=53 // loop_exit
          _
        %s391 = sand.u32 %s10, 1
        %s392 = sand.u32 %s10, 1
        %s393 = smul.addr %s392, 8
        %s394 = scalar_lea.vmem [#allocation1], %s393
        %s395 = sand.u32 %s49, 1
        %s396 = sand.u32 %s49, 1
        %s397 = smul.addr %s396, 8
        %s398 = scalar_lea.vmem [#allocation2], %s397
        %s399 = sadd.s32 %s17, %s16
        %s400 = sadd.s32 %s399, %s15
        %s401 = smul.addr %s400, 8
        %s402 = scalar_lea.vmem %s1, %s401
        // Predicated region
        $region62: #{custom-call.41} parent=53 // pred_check
          _
        $region63: #{custom-call.41} parent=53 // pred_check_branch
          %404 = sbr.rel (0) target = $region65
        $region64: #{custom-call.41} parent=53 // pred_region
          // Predicated region
          $region66: #{custom-call.41} parent=64 // pred_check
            _
          $region67: #{custom-call.41} parent=64 // pred_check_branch
            %406 = sbr.rel (0) target = $region69
          $region68: #{custom-call.41} parent=64 // pred_region
            // Predicated region
            $region81: #{custom-call.41} parent=68 // pred_check
              _
            $region82: #{custom-call.41} parent=68 // pred_check_branch
              %422 = sbr.rel (0) target = $region84
            $region83: #{custom-call.41} parent=68 // pred_region
              loop: start=0, step=1, limit=1
              $region85: #{custom-call.41} parent=83 // loop_pre_header
                _
              $region86: #{custom-call.41} parent=83 // loop_header
                %s424 = sphi 0, %s428
                %p425 = scmp.ge.s32.totalorder %s424, 1
                %s429 = sphi %s394, %s394
                %s430 = sphi %s402, %s402
              $region87: #{custom-call.41} parent=83 // loop_header_branch
                %427 = sbr.rel (%p425) target = $region91
              $region88: #{custom-call.41} parent=83 // loop_body
                %v431 = vld [vmem:[%s429] sm:$0xff]
                %432 = vst [vmem:[%s430] sm:$0xff] %v431
              $region89: #{custom-call.41} parent=83 // loop_footer
                %s428 = sadd.s32 1, %s424
              $region90: #{custom-call.41} parent=83 // loop_footer_branch
                %423 = sbr.rel target = $region86
              $region91: #{custom-call.41} parent=83 // loop_exit
                _
            $region84: #{custom-call.41} parent=68 // pred_fallthru
              _
            // Predicated region
            $region92: #{custom-call.41} parent=68 // pred_check
              _
            $region93: #{custom-call.41} parent=68 // pred_check_branch
              %434 = sbr.rel target = $region95
            $region94: #{custom-call.41} parent=68 // pred_region
              _
            $region95: #{custom-call.41} parent=68 // pred_fallthru
              _
          $region69: #{custom-call.41} parent=64 // pred_fallthru
            _
          // Predicated region
          $region70: #{custom-call.41} parent=64 // pred_check
            _
          $region71: #{custom-call.41} parent=64 // pred_check_branch
            %408 = sbr.rel target = $region73
          $region72: #{custom-call.41} parent=64 // pred_region
            %s410 = ssub.s32 256, 1
            loop: start=0, step=1, limit=1
            $region74: #{custom-call.41} parent=72 // loop_pre_header
              _
            $region75: #{custom-call.41} parent=72 // loop_header
              %s412 = sphi 0, %s416
              %p413 = scmp.ge.s32.totalorder %s412, 1
              %s417 = sphi %s394, %s394
              %s418 = sphi %s402, %s402
            $region76: #{custom-call.41} parent=72 // loop_header_branch
              %415 = sbr.rel (%p413) target = $region80
            $region77: #{custom-call.41} parent=72 // loop_body
              %v419 = vld [vmem:[%s417] sm:%s410]
              %420 = vst [vmem:[%s418] sm:%s410] %v419
            $region78: #{custom-call.41} parent=72 // loop_footer
              %s416 = sadd.s32 1, %s412
            $region79: #{custom-call.41} parent=72 // loop_footer_branch
              %411 = sbr.rel target = $region75
            $region80: #{custom-call.41} parent=72 // loop_exit
              _
          $region73: #{custom-call.41} parent=64 // pred_fallthru
            _
        $region65: #{custom-call.41} parent=53 // pred_fallthru
          _
        %435 = vnop
        // Predicated region
        $region96: #{custom-call.41} parent=53 // pred_check
          %p436 = pneg %p59
        $region97: #{custom-call.41} parent=53 // pred_check_branch
          %438 = sbr.rel (%p436) target = $region99
        $region98: #{custom-call.41} parent=53 // pred_region
          %p439 = scmp.lt.s32.totalorder %s15, 0
          %s440 = ssub.s32 0, %s15
          %s441 = scalar_select %p439, %s440, %s15
          %s442 = sshrl.u32 %s441, 3
          %s443 = ssub.s32 0, %s442
          %s444 = scalar_select %p439, %s443, %s442
          %s445 = smul.addr %s444, 8
          %s446 = scalar_lea.vmem %s2, %s445
          // Predicated region
          $region100: #{custom-call.41} parent=98 // pred_check
            _
          $region101: #{custom-call.41} parent=98 // pred_check_branch
            %448 = sbr.rel (0) target = $region103
          $region102: #{custom-call.41} parent=98 // pred_region
            // Predicated region
            $region104: #{custom-call.41} parent=102 // pred_check
              _
            $region105: #{custom-call.41} parent=102 // pred_check_branch
              %450 = sbr.rel (0) target = $region107
            $region106: #{custom-call.41} parent=102 // pred_region
              // Predicated region
              $region119: #{custom-call.41} parent=106 // pred_check
                _
              $region120: #{custom-call.41} parent=106 // pred_check_branch
                %466 = sbr.rel (0) target = $region122
              $region121: #{custom-call.41} parent=106 // pred_region
                loop: start=0, step=1, limit=1
                $region123: #{custom-call.41} parent=121 // loop_pre_header
                  _
                $region124: #{custom-call.41} parent=121 // loop_header
                  %s468 = sphi 0, %s472
                  %p469 = scmp.ge.s32.totalorder %s468, 1
                  %s473 = sphi %s398, %s398
                  %s474 = sphi %s446, %s446
                $region125: #{custom-call.41} parent=121 // loop_header_branch
                  %471 = sbr.rel (%p469) target = $region129
                $region126: #{custom-call.41} parent=121 // loop_body
                  %v475 = vld [vmem:[%s473] sm:$0xff]
                  %476 = vst [vmem:[%s474] sm:$0xff] %v475
                $region127: #{custom-call.41} parent=121 // loop_footer
                  %s472 = sadd.s32 1, %s468
                $region128: #{custom-call.41} parent=121 // loop_footer_branch
                  %467 = sbr.rel target = $region124
                $region129: #{custom-call.41} parent=121 // loop_exit
                  _
              $region122: #{custom-call.41} parent=106 // pred_fallthru
                _
              // Predicated region
              $region130: #{custom-call.41} parent=106 // pred_check
                _
              $region131: #{custom-call.41} parent=106 // pred_check_branch
                %478 = sbr.rel target = $region133
              $region132: #{custom-call.41} parent=106 // pred_region
                _
              $region133: #{custom-call.41} parent=106 // pred_fallthru
                _
            $region107: #{custom-call.41} parent=102 // pred_fallthru
              _
            // Predicated region
            $region108: #{custom-call.41} parent=102 // pred_check
              _
            $region109: #{custom-call.41} parent=102 // pred_check_branch
              %452 = sbr.rel target = $region111
            $region110: #{custom-call.41} parent=102 // pred_region
              %s454 = ssub.s32 256, 1
              loop: start=0, step=1, limit=1
              $region112: #{custom-call.41} parent=110 // loop_pre_header
                _
              $region113: #{custom-call.41} parent=110 // loop_header
                %s456 = sphi 0, %s460
                %p457 = scmp.ge.s32.totalorder %s456, 1
                %s461 = sphi %s398, %s398
                %s462 = sphi %s446, %s446
              $region114: #{custom-call.41} parent=110 // loop_header_branch
                %459 = sbr.rel (%p457) target = $region118
              $region115: #{custom-call.41} parent=110 // loop_body
                %v463 = vld [vmem:[%s461] sm:%s454]
                %464 = vst [vmem:[%s462] sm:%s454] %v463
              $region116: #{custom-call.41} parent=110 // loop_footer
                %s460 = sadd.s32 1, %s456
              $region117: #{custom-call.41} parent=110 // loop_footer_branch
                %455 = sbr.rel target = $region113
              $region118: #{custom-call.41} parent=110 // loop_exit
                _
            $region111: #{custom-call.41} parent=102 // pred_fallthru
              _
          $region103: #{custom-call.41} parent=98 // pred_fallthru
            _
          %479 = vnop
        $region99: #{custom-call.41} parent=53 // pred_fallthru
          _
      $region54: #{custom-call.41} parent=5 // pred_fallthru
        _
      %p480 = scmp.le.s32.totalorder 2, %s5
      // Predicated region
      $region134: #{custom-call.41} parent=5 // pred_check
        %p481 = pneg %p480
      $region135: #{custom-call.41} parent=5 // pred_check_branch
        %483 = sbr.rel (%p481) target = $region137
      $region136: #{custom-call.41} parent=5 // pred_region
        %s484 = ssub.s32 %s5, 2
        %s485 = sand.u32 %s11, 1
        %s486 = sand.u32 %s11, 1
        %s487 = smul.addr %s486, 8
        %s488 = scalar_lea.vmem [#allocation1], %s487
        // Predicated region
        $region138: #{custom-call.41} parent=136 // pred_check
          %p489 = pneg %p65
        $region139: #{custom-call.41} parent=136 // pred_check_branch
          %491 = sbr.rel (%p489) target = $region141
        $region140: #{custom-call.41} parent=136 // pred_region
          %s492 = sand.u32 %s50, 1
          %s493 = sand.u32 %s50, 1
          %s494 = smul.addr %s493, 8
          %s495 = scalar_lea.vmem [#allocation2], %s494
        $region141: #{custom-call.41} parent=136 // pred_fallthru
          _
      $region137: #{custom-call.41} parent=5 // pred_fallthru
        _
    $region6: #{custom-call.41} parent=1 // loop_footer
      %s9 = sadd.s32 1, %s5
    $region7: #{custom-call.41} parent=1 // loop_footer_branch
      %4 = sbr.rel target = $region3
    $region8: #{custom-call.41} parent=1 // loop_exit
      _

// kernel: custom-call.42
$region0: #{custom-call.42}
  %s0 = inlined_call_operand.vmem [shape: f32[8,4,4], index: 0, kind: input, shape index: {}]
  %s1 = inlined_call_operand.vmem [shape: f32[8,4,4], index: 1, kind: output, shape index: {}]
  $region1: #{custom-call.42} parent=0
    #allocation0 [shape = 'u8[4096]{0}', space=vmem, size = 0x1000, scoped, tag = 'operand span for operand 0']
    #allocation1 [shape = 'u8[4096]{0}', space=vmem, size = 0x1000, scoped, tag = 'packed  for operand 0']
    #allocation2 [shape = 'u8[4096]{0}', space=vmem, size = 0x1000, scoped, tag = 'operand span for operand 1']
    #allocation3 [shape = 'u8[4096]{0}', space=vmem, size = 0x1000, scoped, tag = 'packed  for operand 1']
    loop: start=0, step=1, limit=10
    $region2: #{custom-call.42} parent=1 // loop_pre_header
      _
    $region3: #{custom-call.42} parent=1 // loop_header
      %s3 = sphi 0, %s7
      %p4 = scmp.ge.s32.totalorder %s3, 10
    $region4: #{custom-call.42} parent=1 // loop_header_branch
      %6 = sbr.rel (%p4) target = $region8
    $region5: #{custom-call.42} parent=1 // loop_body
      %s8 = ssub.s32 %s3, 1
      %s9 = ssub.s32 %s3, 2
      %s10 = sadd.s32 %s3, 1
      %p11 = scmp.le.s32.totalorder 1, %s3
      %p12 = scmp.lt.s32.totalorder %s3, 9
      %p13 = pnand %p11, %p12
      %p14 = pneg %p13
      // Predicated region
      $region9: #{custom-call.42} parent=5 // pred_check
        _
      $region10: #{custom-call.42} parent=5 // pred_check_branch
        %16 = sbr.rel (%p13) target = $region12
      $region11: #{custom-call.42} parent=5 // pred_region
        %s17 = ssub.s32 %s3, 1
      $region12: #{custom-call.42} parent=5 // pred_fallthru
        _
      %p18 = scmp.lt.s32.totalorder %s3, 8
      // Predicated region
      $region13: #{custom-call.42} parent=5 // pred_check
        %p19 = pneg %p18
      $region14: #{custom-call.42} parent=5 // pred_check_branch
        %21 = sbr.rel (%p19) target = $region16
      $region15: #{custom-call.42} parent=5 // pred_region
        %s22 = sand.u32 %s3, 1
        %s23 = sand.u32 %s3, 1
        %s24 = smul.addr %s23, 4
        %s25 = scalar_lea.vmem [#allocation1], %s24
        %s26 = smul.addr %s3, 4
        %s27 = scalar_lea.vmem %s0, %s26
        // Predicated region
        $region17: #{custom-call.42} parent=15 // pred_check
          _
        $region18: #{custom-call.42} parent=15 // pred_check_branch
          %29 = sbr.rel (0) target = $region20
        $region19: #{custom-call.42} parent=15 // pred_region
          // Predicated region
          $region21: #{custom-call.42} parent=19 // pred_check
            _
          $region22: #{custom-call.42} parent=19 // pred_check_branch
            %31 = sbr.rel target = $region24
          $region23: #{custom-call.42} parent=19 // pred_region
            // Predicated region
            $region36: #{custom-call.42} parent=23 // pred_check
              _
            $region37: #{custom-call.42} parent=23 // pred_check_branch
              %47 = sbr.rel (0) target = $region39
            $region38: #{custom-call.42} parent=23 // pred_region
              %s49 = ssub.s32 16, 1
              loop: start=0, step=1, limit=1
              $region40: #{custom-call.42} parent=38 // loop_pre_header
                _
              $region41: #{custom-call.42} parent=38 // loop_header
                %s51 = sphi 0, %s55
                %p52 = scmp.ge.s32.totalorder %s51, 1
                %s56 = sphi %s27, %s27
                %s57 = sphi %s25, %s25
              $region42: #{custom-call.42} parent=38 // loop_header_branch
                %54 = sbr.rel (%p52) target = $region46
              $region43: #{custom-call.42} parent=38 // loop_body
                %v58 = vld [vmem:[%s56] sm:%s49]
                %59 = vst [vmem:[%s57] sm:%s49] %v58
              $region44: #{custom-call.42} parent=38 // loop_footer
                %s55 = sadd.s32 1, %s51
              $region45: #{custom-call.42} parent=38 // loop_footer_branch
                %50 = sbr.rel target = $region41
              $region46: #{custom-call.42} parent=38 // loop_exit
                _
            $region39: #{custom-call.42} parent=23 // pred_fallthru
              _
          $region24: #{custom-call.42} parent=19 // pred_fallthru
            _
          // Predicated region
          $region25: #{custom-call.42} parent=19 // pred_check
            _
          $region26: #{custom-call.42} parent=19 // pred_check_branch
            %33 = sbr.rel (0) target = $region28
          $region27: #{custom-call.42} parent=19 // pred_region
            %s35 = ssub.s32 16, 1
            loop: start=0, step=1, limit=1
            $region29: #{custom-call.42} parent=27 // loop_pre_header
              _
            $region30: #{custom-call.42} parent=27 // loop_header
              %s37 = sphi 0, %s41
              %p38 = scmp.ge.s32.totalorder %s37, 1
              %s42 = sphi %s27, %s27
              %s43 = sphi %s25, %s25
            $region31: #{custom-call.42} parent=27 // loop_header_branch
              %40 = sbr.rel (%p38) target = $region35
            $region32: #{custom-call.42} parent=27 // loop_body
              %v44 = vld [vmem:[%s42] sm:%s35]
              %45 = vst [vmem:[%s43] sm:%s35] %v44
            $region33: #{custom-call.42} parent=27 // loop_footer
              %s41 = sadd.s32 1, %s37
            $region34: #{custom-call.42} parent=27 // loop_footer_branch
              %36 = sbr.rel target = $region30
            $region35: #{custom-call.42} parent=27 // loop_exit
              _
          $region28: #{custom-call.42} parent=19 // pred_fallthru
            _
        $region20: #{custom-call.42} parent=15 // pred_fallthru
          _
        %60 = vnop
      $region16: #{custom-call.42} parent=5 // pred_fallthru
        _
      %p61 = scmp.le.s32.totalorder 1, %s3
      %p62 = scmp.lt.s32.totalorder %s3, 9
      %p63 = pnand %p61, %p62
      %p64 = pneg %p63
      // Predicated region
      $region47: #{custom-call.42} parent=5 // pred_check
        _
      $region48: #{custom-call.42} parent=5 // pred_check_branch
        %66 = sbr.rel (%p63) target = $region50
      $region49: #{custom-call.42} parent=5 // pred_region
        %s67 = ssub.s32 %s3, 1
        %s68 = sand.u32 %s8, 1
        %s69 = sand.u32 %s8, 1
        %s70 = smul.addr %s69, 4
        %s71 = scalar_lea.vmem [#allocation1], %s70
        %s72 = sand.u32 %s8, 1
        %s73 = sand.u32 %s8, 1
        %s74 = smul.addr %s73, 4
        %s75 = scalar_lea.vmem [#allocation1], %s74
        %s76 = sand.u32 %s8, 1
        %s77 = sand.u32 %s8, 1
        %s78 = smul.addr %s77, 4
        %s79 = scalar_lea.vmem [#allocation3], %s78
        %s81 = ssub.s32 16, 1
        %v82 = vld [vmem:[%s75] sm:%s81]
        %83 = vst [vmem:[#allocation0] sm:%s81] %v82
        %v84 = vlaneseq
        %v85 = vand.u32 %v84, 127
        %v86 = vlaneseq
        %v87 = vshrl.u32 %v86, 7
        %vm89 = vcmp.eq.s32.totalorder %v85, %v87
        %v90 = vld [vmem:[#allocation0] sm:$0xff]
        %v91 = vlaneseq
        %v92 = vand.u32 %v91, 127
        %vm93 = vcmp.eq.s32.totalorder %v92, 0
        %v94 = vsel %vm93, %v90, 1.0
        %v95 = vsel %vm89, %v94, 0.0
        %s96 = scalar_lea.vmem [#allocation0], 1
        %v97 = vld [vmem:[%s96] ss:$0 sm:$0xff]
        %vm98 = vcmask 31744
        %v99 = vsel %vm98, %v97, 0.0
        %v100 = vlaneseq
        %v101 = vand.u32 %v100, 127
        %vm102 = vcmp.eq.s32.totalorder %v101, 1
        %v103 = vmul.f32 %v99, %v95
        %104 = vadd.xlane.f32.xlu0 %v103
        %v105 = vpop.xlane.xlu0 %104
        %v106 = vsel %vm102, %v105, %v95
        %s107 = scalar_lea.vmem [#allocation0], 2
        %v108 = vld [vmem:[%s107] ss:$0 sm:$0xff]
        %vm109 = vcmask 31744
        %v110 = vsel %vm109, %v108, 0.0
        %v111 = vlaneseq
        %v112 = vand.u32 %v111, 127
        %vm113 = vcmp.eq.s32.totalorder %v112, 2
        %v114 = vmul.f32 %v110, %v106
        %115 = vadd.xlane.f32.xlu0 %v114
        %v116 = vpop.xlane.xlu0 %115
        %v117 = vsel %vm113, %v116, %v106
        %s118 = scalar_lea.vmem [#allocation0], 3
        %v119 = vld [vmem:[%s118] ss:$0 sm:$0xff]
        %vm120 = vcmask 31744
        %v121 = vsel %vm120, %v119, 0.0
        %v122 = vlaneseq
        %v123 = vand.u32 %v122, 127
        %vm124 = vcmp.eq.s32.totalorder %v123, 3
        %v125 = vmul.f32 %v121, %v117
        %126 = vadd.xlane.f32.xlu0 %v125
        %v127 = vpop.xlane.xlu0 %126
        %v128 = vsel %vm124, %v127, %v117
        %129 = vst [vmem:[#allocation2] sm:$0xff] %v128
        %s131 = ssub.s32 16, 1
        %v132 = vld [vmem:[#allocation2] sm:%s131]
        %s134 = ssub.s32 16, 1
        %135 = vst [vmem:[%s79] sm:%s134] %v132
        %s136 = sand.u32 %s8, 1
        %s137 = sand.u32 %s8, 1
        %s138 = smul.addr %s137, 4
        %s139 = scalar_lea.vmem [#allocation3], %s138
        %s140 = smul.addr %s8, 4
        %s141 = scalar_lea.vmem %s1, %s140
        // Predicated region
        $region51: #{custom-call.42} parent=49 // pred_check
          _
        $region52: #{custom-call.42} parent=49 // pred_check_branch
          %143 = sbr.rel (0) target = $region54
        $region53: #{custom-call.42} parent=49 // pred_region
          // Predicated region
          $region55: #{custom-call.42} parent=53 // pred_check
            _
          $region56: #{custom-call.42} parent=53 // pred_check_branch
            %145 = sbr.rel target = $region58
          $region57: #{custom-call.42} parent=53 // pred_region
            // Predicated region
            $region70: #{custom-call.42} parent=57 // pred_check
              _
            $region71: #{custom-call.42} parent=57 // pred_check_branch
              %161 = sbr.rel (0) target = $region73
            $region72: #{custom-call.42} parent=57 // pred_region
              %s163 = ssub.s32 16, 1
              loop: start=0, step=1, limit=1
              $region74: #{custom-call.42} parent=72 // loop_pre_header
                _
              $region75: #{custom-call.42} parent=72 // loop_header
                %s165 = sphi 0, %s169
                %p166 = scmp.ge.s32.totalorder %s165, 1
                %s170 = sphi %s139, %s139
                %s171 = sphi %s141, %s141
              $region76: #{custom-call.42} parent=72 // loop_header_branch
                %168 = sbr.rel (%p166) target = $region80
              $region77: #{custom-call.42} parent=72 // loop_body
                %v172 = vld [vmem:[%s170] sm:%s163]
                %173 = vst [vmem:[%s171] sm:%s163] %v172
              $region78: #{custom-call.42} parent=72 // loop_footer
                %s169 = sadd.s32 1, %s165
              $region79: #{custom-call.42} parent=72 // loop_footer_branch
                %164 = sbr.rel target = $region75
              $region80: #{custom-call.42} parent=72 // loop_exit
                _
            $region73: #{custom-call.42} parent=57 // pred_fallthru
              _
          $region58: #{custom-call.42} parent=53 // pred_fallthru
            _
          // Predicated region
          $region59: #{custom-call.42} parent=53 // pred_check
            _
          $region60: #{custom-call.42} parent=53 // pred_check_branch
            %147 = sbr.rel (0) target = $region62
          $region61: #{custom-call.42} parent=53 // pred_region
            %s149 = ssub.s32 16, 1
            loop: start=0, step=1, limit=1
            $region63: #{custom-call.42} parent=61 // loop_pre_header
              _
            $region64: #{custom-call.42} parent=61 // loop_header
              %s151 = sphi 0, %s155
              %p152 = scmp.ge.s32.totalorder %s151, 1
              %s156 = sphi %s139, %s139
              %s157 = sphi %s141, %s141
            $region65: #{custom-call.42} parent=61 // loop_header_branch
              %154 = sbr.rel (%p152) target = $region69
            $region66: #{custom-call.42} parent=61 // loop_body
              %v158 = vld [vmem:[%s156] sm:%s149]
              %159 = vst [vmem:[%s157] sm:%s149] %v158
            $region67: #{custom-call.42} parent=61 // loop_footer
              %s155 = sadd.s32 1, %s151
            $region68: #{custom-call.42} parent=61 // loop_footer_branch
              %150 = sbr.rel target = $region64
            $region69: #{custom-call.42} parent=61 // loop_exit
              _
          $region62: #{custom-call.42} parent=53 // pred_fallthru
            _
        $region54: #{custom-call.42} parent=49 // pred_fallthru
          _
        %174 = vnop
      $region50: #{custom-call.42} parent=5 // pred_fallthru
        _
      %p175 = scmp.le.s32.totalorder 2, %s3
      // Predicated region
      $region81: #{custom-call.42} parent=5 // pred_check
        %p176 = pneg %p175
      $region82: #{custom-call.42} parent=5 // pred_check_branch
        %178 = sbr.rel (%p176) target = $region84
      $region83: #{custom-call.42} parent=5 // pred_region
        %s179 = ssub.s32 %s3, 2
        %s180 = sand.u32 %s9, 1
        %s181 = sand.u32 %s9, 1
        %s182 = smul.addr %s181, 4
        %s183 = scalar_lea.vmem [#allocation3], %s182
      $region84: #{custom-call.42} parent=5 // pred_fallthru
        _
    $region6: #{custom-call.42} parent=1 // loop_footer
      %s7 = sadd.s32 1, %s3
    $region7: #{custom-call.42} parent=1 // loop_footer_branch
      %2 = sbr.rel target = $region3
    $region8: #{custom-call.42} parent=1 // loop_exit
      _

// kernel: custom-call.34
$region0: #{custom-call.34}
  %s0 = inlined_call_operand.hbm [shape: pred[8], index: 0, kind: output, shape index: {}]

// kernel: custom-call.39
$region0: #{custom-call.39}
  %s0 = inlined_call_operand.vmem [shape: f32[8,4,4], index: 0, kind: input, shape index: {}]
  %s1 = inlined_call_operand.vmem [shape: f32[8,4,4], index: 1, kind: output, shape index: {}]
  $region1: #{custom-call.39} parent=0
    #allocation0 [shape = 'u8[4096]{0}', space=vmem, size = 0x1000, scoped, tag = 'operand span for operand 0']
    #allocation1 [shape = 'u8[4096]{0}', space=vmem, size = 0x1000, scoped, tag = 'packed  for operand 0']
    #allocation2 [shape = 'u8[4096]{0}', space=vmem, size = 0x1000, scoped, tag = 'operand span for operand 1']
    #allocation3 [shape = 'u8[4096]{0}', space=vmem, size = 0x1000, scoped, tag = 'packed  for operand 1']
    loop: start=0, step=1, limit=10
    $region2: #{custom-call.39} parent=1 // loop_pre_header
      _
    $region3: #{custom-call.39} parent=1 // loop_header
      %s3 = sphi 0, %s7
      %p4 = scmp.ge.s32.totalorder %s3, 10
      %s10 = sphi 0, %s29
      %s11 = sphi 0, %s25
      %s12 = sphi 0, %s21
      %s13 = sphi 0, %s10
      %s14 = sphi 0, %s11
      %s15 = sphi 0, %s12
      %s16 = sphi 0, %s13
      %s17 = sphi 0, %s14
      %s18 = sphi 0, %s15
    $region4: #{custom-call.39} parent=1 // loop_header_branch
      %6 = sbr.rel (%p4) target = $region8
    $region5: #{custom-call.39} parent=1 // loop_body
      %s8 = ssub.s32 %s3, 1
      %s9 = ssub.s32 %s3, 2
      %s19 = sadd.s32 1, %s12
      %p20 = scmp.ge.s32.totalorder %s19, 1
      %s21 = scalar_select %p20, 0, %s19
      %s22 = sadd.s32 1, %s11
      %s23 = scalar_select %p20, %s22, %s11
      %p24 = scmp.ge.s32.totalorder %s23, 1
      %s25 = scalar_select %p24, 0, %s23
      %s26 = sadd.s32 1, %s10
      %s27 = scalar_select %p24, %s26, %s10
      %p28 = scmp.ge.s32.totalorder %s27, 8
      %s29 = scalar_select %p28, 0, %s27
      %p30 = scmp.le.s32.totalorder 1, %s3
      %p31 = scmp.lt.s32.totalorder %s3, 9
      %p32 = pnand %p30, %p31
      %p33 = pneg %p32
      // Predicated region
      $region9: #{custom-call.39} parent=5 // pred_check
        _
      $region10: #{custom-call.39} parent=5 // pred_check_branch
        %35 = sbr.rel (%p32) target = $region12
      $region11: #{custom-call.39} parent=5 // pred_region
        %s36 = ssub.s32 %s3, 1
      $region12: #{custom-call.39} parent=5 // pred_fallthru
        _
      %p37 = scmp.lt.s32.totalorder %s3, 8
      // Predicated region
      $region13: #{custom-call.39} parent=5 // pred_check
        %p38 = pneg %p37
      $region14: #{custom-call.39} parent=5 // pred_check_branch
        %40 = sbr.rel (%p38) target = $region16
      $region15: #{custom-call.39} parent=5 // pred_region
        %s41 = sand.u32 %s3, 1
        %s42 = sand.u32 %s3, 1
        %s43 = smul.addr %s42, 4
        %s44 = scalar_lea.vmem [#allocation1], %s43
        %s45 = sadd.s32 %s12, %s11
        %s46 = sadd.s32 %s45, %s10
        %s47 = smul.addr %s46, 4
        %s48 = scalar_lea.vmem %s0, %s47
        // Predicated region
        $region17: #{custom-call.39} parent=15 // pred_check
          _
        $region18: #{custom-call.39} parent=15 // pred_check_branch
          %50 = sbr.rel (0) target = $region20
        $region19: #{custom-call.39} parent=15 // pred_region
          // Predicated region
          $region21: #{custom-call.39} parent=19 // pred_check
            _
          $region22: #{custom-call.39} parent=19 // pred_check_branch
            %52 = sbr.rel target = $region24
          $region23: #{custom-call.39} parent=19 // pred_region
            // Predicated region
            $region36: #{custom-call.39} parent=23 // pred_check
              _
            $region37: #{custom-call.39} parent=23 // pred_check_branch
              %68 = sbr.rel (0) target = $region39
            $region38: #{custom-call.39} parent=23 // pred_region
              %s70 = ssub.s32 16, 1
              loop: start=0, step=1, limit=1
              $region40: #{custom-call.39} parent=38 // loop_pre_header
                _
              $region41: #{custom-call.39} parent=38 // loop_header
                %s72 = sphi 0, %s76
                %p73 = scmp.ge.s32.totalorder %s72, 1
                %s77 = sphi %s48, %s48
                %s78 = sphi %s44, %s44
              $region42: #{custom-call.39} parent=38 // loop_header_branch
                %75 = sbr.rel (%p73) target = $region46
              $region43: #{custom-call.39} parent=38 // loop_body
                %v79 = vld [vmem:[%s77] sm:%s70]
                %80 = vst [vmem:[%s78] sm:%s70] %v79
              $region44: #{custom-call.39} parent=38 // loop_footer
                %s76 = sadd.s32 1, %s72
              $region45: #{custom-call.39} parent=38 // loop_footer_branch
                %71 = sbr.rel target = $region41
              $region46: #{custom-call.39} parent=38 // loop_exit
                _
            $region39: #{custom-call.39} parent=23 // pred_fallthru
              _
          $region24: #{custom-call.39} parent=19 // pred_fallthru
            _
          // Predicated region
          $region25: #{custom-call.39} parent=19 // pred_check
            _
          $region26: #{custom-call.39} parent=19 // pred_check_branch
            %54 = sbr.rel (0) target = $region28
          $region27: #{custom-call.39} parent=19 // pred_region
            %s56 = ssub.s32 16, 1
            loop: start=0, step=1, limit=1
            $region29: #{custom-call.39} parent=27 // loop_pre_header
              _
            $region30: #{custom-call.39} parent=27 // loop_header
              %s58 = sphi 0, %s62
              %p59 = scmp.ge.s32.totalorder %s58, 1
              %s63 = sphi %s48, %s48
              %s64 = sphi %s44, %s44
            $region31: #{custom-call.39} parent=27 // loop_header_branch
              %61 = sbr.rel (%p59) target = $region35
            $region32: #{custom-call.39} parent=27 // loop_body
              %v65 = vld [vmem:[%s63] sm:%s56]
              %66 = vst [vmem:[%s64] sm:%s56] %v65
            $region33: #{custom-call.39} parent=27 // loop_footer
              %s62 = sadd.s32 1, %s58
            $region34: #{custom-call.39} parent=27 // loop_footer_branch
              %57 = sbr.rel target = $region30
            $region35: #{custom-call.39} parent=27 // loop_exit
              _
          $region28: #{custom-call.39} parent=19 // pred_fallthru
            _
        $region20: #{custom-call.39} parent=15 // pred_fallthru
          _
        %81 = vnop
      $region16: #{custom-call.39} parent=5 // pred_fallthru
        _
      %p82 = scmp.le.s32.totalorder 1, %s3
      %p83 = scmp.lt.s32.totalorder %s3, 9
      %p84 = pnand %p82, %p83
      %p85 = pneg %p84
      // Predicated region
      $region47: #{custom-call.39} parent=5 // pred_check
        _
      $region48: #{custom-call.39} parent=5 // pred_check_branch
        %87 = sbr.rel (%p84) target = $region50
      $region49: #{custom-call.39} parent=5 // pred_region
        %s88 = ssub.s32 %s3, 1
        %s89 = sand.u32 %s8, 1
        %s90 = sand.u32 %s8, 1
        %s91 = smul.addr %s90, 4
        %s92 = scalar_lea.vmem [#allocation1], %s91
        %s93 = sand.u32 %s8, 1
        %s94 = sand.u32 %s8, 1
        %s95 = smul.addr %s94, 4
        %s96 = scalar_lea.vmem [#allocation1], %s95
        %s97 = sand.u32 %s8, 1
        %s98 = sand.u32 %s8, 1
        %s99 = smul.addr %s98, 4
        %s100 = scalar_lea.vmem [#allocation3], %s99
        %s102 = ssub.s32 16, 1
        %v103 = vld [vmem:[%s96] sm:%s102]
        %104 = vst [vmem:[#allocation0] sm:%s102] %v103
        %105 = vst [vmem:[#allocation2] sm:$0xff] 0.0
        %vm106 = vcmask 7168
        %v107 = vld [vmem:[#allocation2] ss:$0 sm:$0xff]
        %v108 = vld [vmem:[#allocation0] ss:$0 sm:$0xff]
        %v109 = vmul.f32 %v107, %v107
        %110 = vadd.xlane.f32.xlu0 %v109
        %v111 = vpop.xlane.xlu0 %110
        %v112 = vsub.f32 %v108, %v111
        %v113 = vrsqrt.pop %v112
        %v114 = vmul.f32 %v113, %v112
        %v115 = vmul.f32 %v114, %v113
        %v116 = vmul.f32 0.5, %v115
        %v117 = vsub.f32 1.5, %v116
        %v118 = vmul.f32 %v113, %v117
        %vm119 = vweird.f32 %v112
        %vm120 = vweird.f32 %v113
        %vm121 = vmor %vm119, %vm120
        %v122 = vsel %vm121, %v113, %v118
        %v123 = vld [vmem:[#allocation0] sm:$0xff]
        %v124 = vld [vmem:[#allocation2] sm:$0xff]
        %v125 = vmul.f32 %v124, %v107
        %126 = vadd.xlane.f32.xlu0 %v125
        %v127 = vpop.xlane.xlu0 %126
        %v128 = vsub.f32 %v123, %v127
        %v129 = vmul.f32 %v128, %v122
        %v130 = vsel %vm106, %v129, 0.0
        %v131 = vadd.f32 %v124, %v130
        %132 = vst [vmem:[#allocation2] sm:$0xff] %v131
        %vm133 = vcmask 15368
        %s134 = scalar_lea.vmem [#allocation2], 1
        %v135 = vld [vmem:[%s134] ss:$0 sm:$0xff]
        %s136 = scalar_lea.vmem [#allocation0], 1
        %v137 = vld [vmem:[%s136] ss:$0 sm:$0xff]
        %v138 = vmul.f32 %v135, %v135
        %139 = vadd.xlane.f32.xlu0 %v138
        %v140 = vpop.xlane.xlu0 %139
        %v141 = vsub.f32 %v137, %v140
        %v142 = vrsqrt.pop %v141
        %v143 = vmul.f32 %v142, %v141
        %v144 = vmul.f32 %v143, %v142
        %v145 = vmul.f32 0.5, %v144
        %v146 = vsub.f32 1.5, %v145
        %v147 = vmul.f32 %v142, %v146
        %vm148 = vweird.f32 %v141
        %vm149 = vweird.f32 %v142
        %vm150 = vmor %vm148, %vm149
        %v151 = vsel %vm150, %v142, %v147
        %v152 = vld [vmem:[#allocation0] sm:$0xff]
        %v153 = vld [vmem:[#allocation2] sm:$0xff]
        %v154 = vmul.f32 %v153, %v135
        %155 = vadd.xlane.f32.xlu0 %v154
        %v156 = vpop.xlane.xlu0 %155
        %v157 = vsub.f32 %v152, %v156
        %v158 = vmul.f32 %v157, %v151
        %vm159 = vcmask 1047553
        %vm160 = vmand %vm133, %vm159
        %v161 = vsel %vm160, %v158, 0.0
        %v162 = vadd.f32 %v153, %v161
        %163 = vst [vmem:[#allocation2] sm:$0xff] %v162
        %vm164 = vcmask 23568
        %s165 = scalar_lea.vmem [#allocation2], 2
        %v166 = vld [vmem:[%s165] ss:$0 sm:$0xff]
        %s167 = scalar_lea.vmem [#allocation0], 2
        %v168 = vld [vmem:[%s167] ss:$0 sm:$0xff]
        %v169 = vmul.f32 %v166, %v166
        %170 = vadd.xlane.f32.xlu0 %v169
        %v171 = vpop.xlane.xlu0 %170
        %v172 = vsub.f32 %v168, %v171
        %v173 = vrsqrt.pop %v172
        %v174 = vmul.f32 %v173, %v172
        %v175 = vmul.f32 %v174, %v173
        %v176 = vmul.f32 0.5, %v175
        %v177 = vsub.f32 1.5, %v176
        %v178 = vmul.f32 %v173, %v177
        %vm179 = vweird.f32 %v172
        %vm180 = vweird.f32 %v173
        %vm181 = vmor %vm179, %vm180
        %v182 = vsel %vm181, %v173, %v178
        %v183 = vld [vmem:[#allocation0] sm:$0xff]
        %v184 = vld [vmem:[#allocation2] sm:$0xff]
        %v185 = vmul.f32 %v184, %v166
        %186 = vadd.xlane.f32.xlu0 %v185
        %v187 = vpop.xlane.xlu0 %186
        %v188 = vsub.f32 %v183, %v187
        %v189 = vmul.f32 %v188, %v182
        %vm190 = vcmask 1047554
        %vm191 = vmand %vm164, %vm190
        %v192 = vsel %vm191, %v189, 0.0
        %v193 = vadd.f32 %v184, %v192
        %194 = vst [vmem:[#allocation2] sm:$0xff] %v193
        %vm195 = vcmask 31768
        %s196 = scalar_lea.vmem [#allocation2], 3
        %v197 = vld [vmem:[%s196] ss:$0 sm:$0xff]
        %s198 = scalar_lea.vmem [#allocation0], 3
        %v199 = vld [vmem:[%s198] ss:$0 sm:$0xff]
        %v200 = vmul.f32 %v197, %v197
        %201 = vadd.xlane.f32.xlu0 %v200
        %v202 = vpop.xlane.xlu0 %201
        %v203 = vsub.f32 %v199, %v202
        %v204 = vrsqrt.pop %v203
        %v205 = vmul.f32 %v204, %v203
        %v206 = vmul.f32 %v205, %v204
        %v207 = vmul.f32 0.5, %v206
        %v208 = vsub.f32 1.5, %v207
        %v209 = vmul.f32 %v204, %v208
        %vm210 = vweird.f32 %v203
        %vm211 = vweird.f32 %v204
        %vm212 = vmor %vm210, %vm211
        %v213 = vsel %vm212, %v204, %v209
        %v214 = vld [vmem:[#allocation0] sm:$0xff]
        %v215 = vld [vmem:[#allocation2] sm:$0xff]
        %v216 = vmul.f32 %v215, %v197
        %217 = vadd.xlane.f32.xlu0 %v216
        %v218 = vpop.xlane.xlu0 %217
        %v219 = vsub.f32 %v214, %v218
        %v220 = vmul.f32 %v219, %v213
        %vm221 = vcmask 1047555
        %vm222 = vmand %vm195, %vm221
        %v223 = vsel %vm222, %v220, 0.0
        %v224 = vadd.f32 %v215, %v223
        %225 = vst [vmem:[#allocation2] sm:$0xff] %v224
        %s227 = ssub.s32 16, 1
        %v228 = vld [vmem:[#allocation2] sm:%s227]
        %s230 = ssub.s32 16, 1
        %231 = vst [vmem:[%s100] sm:%s230] %v228
        %s232 = sand.u32 %s8, 1
        %s233 = sand.u32 %s8, 1
        %s234 = smul.addr %s233, 4
        %s235 = scalar_lea.vmem [#allocation3], %s234
        %s236 = sadd.s32 %s15, %s14
        %s237 = sadd.s32 %s236, %s13
        %s238 = smul.addr %s237, 4
        %s239 = scalar_lea.vmem %s1, %s238
        // Predicated region
        $region51: #{custom-call.39} parent=49 // pred_check
          _
        $region52: #{custom-call.39} parent=49 // pred_check_branch
          %241 = sbr.rel (0) target = $region54
        $region53: #{custom-call.39} parent=49 // pred_region
          // Predicated region
          $region55: #{custom-call.39} parent=53 // pred_check
            _
          $region56: #{custom-call.39} parent=53 // pred_check_branch
            %243 = sbr.rel target = $region58
          $region57: #{custom-call.39} parent=53 // pred_region
            // Predicated region
            $region70: #{custom-call.39} parent=57 // pred_check
              _
            $region71: #{custom-call.39} parent=57 // pred_check_branch
              %259 = sbr.rel (0) target = $region73
            $region72: #{custom-call.39} parent=57 // pred_region
              %s261 = ssub.s32 16, 1
              loop: start=0, step=1, limit=1
              $region74: #{custom-call.39} parent=72 // loop_pre_header
                _
              $region75: #{custom-call.39} parent=72 // loop_header
                %s263 = sphi 0, %s267
                %p264 = scmp.ge.s32.totalorder %s263, 1
                %s268 = sphi %s235, %s235
                %s269 = sphi %s239, %s239
              $region76: #{custom-call.39} parent=72 // loop_header_branch
                %266 = sbr.rel (%p264) target = $region80
              $region77: #{custom-call.39} parent=72 // loop_body
                %v270 = vld [vmem:[%s268] sm:%s261]
                %271 = vst [vmem:[%s269] sm:%s261] %v270
              $region78: #{custom-call.39} parent=72 // loop_footer
                %s267 = sadd.s32 1, %s263
              $region79: #{custom-call.39} parent=72 // loop_footer_branch
                %262 = sbr.rel target = $region75
              $region80: #{custom-call.39} parent=72 // loop_exit
                _
            $region73: #{custom-call.39} parent=57 // pred_fallthru
              _
          $region58: #{custom-call.39} parent=53 // pred_fallthru
            _
          // Predicated region
          $region59: #{custom-call.39} parent=53 // pred_check
            _
          $region60: #{custom-call.39} parent=53 // pred_check_branch
            %245 = sbr.rel (0) target = $region62
          $region61: #{custom-call.39} parent=53 // pred_region
            %s247 = ssub.s32 16, 1
            loop: start=0, step=1, limit=1
            $region63: #{custom-call.39} parent=61 // loop_pre_header
              _
            $region64: #{custom-call.39} parent=61 // loop_header
              %s249 = sphi 0, %s253
              %p250 = scmp.ge.s32.totalorder %s249, 1
              %s254 = sphi %s235, %s235
              %s255 = sphi %s239, %s239
            $region65: #{custom-call.39} parent=61 // loop_header_branch
              %252 = sbr.rel (%p250) target = $region69
            $region66: #{custom-call.39} parent=61 // loop_body
              %v256 = vld [vmem:[%s254] sm:%s247]
              %257 = vst [vmem:[%s255] sm:%s247] %v256
            $region67: #{custom-call.39} parent=61 // loop_footer
              %s253 = sadd.s32 1, %s249
            $region68: #{custom-call.39} parent=61 // loop_footer_branch
              %248 = sbr.rel target = $region64
            $region69: #{custom-call.39} parent=61 // loop_exit
              _
          $region62: #{custom-call.39} parent=53 // pred_fallthru
            _
        $region54: #{custom-call.39} parent=49 // pred_fallthru
          _
        %272 = vnop
      $region50: #{custom-call.39} parent=5 // pred_fallthru
        _
      %p273 = scmp.le.s32.totalorder 2, %s3
      // Predicated region
      $region81: #{custom-call.39} parent=5 // pred_check
        %p274 = pneg %p273
      $region82: #{custom-call.39} parent=5 // pred_check_branch
        %276 = sbr.rel (%p274) target = $region84
      $region83: #{custom-call.39} parent=5 // pred_region
        %s277 = ssub.s32 %s3, 2
        %s278 = sand.u32 %s9, 1
        %s279 = sand.u32 %s9, 1
        %s280 = smul.addr %s279, 4
        %s281 = scalar_lea.vmem [#allocation3], %s280
      $region84: #{custom-call.39} parent=5 // pred_fallthru
        _
    $region6: #{custom-call.39} parent=1 // loop_footer
      %s7 = sadd.s32 1, %s3
    $region7: #{custom-call.39} parent=1 // loop_footer_branch
      %2 = sbr.rel target = $region3
    $region8: #{custom-call.39} parent=1 // loop_exit
      _

// kernel: triangulate_head_forward.1
$region0: #{triangulate_head_forward.1}
  #allocation0 [shape = 'u32[]', space=smem, size = 0x4, offset = 0x4, fixed_abs, tag = 'smem constant byte address 0x4 - core index']
  #allocation1 [shape = 'u32[72,128]{1,0:T(1,128)}', space=vmem, size = 0x9000, scoped, tag = 'internal scratch']
  %s0 = inlined_call_operand.vmem [shape: f32[32,32,128], index: 0, kind: input, shape index: {}]
  %s1 = inlined_call_operand.vmem [shape: f32[32,128], index: 1, kind: output, shape index: {}]
  %s2 = sld [smem:[#allocation0]]
  $region37: #{triangulate_head_forward.1} parent=0
    _
  %s4 = ssub.s32 1, %s2
  %s5 = scalar_select 0, %s4, %s2
  loop: start=0, step=1, limit=4
  $region2: #{triangulate_head_forward.1} parent=0 // loop_pre_header
    _
  $region3: #{triangulate_head_forward.1} parent=0 // loop_header
    %s7 = sphi 0, %s11
    %p8 = scmp.ge.s32.totalorder %s7, 4
    %s17 = sphi 0, %s19
    %s20 = sphi 0, %s17
    %s21 = sphi 0, %s20
    %s37 = sphi 0, %s21
    %s43 = sphi 0, %s45
    %s46 = sphi 0, %s43
    %s47 = sphi 0, %s46
    %s63 = sphi 0, %s47
  $region4: #{triangulate_head_forward.1} parent=0 // loop_header_branch
    %10 = sbr.rel (%p8) target = $region8
  $region5: #{triangulate_head_forward.1} parent=0 // loop_body
    %s12 = ssub.s32 %s7, 1
    %s13 = ssub.s32 %s7, 2
    %s14 = sadd.s32 %s7, 1
    %s15 = ssub.s32 %s7, %s14
    %p16 = scmp.eq.s32.totalorder %s15, 0
    %s18 = sadd.s32 %s17, 1
    %s19 = scalar_select %p16, %s17, %s18
    %p22 = pneg %p16
    %p23 = scmp.eq.s32.totalorder %s7, 1
    %p24 = por %p22, %p23
    %p25 = scmp.ne.s32.totalorder %s17, %s20
    %p26 = scmp.eq.s32.totalorder %s7, 0
    %p27 = por %p25, %p26
    %p28 = scmp.ne.s32.totalorder %s17, %s20
    %p29 = scmp.eq.s32.totalorder %s12, 1
    %p30 = por %p28, %p29
    %p31 = scmp.ne.s32.totalorder %s20, %s21
    %p32 = scmp.eq.s32.totalorder %s12, 0
    %p33 = por %p31, %p32
    %p34 = scmp.ne.s32.totalorder %s20, %s21
    %p35 = scmp.eq.s32.totalorder %s13, 1
    %p36 = por %p34, %p35
    %p38 = scmp.ne.s32.totalorder %s21, %s37
    %p39 = scmp.eq.s32.totalorder %s13, 0
    %p40 = por %p38, %p39
    %s41 = ssub.s32 %s7, %s14
    %p42 = scmp.eq.s32.totalorder %s41, 0
    %s44 = sadd.s32 %s43, 1
    %s45 = scalar_select %p42, %s43, %s44
    %p48 = pneg %p42
    %p49 = scmp.eq.s32.totalorder %s7, 1
    %p50 = por %p48, %p49
    %p51 = scmp.ne.s32.totalorder %s43, %s46
    %p52 = scmp.eq.s32.totalorder %s7, 0
    %p53 = por %p51, %p52
    %p54 = scmp.ne.s32.totalorder %s43, %s46
    %p55 = scmp.eq.s32.totalorder %s12, 1
    %p56 = por %p54, %p55
    %p57 = scmp.ne.s32.totalorder %s46, %s47
    %p58 = scmp.eq.s32.totalorder %s12, 0
    %p59 = por %p57, %p58
    %p60 = scmp.ne.s32.totalorder %s46, %s47
    %p61 = scmp.eq.s32.totalorder %s13, 1
    %p62 = por %p60, %p61
    %p64 = scmp.ne.s32.totalorder %s47, %s63
    %p65 = scmp.eq.s32.totalorder %s13, 0
    %p66 = por %p64, %p65
    %p67 = scmp.le.s32.totalorder 1, %s7
    %p68 = scmp.lt.s32.totalorder %s7, 3
    %p69 = pnand %p67, %p68
    %p70 = pneg %p69
    // Predicated region
    $region9: #{triangulate_head_forward.1} parent=5 // pred_check
      _
    $region10: #{triangulate_head_forward.1} parent=5 // pred_check_branch
      %72 = sbr.rel (%p69) target = $region12
    $region11: #{triangulate_head_forward.1} parent=5 // pred_region
      %s73 = ssub.s32 %s7, 1
    $region12: #{triangulate_head_forward.1} parent=5 // pred_fallthru
      _
    %p74 = scmp.lt.s32.totalorder %s7, 2
    // Predicated region
    $region13: #{triangulate_head_forward.1} parent=5 // pred_check
      %p75 = pneg %p74
    $region14: #{triangulate_head_forward.1} parent=5 // pred_check_branch
      %77 = sbr.rel (%p75) target = $region16
    $region15: #{triangulate_head_forward.1} parent=5 // pred_region
      // Predicated region
      $region17: #{triangulate_head_forward.1} parent=15 // pred_check
        %p78 = pneg %p27
      $region18: #{triangulate_head_forward.1} parent=15 // pred_check_branch
        %80 = sbr.rel (%p78) target = $region20
      $region19: #{triangulate_head_forward.1} parent=15 // pred_region
        %s81 = smul.u32 16, %s7
        %p82 = scmp.lt.s32.totalorder %s81, 31
        %s83 = scalar_select %p82, %s81, 31
        %s84 = smul.addr %s83, 4
        %s85 = smul.addr %s84, 8
        %s86 = scalar_lea.vmem %s0, %s85
        %s87 = smul.u32 16, %s7
      $region20: #{triangulate_head_forward.1} parent=15 // pred_fallthru
        _
    $region16: #{triangulate_head_forward.1} parent=5 // pred_fallthru
      _
    %p88 = scmp.le.s32.totalorder 1, %s7
    %p89 = scmp.lt.s32.totalorder %s7, 3
    %p90 = pnand %p88, %p89
    %p91 = pneg %p90
    // Predicated region
    $region21: #{triangulate_head_forward.1} parent=5 // pred_check
      _
    $region22: #{triangulate_head_forward.1} parent=5 // pred_check_branch
      %93 = sbr.rel (%p90) target = $region24
    $region23: #{triangulate_head_forward.1} parent=5 // pred_region
      %s94 = ssub.s32 %s7, 1
      %s95 = smul.u32 16, %s12
      %p96 = scmp.lt.s32.totalorder %s95, 31
      %s97 = scalar_select %p96, %s95, 31
      %s98 = smul.addr %s97, 4
      %s99 = smul.addr %s98, 8
      %s100 = scalar_lea.vmem %s0, %s99
      %p101 = pneg %p33
      %p102 = pneg %p30
      %p103 = pneg %p59
      %p104 = pneg %p56
      %s105 = smul.u32 2, %s12
      %p106 = scmp.lt.s32.totalorder %s105, 3
      %s107 = scalar_select %p106, %s105, 3
      %s108 = smul.addr %s107, 8
      %s109 = scalar_lea.vmem %s1, %s108
      %s110 = smul.u32 16, %s12
      %p111 = scmp.lt.s32.totalorder %s110, 31
      %s112 = scalar_select %p111, %s110, 31
      %s113 = smul.addr %s112, 4
      %s114 = smul.addr %s113, 8
      %s115 = scalar_lea.vmem %s0, %s114
      %s116 = smul.u32 16, %s12
      %s117 = smul.u32 2, %s12
      %p118 = scmp.lt.s32.totalorder %s117, 3
      %s119 = scalar_select %p118, %s117, 3
      %s120 = smul.addr %s119, 8
      %s121 = scalar_lea.vmem %s1, %s120
      %s122 = smul.u32 2, %s12
      %v123 = vld [vmem:[%s115] sm:$0xff]
      %v124 = vld [vmem:[%s115 + $0x8] sm:$0xff]
      %v125 = vld [vmem:[%s115 + $0x10] sm:$0xff]
      %v126 = vld [vmem:[%s115 + $0x18] sm:$0xff]
      %v127 = vld [vmem:[%s115 + $0x20] sm:$0xff]
      %v128 = vld [vmem:[%s115 + $0x28] sm:$0xff]
      %v129 = vld [vmem:[%s115 + $0x30] sm:$0xff]
      %v130 = vld [vmem:[%s115 + $0x38] sm:$0xff]
      %v131 = vld [vmem:[%s115 + $0x40] sm:$0xff]
      %v132 = vld [vmem:[%s115 + $0x48] sm:$0xff]
      %v133 = vld [vmem:[%s115 + $0x50] sm:$0xff]
      %v134 = vld [vmem:[%s115 + $0x58] sm:$0xff]
      %v135 = vld [vmem:[%s115 + $0x60] sm:$0xff]
      %v136 = vld [vmem:[%s115 + $0x68] sm:$0xff]
      %v137 = vld [vmem:[%s115 + $0x70] sm:$0xff]
      %v138 = vld [vmem:[%s115 + $0x78] sm:$0xff]
      %v139 = vld [vmem:[%s115 + $0x80] sm:$0xff]
      %v140 = vld [vmem:[%s115 + $0x88] sm:$0xff]
      %v141 = vld [vmem:[%s115 + $0x90] sm:$0xff]
      %v142 = vld [vmem:[%s115 + $0x98] sm:$0xff]
      %v143 = vld [vmem:[%s115 + $0xa0] sm:$0xff]
      %v144 = vld [vmem:[%s115 + $0xa8] sm:$0xff]
      %v145 = vld [vmem:[%s115 + $0xb0] sm:$0xff]
      %v146 = vld [vmem:[%s115 + $0xb8] sm:$0xff]
      %v147 = vld [vmem:[%s115 + $0xc0] sm:$0xff]
      %v148 = vld [vmem:[%s115 + $0xc8] sm:$0xff]
      %v149 = vld [vmem:[%s115 + $0xd0] sm:$0xff]
      %v150 = vld [vmem:[%s115 + $0xd8] sm:$0xff]
      %v151 = vld [vmem:[%s115 + $0xe0] sm:$0xff]
      %v152 = vld [vmem:[%s115 + $0xe8] sm:$0xff]
      %v153 = vld [vmem:[%s115 + $0xf0] sm:$0xff]
      %v154 = vld [vmem:[%s115 + $0xf8] sm:$0xff]
      %v155 = vld [vmem:[%s115 + $0x100] sm:$0xff]
      %v156 = vld [vmem:[%s115 + $0x108] sm:$0xff]
      %v157 = vld [vmem:[%s115 + $0x110] sm:$0xff]
      %v158 = vld [vmem:[%s115 + $0x118] sm:$0xff]
      %v159 = vld [vmem:[%s115 + $0x120] sm:$0xff]
      %v160 = vld [vmem:[%s115 + $0x128] sm:$0xff]
      %v161 = vld [vmem:[%s115 + $0x130] sm:$0xff]
      %v162 = vld [vmem:[%s115 + $0x138] sm:$0xff]
      %v163 = vld [vmem:[%s115 + $0x140] sm:$0xff]
      %v164 = vld [vmem:[%s115 + $0x148] sm:$0xff]
      %v165 = vld [vmem:[%s115 + $0x150] sm:$0xff]
      %v166 = vld [vmem:[%s115 + $0x158] sm:$0xff]
      %v167 = vld [vmem:[%s115 + $0x160] sm:$0xff]
      %v168 = vld [vmem:[%s115 + $0x168] sm:$0xff]
      %v169 = vld [vmem:[%s115 + $0x170] sm:$0xff]
      %v170 = vld [vmem:[%s115 + $0x178] sm:$0xff]
      %v171 = vld [vmem:[%s115 + $0x180] sm:$0xff]
      %v172 = vld [vmem:[%s115 + $0x188] sm:$0xff]
      %v173 = vld [vmem:[%s115 + $0x190] sm:$0xff]
      %v174 = vld [vmem:[%s115 + $0x198] sm:$0xff]
      %v175 = vld [vmem:[%s115 + $0x1a0] sm:$0xff]
      %v176 = vld [vmem:[%s115 + $0x1a8] sm:$0xff]
      %v177 = vld [vmem:[%s115 + $0x1b0] sm:$0xff]
      %v178 = vld [vmem:[%s115 + $0x1b8] sm:$0xff]
      %v179 = vld [vmem:[%s115 + $0x1c0] sm:$0xff]
      %v180 = vld [vmem:[%s115 + $0x1c8] sm:$0xff]
      %v181 = vld [vmem:[%s115 + $0x1d0] sm:$0xff]
      %v182 = vld [vmem:[%s115 + $0x1d8] sm:$0xff]
      %v183 = vld [vmem:[%s115 + $0x1e0] sm:$0xff]
      %v184 = vld [vmem:[%s115 + $0x1e8] sm:$0xff]
      %v185 = vld [vmem:[%s115 + $0x1f0] sm:$0xff]
      %v186 = vld [vmem:[%s115 + $0x1f8] sm:$0xff]
      %v187 = vlaneseq
      %v188 = vand.u32 %v187, 127
      %v189 = vlaneseq
      %v190 = vshrl.u32 %v189, 7
      %v191 = vadd.s32 %v190, 8
      %v192 = vadd.s32 %v190, 16
      %v193 = vadd.s32 %v190, 24
      %v194 = vand.u32 %v188, 63
      %v195 = vcvt.s32.f32 %v194
      %v196 = vmul.u32 %v190, 2
      %v197 = vmul.u32 %v191, 2
      %v198 = vmul.u32 %v192, 2
      %v199 = vmul.u32 %v193, 2
      %v200 = vshra.s32 %v188, 6
      %v201 = vadd.s32 %v196, %v200
      %v202 = vadd.s32 %v197, %v200
      %v203 = vadd.s32 %v198, %v200
      %v204 = vadd.s32 %v199, %v200
      %v205 = vcvt.s32.f32 %v201
      %v206 = vcvt.s32.f32 %v202
      %v207 = vcvt.s32.f32 %v203
      %v208 = vcvt.s32.f32 %v204
      %v209 = vmax.f32 %v123, %v124
      %v210 = vmax.f32 %v209, %v125
      %v211 = vmax.f32 %v210, %v126
      %v212 = vrot.slane %v211, 4
      %v213 = vmax.f32 %v211, %v212
      %v214 = vrot.slane %v213, 2
      %v215 = vmax.f32 %v213, %v214
      %v216 = vrot.slane %v215, 1
      %v217 = vmax.f32 %v215, %v216
      %v218 = vmax.f32 %v127, %v128
      %v219 = vmax.f32 %v218, %v129
      %v220 = vmax.f32 %v219, %v130
      %v221 = vrot.slane %v220, 4
      %v222 = vmax.f32 %v220, %v221
      %v223 = vrot.slane %v222, 2
      %v224 = vmax.f32 %v222, %v223
      %v225 = vrot.slane %v224, 1
      %v226 = vmax.f32 %v224, %v225
      %v227 = vmax.f32 %v131, %v132
      %v228 = vmax.f32 %v227, %v133
      %v229 = vmax.f32 %v228, %v134
      %v230 = vrot.slane %v229, 4
      %v231 = vmax.f32 %v229, %v230
      %v232 = vrot.slane %v231, 2
      %v233 = vmax.f32 %v231, %v232
      %v234 = vrot.slane %v233, 1
      %v235 = vmax.f32 %v233, %v234
      %v236 = vmax.f32 %v135, %v136
      %v237 = vmax.f32 %v236, %v137
      %v238 = vmax.f32 %v237, %v138
      %v239 = vrot.slane %v238, 4
      %v240 = vmax.f32 %v238, %v239
      %v241 = vrot.slane %v240, 2
      %v242 = vmax.f32 %v240, %v241
      %v243 = vrot.slane %v242, 1
      %v244 = vmax.f32 %v242, %v243
      %v245 = vmax.f32 %v139, %v140
      %v246 = vmax.f32 %v245, %v141
      %v247 = vmax.f32 %v246, %v142
      %v248 = vrot.slane %v247, 4
      %v249 = vmax.f32 %v247, %v248
      %v250 = vrot.slane %v249, 2
      %v251 = vmax.f32 %v249, %v250
      %v252 = vrot.slane %v251, 1
      %v253 = vmax.f32 %v251, %v252
      %v254 = vmax.f32 %v143, %v144
      %v255 = vmax.f32 %v254, %v145
      %v256 = vmax.f32 %v255, %v146
      %v257 = vrot.slane %v256, 4
      %v258 = vmax.f32 %v256, %v257
      %v259 = vrot.slane %v258, 2
      %v260 = vmax.f32 %v258, %v259
      %v261 = vrot.slane %v260, 1
      %v262 = vmax.f32 %v260, %v261
      %v263 = vmax.f32 %v147, %v148
      %v264 = vmax.f32 %v263, %v149
      %v265 = vmax.f32 %v264, %v150
      %v266 = vrot.slane %v265, 4
      %v267 = vmax.f32 %v265, %v266
      %v268 = vrot.slane %v267, 2
      %v269 = vmax.f32 %v267, %v268
      %v270 = vrot.slane %v269, 1
      %v271 = vmax.f32 %v269, %v270
      %v272 = vmax.f32 %v151, %v152
      %v273 = vmax.f32 %v272, %v153
      %v274 = vmax.f32 %v273, %v154
      %v275 = vrot.slane %v274, 4
      %v276 = vmax.f32 %v274, %v275
      %v277 = vrot.slane %v276, 2
      %v278 = vmax.f32 %v276, %v277
      %v279 = vrot.slane %v278, 1
      %v280 = vmax.f32 %v278, %v279
      %v281 = vmax.f32 %v155, %v156
      %v282 = vmax.f32 %v281, %v157
      %v283 = vmax.f32 %v282, %v158
      %v284 = vrot.slane %v283, 4
      %v285 = vmax.f32 %v283, %v284
      %v286 = vrot.slane %v285, 2
      %v287 = vmax.f32 %v285, %v286
      %v288 = vrot.slane %v287, 1
      %v289 = vmax.f32 %v287, %v288
      %v290 = vmax.f32 %v159, %v160
      %v291 = vmax.f32 %v290, %v161
      %v292 = vmax.f32 %v291, %v162
      %v293 = vrot.slane %v292, 4
      %v294 = vmax.f32 %v292, %v293
      %v295 = vrot.slane %v294, 2
      %v296 = vmax.f32 %v294, %v295
      %v297 = vrot.slane %v296, 1
      %v298 = vmax.f32 %v296, %v297
      %v299 = vmax.f32 %v163, %v164
      %v300 = vmax.f32 %v299, %v165
      %v301 = vmax.f32 %v300, %v166
      %v302 = vrot.slane %v301, 4
      %v303 = vmax.f32 %v301, %v302
      %v304 = vrot.slane %v303, 2
      %v305 = vmax.f32 %v303, %v304
      %v306 = vrot.slane %v305, 1
      %v307 = vmax.f32 %v305, %v306
      %v308 = vmax.f32 %v167, %v168
      %v309 = vmax.f32 %v308, %v169
      %v310 = vmax.f32 %v309, %v170
      %v311 = vrot.slane %v310, 4
      %v312 = vmax.f32 %v310, %v311
      %v313 = vrot.slane %v312, 2
      %v314 = vmax.f32 %v312, %v313
      %v315 = vrot.slane %v314, 1
      %v316 = vmax.f32 %v314, %v315
      %v317 = vmax.f32 %v171, %v172
      %v318 = vmax.f32 %v317, %v173
      %v319 = vmax.f32 %v318, %v174
      %v320 = vrot.slane %v319, 4
      %v321 = vmax.f32 %v319, %v320
      %v322 = vrot.slane %v321, 2
      %v323 = vmax.f32 %v321, %v322
      %v324 = vrot.slane %v323, 1
      %v325 = vmax.f32 %v323, %v324
      %v326 = vmax.f32 %v175, %v176
      %v327 = vmax.f32 %v326, %v177
      %v328 = vmax.f32 %v327, %v178
      %v329 = vrot.slane %v328, 4
      %v330 = vmax.f32 %v328, %v329
      %v331 = vrot.slane %v330, 2
      %v332 = vmax.f32 %v330, %v331
      %v333 = vrot.slane %v332, 1
      %v334 = vmax.f32 %v332, %v333
      %v335 = vmax.f32 %v179, %v180
      %v336 = vmax.f32 %v335, %v181
      %v337 = vmax.f32 %v336, %v182
      %v338 = vrot.slane %v337, 4
      %v339 = vmax.f32 %v337, %v338
      %v340 = vrot.slane %v339, 2
      %v341 = vmax.f32 %v339, %v340
      %v342 = vrot.slane %v341, 1
      %v343 = vmax.f32 %v341, %v342
      %v344 = vmax.f32 %v183, %v184
      %v345 = vmax.f32 %v344, %v185
      %v346 = vmax.f32 %v345, %v186
      %v347 = vrot.slane %v346, 4
      %v348 = vmax.f32 %v346, %v347
      %v349 = vrot.slane %v348, 2
      %v350 = vmax.f32 %v348, %v349
      %v351 = vrot.slane %v350, 1
      %v352 = vmax.f32 %v350, %v351
      %353 = vmax.xlane.f32.xlu0 %v217
      %v354 = vpop.xlane.xlu0 %353
      %355 = vmax.xlane.f32.xlu0 %v226
      %v356 = vpop.xlane.xlu0 %355
      %357 = vmax.xlane.f32.xlu0 %v235
      %v358 = vpop.xlane.xlu0 %357
      %359 = vmax.xlane.f32.xlu0 %v244
      %v360 = vpop.xlane.xlu0 %359
      %361 = vmax.xlane.f32.xlu0 %v253
      %v362 = vpop.xlane.xlu0 %361
      %363 = vmax.xlane.f32.xlu0 %v262
      %v364 = vpop.xlane.xlu0 %363
      %365 = vmax.xlane.f32.xlu0 %v271
      %v366 = vpop.xlane.xlu0 %365
      %367 = vmax.xlane.f32.xlu0 %v280
      %v368 = vpop.xlane.xlu0 %367
      %369 = vmax.xlane.f32.xlu0 %v289
      %v370 = vpop.xlane.xlu0 %369
      %371 = vmax.xlane.f32.xlu0 %v298
      %v372 = vpop.xlane.xlu0 %371
      %373 = vmax.xlane.f32.xlu0 %v307
      %v374 = vpop.xlane.xlu0 %373
      %375 = vmax.xlane.f32.xlu0 %v316
      %v376 = vpop.xlane.xlu0 %375
      %377 = vmax.xlane.f32.xlu0 %v325
      %v378 = vpop.xlane.xlu0 %377
      %379 = vmax.xlane.f32.xlu0 %v334
      %v380 = vpop.xlane.xlu0 %379
      %381 = vmax.xlane.f32.xlu0 %v343
      %v382 = vpop.xlane.xlu0 %381
      %383 = vmax.xlane.f32.xlu0 %v352
      %v384 = vpop.xlane.xlu0 %383
      %v385 = vmul.f32 %v205, 64.0
      %v386 = vmul.f32 %v206, 64.0
      %v387 = vmul.f32 %v207, 64.0
      %v388 = vmul.f32 %v208, 64.0
      %v389 = vadd.f32 %v385, %v195
      %v390 = vadd.f32 %v386, %v195
      %v391 = vadd.f32 %v387, %v195
      %v392 = vadd.f32 %v388, %v195
      %vm393 = vcmp.ge.f32.partialorder %v123, %v354
      %vm394 = vcmp.ge.f32.partialorder %v124, %v354
      %vm395 = vcmp.ge.f32.partialorder %v125, %v354
      %vm396 = vcmp.ge.f32.partialorder %v126, %v354
      %vm397 = vcmp.ge.f32.partialorder %v127, %v356
      %vm398 = vcmp.ge.f32.partialorder %v128, %v356
      %vm399 = vcmp.ge.f32.partialorder %v129, %v356
      %vm400 = vcmp.ge.f32.partialorder %v130, %v356
      %vm401 = vcmp.ge.f32.partialorder %v131, %v358
      %vm402 = vcmp.ge.f32.partialorder %v132, %v358
      %vm403 = vcmp.ge.f32.partialorder %v133, %v358
      %vm404 = vcmp.ge.f32.partialorder %v134, %v358
      %vm405 = vcmp.ge.f32.partialorder %v135, %v360
      %vm406 = vcmp.ge.f32.partialorder %v136, %v360
      %vm407 = vcmp.ge.f32.partialorder %v137, %v360
      %vm408 = vcmp.ge.f32.partialorder %v138, %v360
      %vm409 = vcmp.ge.f32.partialorder %v139, %v362
      %vm410 = vcmp.ge.f32.partialorder %v140, %v362
      %vm411 = vcmp.ge.f32.partialorder %v141, %v362
      %vm412 = vcmp.ge.f32.partialorder %v142, %v362
      %vm413 = vcmp.ge.f32.partialorder %v143, %v364
      %vm414 = vcmp.ge.f32.partialorder %v144, %v364
      %vm415 = vcmp.ge.f32.partialorder %v145, %v364
      %vm416 = vcmp.ge.f32.partialorder %v146, %v364
      %vm417 = vcmp.ge.f32.partialorder %v147, %v366
      %vm418 = vcmp.ge.f32.partialorder %v148, %v366
      %vm419 = vcmp.ge.f32.partialorder %v149, %v366
      %vm420 = vcmp.ge.f32.partialorder %v150, %v366
      %vm421 = vcmp.ge.f32.partialorder %v151, %v368
      %vm422 = vcmp.ge.f32.partialorder %v152, %v368
      %vm423 = vcmp.ge.f32.partialorder %v153, %v368
      %vm424 = vcmp.ge.f32.partialorder %v154, %v368
      %vm425 = vcmp.ge.f32.partialorder %v155, %v370
      %vm426 = vcmp.ge.f32.partialorder %v156, %v370
      %vm427 = vcmp.ge.f32.partialorder %v157, %v370
      %vm428 = vcmp.ge.f32.partialorder %v158, %v370
      %vm429 = vcmp.ge.f32.partialorder %v159, %v372
      %vm430 = vcmp.ge.f32.partialorder %v160, %v372
      %vm431 = vcmp.ge.f32.partialorder %v161, %v372
      %vm432 = vcmp.ge.f32.partialorder %v162, %v372
      %vm433 = vcmp.ge.f32.partialorder %v163, %v374
      %vm434 = vcmp.ge.f32.partialorder %v164, %v374
      %vm435 = vcmp.ge.f32.partialorder %v165, %v374
      %vm436 = vcmp.ge.f32.partialorder %v166, %v374
      %vm437 = vcmp.ge.f32.partialorder %v167, %v376
      %vm438 = vcmp.ge.f32.partialorder %v168, %v376
      %vm439 = vcmp.ge.f32.partialorder %v169, %v376
      %vm440 = vcmp.ge.f32.partialorder %v170, %v376
      %vm441 = vcmp.ge.f32.partialorder %v171, %v378
      %vm442 = vcmp.ge.f32.partialorder %v172, %v378
      %vm443 = vcmp.ge.f32.partialorder %v173, %v378
      %vm444 = vcmp.ge.f32.partialorder %v174, %v378
      %vm445 = vcmp.ge.f32.partialorder %v175, %v380
      %vm446 = vcmp.ge.f32.partialorder %v176, %v380
      %vm447 = vcmp.ge.f32.partialorder %v177, %v380
      %vm448 = vcmp.ge.f32.partialorder %v178, %v380
      %vm449 = vcmp.ge.f32.partialorder %v179, %v382
      %vm450 = vcmp.ge.f32.partialorder %v180, %v382
      %vm451 = vcmp.ge.f32.partialorder %v181, %v382
      %vm452 = vcmp.ge.f32.partialorder %v182, %v382
      %vm453 = vcmp.ge.f32.partialorder %v183, %v384
      %vm454 = vcmp.ge.f32.partialorder %v184, %v384
      %vm455 = vcmp.ge.f32.partialorder %v185, %v384
      %vm456 = vcmp.ge.f32.partialorder %v186, %v384
      %v457 = vsel %vm393, %v389, 4096.0
      %v458 = vsel %vm394, %v390, 4096.0
      %v459 = vsel %vm395, %v391, 4096.0
      %v460 = vsel %vm396, %v392, 4096.0
      %v461 = vsel %vm397, %v389, 4096.0
      %v462 = vsel %vm398, %v390, 4096.0
      %v463 = vsel %vm399, %v391, 4096.0
      %v464 = vsel %vm400, %v392, 4096.0
      %v465 = vsel %vm401, %v389, 4096.0
      %v466 = vsel %vm402, %v390, 4096.0
      %v467 = vsel %vm403, %v391, 4096.0
      %v468 = vsel %vm404, %v392, 4096.0
      %v469 = vsel %vm405, %v389, 4096.0
      %v470 = vsel %vm406, %v390, 4096.0
      %v471 = vsel %vm407, %v391, 4096.0
      %v472 = vsel %vm408, %v392, 4096.0
      %v473 = vsel %vm409, %v389, 4096.0
      %v474 = vsel %vm410, %v390, 4096.0
      %v475 = vsel %vm411, %v391, 4096.0
      %v476 = vsel %vm412, %v392, 4096.0
      %v477 = vsel %vm413, %v389, 4096.0
      %v478 = vsel %vm414, %v390, 4096.0
      %v479 = vsel %vm415, %v391, 4096.0
      %v480 = vsel %vm416, %v392, 4096.0
      %v481 = vsel %vm417, %v389, 4096.0
      %v482 = vsel %vm418, %v390, 4096.0
      %v483 = vsel %vm419, %v391, 4096.0
      %v484 = vsel %vm420, %v392, 4096.0
      %v485 = vsel %vm421, %v389, 4096.0
      %v486 = vsel %vm422, %v390, 4096.0
      %v487 = vsel %vm423, %v391, 4096.0
      %v488 = vsel %vm424, %v392, 4096.0
      %v489 = vsel %vm425, %v389, 4096.0
      %v490 = vsel %vm426, %v390, 4096.0
      %v491 = vsel %vm427, %v391, 4096.0
      %v492 = vsel %vm428, %v392, 4096.0
      %v493 = vsel %vm429, %v389, 4096.0
      %v494 = vsel %vm430, %v390, 4096.0
      %v495 = vsel %vm431, %v391, 4096.0
      %v496 = vsel %vm432, %v392, 4096.0
      %v497 = vsel %vm433, %v389, 4096.0
      %v498 = vsel %vm434, %v390, 4096.0
      %v499 = vsel %vm435, %v391, 4096.0
      %v500 = vsel %vm436, %v392, 4096.0
      %v501 = vsel %vm437, %v389, 4096.0
      %v502 = vsel %vm438, %v390, 4096.0
      %v503 = vsel %vm439, %v391, 4096.0
      %v504 = vsel %vm440, %v392, 4096.0
      %v505 = vsel %vm441, %v389, 4096.0
      %v506 = vsel %vm442, %v390, 4096.0
      %v507 = vsel %vm443, %v391, 4096.0
      %v508 = vsel %vm444, %v392, 4096.0
      %v509 = vsel %vm445, %v389, 4096.0
      %v510 = vsel %vm446, %v390, 4096.0
      %v511 = vsel %vm447, %v391, 4096.0
      %v512 = vsel %vm448, %v392, 4096.0
      %v513 = vsel %vm449, %v389, 4096.0
      %v514 = vsel %vm450, %v390, 4096.0
      %v515 = vsel %vm451, %v391, 4096.0
      %v516 = vsel %vm452, %v392, 4096.0
      %v517 = vsel %vm453, %v389, 4096.0
      %v518 = vsel %vm454, %v390, 4096.0
      %v519 = vsel %vm455, %v391, 4096.0
      %v520 = vsel %vm456, %v392, 4096.0
      %v521 = vmin.f32 %v457, %v458
      %v522 = vmin.f32 %v521, %v459
      %v523 = vmin.f32 %v522, %v460
      %v524 = vrot.slane %v523, 4
      %v525 = vmin.f32 %v523, %v524
      %v526 = vrot.slane %v525, 2
      %v527 = vmin.f32 %v525, %v526
      %v528 = vrot.slane %v527, 1
      %v529 = vmin.f32 %v527, %v528
      %v530 = vmin.f32 %v461, %v462
      %v531 = vmin.f32 %v530, %v463
      %v532 = vmin.f32 %v531, %v464
      %v533 = vrot.slane %v532, 4
      %v534 = vmin.f32 %v532, %v533
      %v535 = vrot.slane %v534, 2
      %v536 = vmin.f32 %v534, %v535
      %v537 = vrot.slane %v536, 1
      %v538 = vmin.f32 %v536, %v537
      %v539 = vmin.f32 %v465, %v466
      %v540 = vmin.f32 %v539, %v467
      %v541 = vmin.f32 %v540, %v468
      %v542 = vrot.slane %v541, 4
      %v543 = vmin.f32 %v541, %v542
      %v544 = vrot.slane %v543, 2
      %v545 = vmin.f32 %v543, %v544
      %v546 = vrot.slane %v545, 1
      %v547 = vmin.f32 %v545, %v546
      %v548 = vmin.f32 %v469, %v470
      %v549 = vmin.f32 %v548, %v471
      %v550 = vmin.f32 %v549, %v472
      %v551 = vrot.slane %v550, 4
      %v552 = vmin.f32 %v550, %v551
      %v553 = vrot.slane %v552, 2
      %v554 = vmin.f32 %v552, %v553
      %v555 = vrot.slane %v554, 1
      %v556 = vmin.f32 %v554, %v555
      %v557 = vmin.f32 %v473, %v474
      %v558 = vmin.f32 %v557, %v475
      %v559 = vmin.f32 %v558, %v476
      %v560 = vrot.slane %v559, 4
      %v561 = vmin.f32 %v559, %v560
      %v562 = vrot.slane %v561, 2
      %v563 = vmin.f32 %v561, %v562
      %v564 = vrot.slane %v563, 1
      %v565 = vmin.f32 %v563, %v564
      %v566 = vmin.f32 %v477, %v478
      %v567 = vmin.f32 %v566, %v479
      %v568 = vmin.f32 %v567, %v480
      %v569 = vrot.slane %v568, 4
      %v570 = vmin.f32 %v568, %v569
      %v571 = vrot.slane %v570, 2
      %v572 = vmin.f32 %v570, %v571
      %v573 = vrot.slane %v572, 1
      %v574 = vmin.f32 %v572, %v573
      %v575 = vmin.f32 %v481, %v482
      %v576 = vmin.f32 %v575, %v483
      %v577 = vmin.f32 %v576, %v484
      %v578 = vrot.slane %v577, 4
      %v579 = vmin.f32 %v577, %v578
      %v580 = vrot.slane %v579, 2
      %v581 = vmin.f32 %v579, %v580
      %v582 = vrot.slane %v581, 1
      %v583 = vmin.f32 %v581, %v582
      %v584 = vmin.f32 %v485, %v486
      %v585 = vmin.f32 %v584, %v487
      %v586 = vmin.f32 %v585, %v488
      %v587 = vrot.slane %v586, 4
      %v588 = vmin.f32 %v586, %v587
      %v589 = vrot.slane %v588, 2
      %v590 = vmin.f32 %v588, %v589
      %v591 = vrot.slane %v590, 1
      %v592 = vmin.f32 %v590, %v591
      %v593 = vmin.f32 %v489, %v490
      %v594 = vmin.f32 %v593, %v491
      %v595 = vmin.f32 %v594, %v492
      %v596 = vrot.slane %v595, 4
      %v597 = vmin.f32 %v595, %v596
      %v598 = vrot.slane %v597, 2
      %v599 = vmin.f32 %v597, %v598
      %v600 = vrot.slane %v599, 1
      %v601 = vmin.f32 %v599, %v600
      %v602 = vmin.f32 %v493, %v494
      %v603 = vmin.f32 %v602, %v495
      %v604 = vmin.f32 %v603, %v496
      %v605 = vrot.slane %v604, 4
      %v606 = vmin.f32 %v604, %v605
      %v607 = vrot.slane %v606, 2
      %v608 = vmin.f32 %v606, %v607
      %v609 = vrot.slane %v608, 1
      %v610 = vmin.f32 %v608, %v609
      %v611 = vmin.f32 %v497, %v498
      %v612 = vmin.f32 %v611, %v499
      %v613 = vmin.f32 %v612, %v500
      %v614 = vrot.slane %v613, 4
      %v615 = vmin.f32 %v613, %v614
      %v616 = vrot.slane %v615, 2
      %v617 = vmin.f32 %v615, %v616
      %v618 = vrot.slane %v617, 1
      %v619 = vmin.f32 %v617, %v618
      %v620 = vmin.f32 %v501, %v502
      %v621 = vmin.f32 %v620, %v503
      %v622 = vmin.f32 %v621, %v504
      %v623 = vrot.slane %v622, 4
      %v624 = vmin.f32 %v622, %v623
      %v625 = vrot.slane %v624, 2
      %v626 = vmin.f32 %v624, %v625
      %v627 = vrot.slane %v626, 1
      %v628 = vmin.f32 %v626, %v627
      %v629 = vmin.f32 %v505, %v506
      %v630 = vmin.f32 %v629, %v507
      %v631 = vmin.f32 %v630, %v508
      %v632 = vrot.slane %v631, 4
      %v633 = vmin.f32 %v631, %v632
      %v634 = vrot.slane %v633, 2
      %v635 = vmin.f32 %v633, %v634
      %v636 = vrot.slane %v635, 1
      %v637 = vmin.f32 %v635, %v636
      %v638 = vmin.f32 %v509, %v510
      %v639 = vmin.f32 %v638, %v511
      %v640 = vmin.f32 %v639, %v512
      %v641 = vrot.slane %v640, 4
      %v642 = vmin.f32 %v640, %v641
      %v643 = vrot.slane %v642, 2
      %v644 = vmin.f32 %v642, %v643
      %v645 = vrot.slane %v644, 1
      %v646 = vmin.f32 %v644, %v645
      %v647 = vmin.f32 %v513, %v514
      %v648 = vmin.f32 %v647, %v515
      %v649 = vmin.f32 %v648, %v516
      %v650 = vrot.slane %v649, 4
      %v651 = vmin.f32 %v649, %v650
      %v652 = vrot.slane %v651, 2
      %v653 = vmin.f32 %v651, %v652
      %v654 = vrot.slane %v653, 1
      %v655 = vmin.f32 %v653, %v654
      %v656 = vmin.f32 %v517, %v518
      %v657 = vmin.f32 %v656, %v519
      %v658 = vmin.f32 %v657, %v520
      %v659 = vrot.slane %v658, 4
      %v660 = vmin.f32 %v658, %v659
      %v661 = vrot.slane %v660, 2
      %v662 = vmin.f32 %v660, %v661
      %v663 = vrot.slane %v662, 1
      %v664 = vmin.f32 %v662, %v663
      %665 = vmin.xlane.f32.xlu0 %v529
      %v666 = vpop.xlane.xlu0 %665
      %667 = vmin.xlane.f32.xlu0 %v538
      %v668 = vpop.xlane.xlu0 %667
      %669 = vmin.xlane.f32.xlu0 %v547
      %v670 = vpop.xlane.xlu0 %669
      %671 = vmin.xlane.f32.xlu0 %v556
      %v672 = vpop.xlane.xlu0 %671
      %673 = vmin.xlane.f32.xlu0 %v565
      %v674 = vpop.xlane.xlu0 %673
      %675 = vmin.xlane.f32.xlu0 %v574
      %v676 = vpop.xlane.xlu0 %675
      %677 = vmin.xlane.f32.xlu0 %v583
      %v678 = vpop.xlane.xlu0 %677
      %679 = vmin.xlane.f32.xlu0 %v592
      %v680 = vpop.xlane.xlu0 %679
      %681 = vmin.xlane.f32.xlu0 %v601
      %v682 = vpop.xlane.xlu0 %681
      %683 = vmin.xlane.f32.xlu0 %v610
      %v684 = vpop.xlane.xlu0 %683
      %685 = vmin.xlane.f32.xlu0 %v619
      %v686 = vpop.xlane.xlu0 %685
      %687 = vmin.xlane.f32.xlu0 %v628
      %v688 = vpop.xlane.xlu0 %687
      %689 = vmin.xlane.f32.xlu0 %v637
      %v690 = vpop.xlane.xlu0 %689
      %691 = vmin.xlane.f32.xlu0 %v646
      %v692 = vpop.xlane.xlu0 %691
      %693 = vmin.xlane.f32.xlu0 %v655
      %v694 = vpop.xlane.xlu0 %693
      %695 = vmin.xlane.f32.xlu0 %v664
      %v696 = vpop.xlane.xlu0 %695
      %v697 = vmul.f32 %v666, 0.015625
      %v698 = vmul.f32 %v668, 0.015625
      %v699 = vmul.f32 %v670, 0.015625
      %v700 = vmul.f32 %v672, 0.015625
      %v701 = vmul.f32 %v674, 0.015625
      %v702 = vmul.f32 %v676, 0.015625
      %v703 = vmul.f32 %v678, 0.015625
      %v704 = vmul.f32 %v680, 0.015625
      %v705 = vmul.f32 %v682, 0.015625
      %v706 = vmul.f32 %v684, 0.015625
      %v707 = vmul.f32 %v686, 0.015625
      %v708 = vmul.f32 %v688, 0.015625
      %v709 = vmul.f32 %v690, 0.015625
      %v710 = vmul.f32 %v692, 0.015625
      %v711 = vmul.f32 %v694, 0.015625
      %v712 = vmul.f32 %v696, 0.015625
      %v713 = vfloor.f32 %v697
      %v714 = vfloor.f32 %v698
      %v715 = vfloor.f32 %v699
      %v716 = vfloor.f32 %v700
      %v717 = vfloor.f32 %v701
      %v718 = vfloor.f32 %v702
      %v719 = vfloor.f32 %v703
      %v720 = vfloor.f32 %v704
      %v721 = vfloor.f32 %v705
      %v722 = vfloor.f32 %v706
      %v723 = vfloor.f32 %v707
      %v724 = vfloor.f32 %v708
      %v725 = vfloor.f32 %v709
      %v726 = vfloor.f32 %v710
      %v727 = vfloor.f32 %v711
      %v728 = vfloor.f32 %v712
      %v729 = vmul.f32 %v713, 64.0
      %v730 = vmul.f32 %v714, 64.0
      %v731 = vmul.f32 %v715, 64.0
      %v732 = vmul.f32 %v716, 64.0
      %v733 = vmul.f32 %v717, 64.0
      %v734 = vmul.f32 %v718, 64.0
      %v735 = vmul.f32 %v719, 64.0
      %v736 = vmul.f32 %v720, 64.0
      %v737 = vmul.f32 %v721, 64.0
      %v738 = vmul.f32 %v722, 64.0
      %v739 = vmul.f32 %v723, 64.0
      %v740 = vmul.f32 %v724, 64.0
      %v741 = vmul.f32 %v725, 64.0
      %v742 = vmul.f32 %v726, 64.0
      %v743 = vmul.f32 %v727, 64.0
      %v744 = vmul.f32 %v728, 64.0
      %v745 = vsub.f32 %v666, %v729
      %v746 = vsub.f32 %v668, %v730
      %v747 = vsub.f32 %v670, %v731
      %v748 = vsub.f32 %v672, %v732
      %v749 = vsub.f32 %v674, %v733
      %v750 = vsub.f32 %v676, %v734
      %v751 = vsub.f32 %v678, %v735
      %v752 = vsub.f32 %v680, %v736
      %v753 = vsub.f32 %v682, %v737
      %v754 = vsub.f32 %v684, %v738
      %v755 = vsub.f32 %v686, %v739
      %v756 = vsub.f32 %v688, %v740
      %v757 = vsub.f32 %v690, %v741
      %v758 = vsub.f32 %v692, %v742
      %v759 = vsub.f32 %v694, %v743
      %v760 = vsub.f32 %v696, %v744
      %v761 = vsub.f32 %v195, %v745
      %v762 = vsub.f32 %v195, %v746
      %v763 = vsub.f32 %v195, %v747
      %v764 = vsub.f32 %v195, %v748
      %v765 = vsub.f32 %v195, %v749
      %v766 = vsub.f32 %v195, %v750
      %v767 = vsub.f32 %v195, %v751
      %v768 = vsub.f32 %v195, %v752
      %v769 = vsub.f32 %v195, %v753
      %v770 = vsub.f32 %v195, %v754
      %v771 = vsub.f32 %v195, %v755
      %v772 = vsub.f32 %v195, %v756
      %v773 = vsub.f32 %v195, %v757
      %v774 = vsub.f32 %v195, %v758
      %v775 = vsub.f32 %v195, %v759
      %v776 = vsub.f32 %v195, %v760
      %v777 = vsub.f32 %v205, %v713
      %v778 = vsub.f32 %v206, %v713
      %v779 = vsub.f32 %v207, %v713
      %v780 = vsub.f32 %v208, %v713
      %v781 = vsub.f32 %v205, %v714
      %v782 = vsub.f32 %v206, %v714
      %v783 = vsub.f32 %v207, %v714
      %v784 = vsub.f32 %v208, %v714
      %v785 = vsub.f32 %v205, %v715
      %v786 = vsub.f32 %v206, %v715
      %v787 = vsub.f32 %v207, %v715
      %v788 = vsub.f32 %v208, %v715
      %v789 = vsub.f32 %v205, %v716
      %v790 = vsub.f32 %v206, %v716
      %v791 = vsub.f32 %v207, %v716
      %v792 = vsub.f32 %v208, %v716
      %v793 = vsub.f32 %v205, %v717
      %v794 = vsub.f32 %v206, %v717
      %v795 = vsub.f32 %v207, %v717
      %v796 = vsub.f32 %v208, %v717
      %v797 = vsub.f32 %v205, %v718
      %v798 = vsub.f32 %v206, %v718
      %v799 = vsub.f32 %v207, %v718
      %v800 = vsub.f32 %v208, %v718
      %v801 = vsub.f32 %v205, %v719
      %v802 = vsub.f32 %v206, %v719
      %v803 = vsub.f32 %v207, %v719
      %v804 = vsub.f32 %v208, %v719
      %v805 = vsub.f32 %v205, %v720
      %v806 = vsub.f32 %v206, %v720
      %v807 = vsub.f32 %v207, %v720
      %v808 = vsub.f32 %v208, %v720
      %v809 = vsub.f32 %v205, %v721
      %v810 = vsub.f32 %v206, %v721
      %v811 = vsub.f32 %v207, %v721
      %v812 = vsub.f32 %v208, %v721
      %v813 = vsub.f32 %v205, %v722
      %v814 = vsub.f32 %v206, %v722
      %v815 = vsub.f32 %v207, %v722
      %v816 = vsub.f32 %v208, %v722
      %v817 = vsub.f32 %v205, %v723
      %v818 = vsub.f32 %v206, %v723
      %v819 = vsub.f32 %v207, %v723
      %v820 = vsub.f32 %v208, %v723
      %v821 = vsub.f32 %v205, %v724
      %v822 = vsub.f32 %v206, %v724
      %v823 = vsub.f32 %v207, %v724
      %v824 = vsub.f32 %v208, %v724
      %v825 = vsub.f32 %v205, %v725
      %v826 = vsub.f32 %v206, %v725
      %v827 = vsub.f32 %v207, %v725
      %v828 = vsub.f32 %v208, %v725
      %v829 = vsub.f32 %v205, %v726
      %v830 = vsub.f32 %v206, %v726
      %v831 = vsub.f32 %v207, %v726
      %v832 = vsub.f32 %v208, %v726
      %v833 = vsub.f32 %v205, %v727
      %v834 = vsub.f32 %v206, %v727
      %v835 = vsub.f32 %v207, %v727
      %v836 = vsub.f32 %v208, %v727
      %v837 = vsub.f32 %v205, %v728
      %v838 = vsub.f32 %v206, %v728
      %v839 = vsub.f32 %v207, %v728
      %v840 = vsub.f32 %v208, %v728
      %v841 = vmul.f32 %v761, %v761
      %v842 = vmul.f32 %v762, %v762
      %v843 = vmul.f32 %v763, %v763
      %v844 = vmul.f32 %v764, %v764
      %v845 = vmul.f32 %v765, %v765
      %v846 = vmul.f32 %v766, %v766
      %v847 = vmul.f32 %v767, %v767
      %v848 = vmul.f32 %v768, %v768
      %v849 = vmul.f32 %v769, %v769
      %v850 = vmul.f32 %v770, %v770
      %v851 = vmul.f32 %v771, %v771
      %v852 = vmul.f32 %v772, %v772
      %v853 = vmul.f32 %v773, %v773
      %v854 = vmul.f32 %v774, %v774
      %v855 = vmul.f32 %v775, %v775
      %v856 = vmul.f32 %v776, %v776
      %v857 = vmul.f32 %v777, %v777
      %v858 = vmul.f32 %v778, %v778
      %v859 = vmul.f32 %v779, %v779
      %v860 = vmul.f32 %v780, %v780
      %v861 = vmul.f32 %v781, %v781
      %v862 = vmul.f32 %v782, %v782
      %v863 = vmul.f32 %v783, %v783
      %v864 = vmul.f32 %v784, %v784
      %v865 = vmul.f32 %v785, %v785
      %v866 = vmul.f32 %v786, %v786
      %v867 = vmul.f32 %v787, %v787
      %v868 = vmul.f32 %v788, %v788
      %v869 = vmul.f32 %v789, %v789
      %v870 = vmul.f32 %v790, %v790
      %v871 = vmul.f32 %v791, %v791
      %v872 = vmul.f32 %v792, %v792
      %v873 = vmul.f32 %v793, %v793
      %v874 = vmul.f32 %v794, %v794
      %v875 = vmul.f32 %v795, %v795
      %v876 = vmul.f32 %v796, %v796
      %v877 = vmul.f32 %v797, %v797
      %v878 = vmul.f32 %v798, %v798
      %v879 = vmul.f32 %v799, %v799
      %v880 = vmul.f32 %v800, %v800
      %v881 = vmul.f32 %v801, %v801
      %v882 = vmul.f32 %v802, %v802
      %v883 = vmul.f32 %v803, %v803
      %v884 = vmul.f32 %v804, %v804
      %v885 = vmul.f32 %v805, %v805
      %v886 = vmul.f32 %v806, %v806
      %v887 = vmul.f32 %v807, %v807
      %v888 = vmul.f32 %v808, %v808
      %v889 = vmul.f32 %v809, %v809
      %v890 = vmul.f32 %v810, %v810
      %v891 = vmul.f32 %v811, %v811
      %v892 = vmul.f32 %v812, %v812
      %v893 = vmul.f32 %v813, %v813
      %v894 = vmul.f32 %v814, %v814
      %v895 = vmul.f32 %v815, %v815
      %v896 = vmul.f32 %v816, %v816
      %v897 = vmul.f32 %v817, %v817
      %v898 = vmul.f32 %v818, %v818
      %v899 = vmul.f32 %v819, %v819
      %v900 = vmul.f32 %v820, %v820
      %v901 = vmul.f32 %v821, %v821
      %v902 = vmul.f32 %v822, %v822
      %v903 = vmul.f32 %v823, %v823
      %v904 = vmul.f32 %v824, %v824
      %v905 = vmul.f32 %v825, %v825
      %v906 = vmul.f32 %v826, %v826
      %v907 = vmul.f32 %v827, %v827
      %v908 = vmul.f32 %v828, %v828
      %v909 = vmul.f32 %v829, %v829
      %v910 = vmul.f32 %v830, %v830
      %v911 = vmul.f32 %v831, %v831
      %v912 = vmul.f32 %v832, %v832
      %v913 = vmul.f32 %v833, %v833
      %v914 = vmul.f32 %v834, %v834
      %v915 = vmul.f32 %v835, %v835
      %v916 = vmul.f32 %v836, %v836
      %v917 = vmul.f32 %v837, %v837
      %v918 = vmul.f32 %v838, %v838
      %v919 = vmul.f32 %v839, %v839
      %v920 = vmul.f32 %v840, %v840
      %v921 = vadd.f32 %v841, %v857
      %v922 = vadd.f32 %v841, %v858
      %v923 = vadd.f32 %v841, %v859
      %v924 = vadd.f32 %v841, %v860
      %v925 = vadd.f32 %v842, %v861
      %v926 = vadd.f32 %v842, %v862
      %v927 = vadd.f32 %v842, %v863
      %v928 = vadd.f32 %v842, %v864
      %v929 = vadd.f32 %v843, %v865
      %v930 = vadd.f32 %v843, %v866
      %v931 = vadd.f32 %v843, %v867
      %v932 = vadd.f32 %v843, %v868
      %v933 = vadd.f32 %v844, %v869
      %v934 = vadd.f32 %v844, %v870
      %v935 = vadd.f32 %v844, %v871
      %v936 = vadd.f32 %v844, %v872
      %v937 = vadd.f32 %v845, %v873
      %v938 = vadd.f32 %v845, %v874
      %v939 = vadd.f32 %v845, %v875
      %v940 = vadd.f32 %v845, %v876
      %v941 = vadd.f32 %v846, %v877
      %v942 = vadd.f32 %v846, %v878
      %v943 = vadd.f32 %v846, %v879
      %v944 = vadd.f32 %v846, %v880
      %v945 = vadd.f32 %v847, %v881
      %v946 = vadd.f32 %v847, %v882
      %v947 = vadd.f32 %v847, %v883
      %v948 = vadd.f32 %v847, %v884
      %v949 = vadd.f32 %v848, %v885
      %v950 = vadd.f32 %v848, %v886
      %v951 = vadd.f32 %v848, %v887
      %v952 = vadd.f32 %v848, %v888
      %v953 = vadd.f32 %v849, %v889
      %v954 = vadd.f32 %v849, %v890
      %v955 = vadd.f32 %v849, %v891
      %v956 = vadd.f32 %v849, %v892
      %v957 = vadd.f32 %v850, %v893
      %v958 = vadd.f32 %v850, %v894
      %v959 = vadd.f32 %v850, %v895
      %v960 = vadd.f32 %v850, %v896
      %v961 = vadd.f32 %v851, %v897
      %v962 = vadd.f32 %v851, %v898
      %v963 = vadd.f32 %v851, %v899
      %v964 = vadd.f32 %v851, %v900
      %v965 = vadd.f32 %v852, %v901
      %v966 = vadd.f32 %v852, %v902
      %v967 = vadd.f32 %v852, %v903
      %v968 = vadd.f32 %v852, %v904
      %v969 = vadd.f32 %v853, %v905
      %v970 = vadd.f32 %v853, %v906
      %v971 = vadd.f32 %v853, %v907
      %v972 = vadd.f32 %v853, %v908
      %v973 = vadd.f32 %v854, %v909
      %v974 = vadd.f32 %v854, %v910
      %v975 = vadd.f32 %v854, %v911
      %v976 = vadd.f32 %v854, %v912
      %v977 = vadd.f32 %v855, %v913
      %v978 = vadd.f32 %v855, %v914
      %v979 = vadd.f32 %v855, %v915
      %v980 = vadd.f32 %v855, %v916
      %v981 = vadd.f32 %v856, %v917
      %v982 = vadd.f32 %v856, %v918
      %v983 = vadd.f32 %v856, %v919
      %v984 = vadd.f32 %v856, %v920
      %vm985 = vcmp.le.f32.partialorder %v921, 56.25
      %vm986 = vcmp.le.f32.partialorder %v922, 56.25
      %vm987 = vcmp.le.f32.partialorder %v923, 56.25
      %vm988 = vcmp.le.f32.partialorder %v924, 56.25
      %vm989 = vcmp.le.f32.partialorder %v925, 56.25
      %vm990 = vcmp.le.f32.partialorder %v926, 56.25
      %vm991 = vcmp.le.f32.partialorder %v927, 56.25
      %vm992 = vcmp.le.f32.partialorder %v928, 56.25
      %vm993 = vcmp.le.f32.partialorder %v929, 56.25
      %vm994 = vcmp.le.f32.partialorder %v930, 56.25
      %vm995 = vcmp.le.f32.partialorder %v931, 56.25
      %vm996 = vcmp.le.f32.partialorder %v932, 56.25
      %vm997 = vcmp.le.f32.partialorder %v933, 56.25
      %vm998 = vcmp.le.f32.partialorder %v934, 56.25
      %vm999 = vcmp.le.f32.partialorder %v935, 56.25
      %vm1000 = vcmp.le.f32.partialorder %v936, 56.25
      %vm1001 = vcmp.le.f32.partialorder %v937, 56.25
      %vm1002 = vcmp.le.f32.partialorder %v938, 56.25
      %vm1003 = vcmp.le.f32.partialorder %v939, 56.25
      %vm1004 = vcmp.le.f32.partialorder %v940, 56.25
      %vm1005 = vcmp.le.f32.partialorder %v941, 56.25
      %vm1006 = vcmp.le.f32.partialorder %v942, 56.25
      %vm1007 = vcmp.le.f32.partialorder %v943, 56.25
      %vm1008 = vcmp.le.f32.partialorder %v944, 56.25
      %vm1009 = vcmp.le.f32.partialorder %v945, 56.25
      %vm1010 = vcmp.le.f32.partialorder %v946, 56.25
      %vm1011 = vcmp.le.f32.partialorder %v947, 56.25
      %vm1012 = vcmp.le.f32.partialorder %v948, 56.25
      %vm1013 = vcmp.le.f32.partialorder %v949, 56.25
      %vm1014 = vcmp.le.f32.partialorder %v950, 56.25
      %vm1015 = vcmp.le.f32.partialorder %v951, 56.25
      %vm1016 = vcmp.le.f32.partialorder %v952, 56.25
      %vm1017 = vcmp.le.f32.partialorder %v953, 56.25
      %vm1018 = vcmp.le.f32.partialorder %v954, 56.25
      %vm1019 = vcmp.le.f32.partialorder %v955, 56.25
      %vm1020 = vcmp.le.f32.partialorder %v956, 56.25
      %vm1021 = vcmp.le.f32.partialorder %v957, 56.25
      %vm1022 = vcmp.le.f32.partialorder %v958, 56.25
      %vm1023 = vcmp.le.f32.partialorder %v959, 56.25
      %vm1024 = vcmp.le.f32.partialorder %v960, 56.25
      %vm1025 = vcmp.le.f32.partialorder %v961, 56.25
      %vm1026 = vcmp.le.f32.partialorder %v962, 56.25
      %vm1027 = vcmp.le.f32.partialorder %v963, 56.25
      %vm1028 = vcmp.le.f32.partialorder %v964, 56.25
      %vm1029 = vcmp.le.f32.partialorder %v965, 56.25
      %vm1030 = vcmp.le.f32.partialorder %v966, 56.25
      %vm1031 = vcmp.le.f32.partialorder %v967, 56.25
      %vm1032 = vcmp.le.f32.partialorder %v968, 56.25
      %vm1033 = vcmp.le.f32.partialorder %v969, 56.25
      %vm1034 = vcmp.le.f32.partialorder %v970, 56.25
      %vm1035 = vcmp.le.f32.partialorder %v971, 56.25
      %vm1036 = vcmp.le.f32.partialorder %v972, 56.25
      %vm1037 = vcmp.le.f32.partialorder %v973, 56.25
      %vm1038 = vcmp.le.f32.partialorder %v974, 56.25
      %vm1039 = vcmp.le.f32.partialorder %v975, 56.25
      %vm1040 = vcmp.le.f32.partialorder %v976, 56.25
      %vm1041 = vcmp.le.f32.partialorder %v977, 56.25
      %vm1042 = vcmp.le.f32.partialorder %v978, 56.25
      %vm1043 = vcmp.le.f32.partialorder %v979, 56.25
      %vm1044 = vcmp.le.f32.partialorder %v980, 56.25
      %vm1045 = vcmp.le.f32.partialorder %v981, 56.25
      %vm1046 = vcmp.le.f32.partialorder %v982, 56.25
      %vm1047 = vcmp.le.f32.partialorder %v983, 56.25
      %vm1048 = vcmp.le.f32.partialorder %v984, 56.25
      %v1049 = vsub.f32 %v123, %v354
      %v1050 = vsub.f32 %v124, %v354
      %v1051 = vsub.f32 %v125, %v354
      %v1052 = vsub.f32 %v126, %v354
      %v1053 = vsub.f32 %v127, %v356
      %v1054 = vsub.f32 %v128, %v356
      %v1055 = vsub.f32 %v129, %v356
      %v1056 = vsub.f32 %v130, %v356
      %v1057 = vsub.f32 %v131, %v358
      %v1058 = vsub.f32 %v132, %v358
      %v1059 = vsub.f32 %v133, %v358
      %v1060 = vsub.f32 %v134, %v358
      %v1061 = vsub.f32 %v135, %v360
      %v1062 = vsub.f32 %v136, %v360
      %v1063 = vsub.f32 %v137, %v360
      %v1064 = vsub.f32 %v138, %v360
      %v1065 = vsub.f32 %v139, %v362
      %v1066 = vsub.f32 %v140, %v362
      %v1067 = vsub.f32 %v141, %v362
      %v1068 = vsub.f32 %v142, %v362
      %v1069 = vsub.f32 %v143, %v364
      %v1070 = vsub.f32 %v144, %v364
      %v1071 = vsub.f32 %v145, %v364
      %v1072 = vsub.f32 %v146, %v364
      %v1073 = vsub.f32 %v147, %v366
      %v1074 = vsub.f32 %v148, %v366
      %v1075 = vsub.f32 %v149, %v366
      %v1076 = vsub.f32 %v150, %v366
      %v1077 = vsub.f32 %v151, %v368
      %v1078 = vsub.f32 %v152, %v368
      %v1079 = vsub.f32 %v153, %v368
      %v1080 = vsub.f32 %v154, %v368
      %v1081 = vsub.f32 %v155, %v370
      %v1082 = vsub.f32 %v156, %v370
      %v1083 = vsub.f32 %v157, %v370
      %v1084 = vsub.f32 %v158, %v370
      %v1085 = vsub.f32 %v159, %v372
      %v1086 = vsub.f32 %v160, %v372
      %v1087 = vsub.f32 %v161, %v372
      %v1088 = vsub.f32 %v162, %v372
      %v1089 = vsub.f32 %v163, %v374
      %v1090 = vsub.f32 %v164, %v374
      %v1091 = vsub.f32 %v165, %v374
      %v1092 = vsub.f32 %v166, %v374
      %v1093 = vsub.f32 %v167, %v376
      %v1094 = vsub.f32 %v168, %v376
      %v1095 = vsub.f32 %v169, %v376
      %v1096 = vsub.f32 %v170, %v376
      %v1097 = vsub.f32 %v171, %v378
      %v1098 = vsub.f32 %v172, %v378
      %v1099 = vsub.f32 %v173, %v378
      %v1100 = vsub.f32 %v174, %v378
      %v1101 = vsub.f32 %v175, %v380
      %v1102 = vsub.f32 %v176, %v380
      %v1103 = vsub.f32 %v177, %v380
      %v1104 = vsub.f32 %v178, %v380
      %v1105 = vsub.f32 %v179, %v382
      %v1106 = vsub.f32 %v180, %v382
      %v1107 = vsub.f32 %v181, %v382
      %v1108 = vsub.f32 %v182, %v382
      %v1109 = vsub.f32 %v183, %v384
      %v1110 = vsub.f32 %v184, %v384
      %v1111 = vsub.f32 %v185, %v384
      %v1112 = vsub.f32 %v186, %v384
      %v1113 = vmul.f32 %v1049, 20.0
      %v1114 = vmul.f32 %v1050, 20.0
      %v1115 = vmul.f32 %v1051, 20.0
      %v1116 = vmul.f32 %v1052, 20.0
      %v1117 = vmul.f32 %v1053, 20.0
      %v1118 = vmul.f32 %v1054, 20.0
      %v1119 = vmul.f32 %v1055, 20.0
      %v1120 = vmul.f32 %v1056, 20.0
      %v1121 = vmul.f32 %v1057, 20.0
      %v1122 = vmul.f32 %v1058, 20.0
      %v1123 = vmul.f32 %v1059, 20.0
      %v1124 = vmul.f32 %v1060, 20.0
      %v1125 = vmul.f32 %v1061, 20.0
      %v1126 = vmul.f32 %v1062, 20.0
      %v1127 = vmul.f32 %v1063, 20.0
      %v1128 = vmul.f32 %v1064, 20.0
      %v1129 = vmul.f32 %v1065, 20.0
      %v1130 = vmul.f32 %v1066, 20.0
      %v1131 = vmul.f32 %v1067, 20.0
      %v1132 = vmul.f32 %v1068, 20.0
      %v1133 = vmul.f32 %v1069, 20.0
      %v1134 = vmul.f32 %v1070, 20.0
      %v1135 = vmul.f32 %v1071, 20.0
      %v1136 = vmul.f32 %v1072, 20.0
      %v1137 = vmul.f32 %v1073, 20.0
      %v1138 = vmul.f32 %v1074, 20.0
      %v1139 = vmul.f32 %v1075, 20.0
      %v1140 = vmul.f32 %v1076, 20.0
      %v1141 = vmul.f32 %v1077, 20.0
      %v1142 = vmul.f32 %v1078, 20.0
      %v1143 = vmul.f32 %v1079, 20.0
      %v1144 = vmul.f32 %v1080, 20.0
      %v1145 = vmul.f32 %v1081, 20.0
      %v1146 = vmul.f32 %v1082, 20.0
      %v1147 = vmul.f32 %v1083, 20.0
      %v1148 = vmul.f32 %v1084, 20.0
      %v1149 = vmul.f32 %v1085, 20.0
      %v1150 = vmul.f32 %v1086, 20.0
      %v1151 = vmul.f32 %v1087, 20.0
      %v1152 = vmul.f32 %v1088, 20.0
      %v1153 = vmul.f32 %v1089, 20.0
      %v1154 = vmul.f32 %v1090, 20.0
      %v1155 = vmul.f32 %v1091, 20.0
      %v1156 = vmul.f32 %v1092, 20.0
      %v1157 = vmul.f32 %v1093, 20.0
      %v1158 = vmul.f32 %v1094, 20.0
      %v1159 = vmul.f32 %v1095, 20.0
      %v1160 = vmul.f32 %v1096, 20.0
      %v1161 = vmul.f32 %v1097, 20.0
      %v1162 = vmul.f32 %v1098, 20.0
      %v1163 = vmul.f32 %v1099, 20.0
      %v1164 = vmul.f32 %v1100, 20.0
      %v1165 = vmul.f32 %v1101, 20.0
      %v1166 = vmul.f32 %v1102, 20.0
      %v1167 = vmul.f32 %v1103, 20.0
      %v1168 = vmul.f32 %v1104, 20.0
      %v1169 = vmul.f32 %v1105, 20.0
      %v1170 = vmul.f32 %v1106, 20.0
      %v1171 = vmul.f32 %v1107, 20.0
      %v1172 = vmul.f32 %v1108, 20.0
      %v1173 = vmul.f32 %v1109, 20.0
      %v1174 = vmul.f32 %v1110, 20.0
      %v1175 = vmul.f32 %v1111, 20.0
      %v1176 = vmul.f32 %v1112, 20.0
      %v1177 = vmul.f32 %v1113, 1.442695
      %v1178 = vpow.pop %v1177
      %v1179 = vmul.f32 %v1114, 1.442695
      %v1180 = vpow.pop %v1179
      %v1181 = vmul.f32 %v1115, 1.442695
      %v1182 = vpow.pop %v1181
      %v1183 = vmul.f32 %v1116, 1.442695
      %v1184 = vpow.pop %v1183
      %v1185 = vmul.f32 %v1117, 1.442695
      %v1186 = vpow.pop %v1185
      %v1187 = vmul.f32 %v1118, 1.442695
      %v1188 = vpow.pop %v1187
      %v1189 = vmul.f32 %v1119, 1.442695
      %v1190 = vpow.pop %v1189
      %v1191 = vmul.f32 %v1120, 1.442695
      %v1192 = vpow.pop %v1191
      %v1193 = vmul.f32 %v1121, 1.442695
      %v1194 = vpow.pop %v1193
      %v1195 = vmul.f32 %v1122, 1.442695
      %v1196 = vpow.pop %v1195
      %v1197 = vmul.f32 %v1123, 1.442695
      %v1198 = vpow.pop %v1197
      %v1199 = vmul.f32 %v1124, 1.442695
      %v1200 = vpow.pop %v1199
      %v1201 = vmul.f32 %v1125, 1.442695
      %v1202 = vpow.pop %v1201
      %v1203 = vmul.f32 %v1126, 1.442695
      %v1204 = vpow.pop %v1203
      %v1205 = vmul.f32 %v1127, 1.442695
      %v1206 = vpow.pop %v1205
      %v1207 = vmul.f32 %v1128, 1.442695
      %v1208 = vpow.pop %v1207
      %v1209 = vmul.f32 %v1129, 1.442695
      %v1210 = vpow.pop %v1209
      %v1211 = vmul.f32 %v1130, 1.442695
      %v1212 = vpow.pop %v1211
      %v1213 = vmul.f32 %v1131, 1.442695
      %v1214 = vpow.pop %v1213
      %v1215 = vmul.f32 %v1132, 1.442695
      %v1216 = vpow.pop %v1215
      %v1217 = vmul.f32 %v1133, 1.442695
      %v1218 = vpow.pop %v1217
      %v1219 = vmul.f32 %v1134, 1.442695
      %v1220 = vpow.pop %v1219
      %v1221 = vmul.f32 %v1135, 1.442695
      %v1222 = vpow.pop %v1221
      %v1223 = vmul.f32 %v1136, 1.442695
      %v1224 = vpow.pop %v1223
      %v1225 = vmul.f32 %v1137, 1.442695
      %v1226 = vpow.pop %v1225
      %v1227 = vmul.f32 %v1138, 1.442695
      %v1228 = vpow.pop %v1227
      %v1229 = vmul.f32 %v1139, 1.442695
      %v1230 = vpow.pop %v1229
      %v1231 = vmul.f32 %v1140, 1.442695
      %v1232 = vpow.pop %v1231
      %v1233 = vmul.f32 %v1141, 1.442695
      %v1234 = vpow.pop %v1233
      %v1235 = vmul.f32 %v1142, 1.442695
      %v1236 = vpow.pop %v1235
      %v1237 = vmul.f32 %v1143, 1.442695
      %v1238 = vpow.pop %v1237
      %v1239 = vmul.f32 %v1144, 1.442695
      %v1240 = vpow.pop %v1239
      %v1241 = vmul.f32 %v1145, 1.442695
      %v1242 = vpow.pop %v1241
      %v1243 = vmul.f32 %v1146, 1.442695
      %v1244 = vpow.pop %v1243
      %v1245 = vmul.f32 %v1147, 1.442695
      %v1246 = vpow.pop %v1245
      %v1247 = vmul.f32 %v1148, 1.442695
      %v1248 = vpow.pop %v1247
      %v1249 = vmul.f32 %v1149, 1.442695
      %v1250 = vpow.pop %v1249
      %v1251 = vmul.f32 %v1150, 1.442695
      %v1252 = vpow.pop %v1251
      %v1253 = vmul.f32 %v1151, 1.442695
      %v1254 = vpow.pop %v1253
      %v1255 = vmul.f32 %v1152, 1.442695
      %v1256 = vpow.pop %v1255
      %v1257 = vmul.f32 %v1153, 1.442695
      %v1258 = vpow.pop %v1257
      %v1259 = vmul.f32 %v1154, 1.442695
      %v1260 = vpow.pop %v1259
      %v1261 = vmul.f32 %v1155, 1.442695
      %v1262 = vpow.pop %v1261
      %v1263 = vmul.f32 %v1156, 1.442695
      %v1264 = vpow.pop %v1263
      %v1265 = vmul.f32 %v1157, 1.442695
      %v1266 = vpow.pop %v1265
      %v1267 = vmul.f32 %v1158, 1.442695
      %v1268 = vpow.pop %v1267
      %v1269 = vmul.f32 %v1159, 1.442695
      %v1270 = vpow.pop %v1269
      %v1271 = vmul.f32 %v1160, 1.442695
      %v1272 = vpow.pop %v1271
      %v1273 = vmul.f32 %v1161, 1.442695
      %v1274 = vpow.pop %v1273
      %v1275 = vmul.f32 %v1162, 1.442695
      %v1276 = vpow.pop %v1275
      %v1277 = vmul.f32 %v1163, 1.442695
      %v1278 = vpow.pop %v1277
      %v1279 = vmul.f32 %v1164, 1.442695
      %v1280 = vpow.pop %v1279
      %v1281 = vmul.f32 %v1165, 1.442695
      %v1282 = vpow.pop %v1281
      %v1283 = vmul.f32 %v1166, 1.442695
      %v1284 = vpow.pop %v1283
      %v1285 = vmul.f32 %v1167, 1.442695
      %v1286 = vpow.pop %v1285
      %v1287 = vmul.f32 %v1168, 1.442695
      %v1288 = vpow.pop %v1287
      %v1289 = vmul.f32 %v1169, 1.442695
      %v1290 = vpow.pop %v1289
      %v1291 = vmul.f32 %v1170, 1.442695
      %v1292 = vpow.pop %v1291
      %v1293 = vmul.f32 %v1171, 1.442695
      %v1294 = vpow.pop %v1293
      %v1295 = vmul.f32 %v1172, 1.442695
      %v1296 = vpow.pop %v1295
      %v1297 = vmul.f32 %v1173, 1.442695
      %v1298 = vpow.pop %v1297
      %v1299 = vmul.f32 %v1174, 1.442695
      %v1300 = vpow.pop %v1299
      %v1301 = vmul.f32 %v1175, 1.442695
      %v1302 = vpow.pop %v1301
      %v1303 = vmul.f32 %v1176, 1.442695
      %v1304 = vpow.pop %v1303
      %v1305 = vsel %vm985, %v1178, 0.0
      %v1306 = vsel %vm986, %v1180, 0.0
      %v1307 = vsel %vm987, %v1182, 0.0
      %v1308 = vsel %vm988, %v1184, 0.0
      %v1309 = vsel %vm989, %v1186, 0.0
      %v1310 = vsel %vm990, %v1188, 0.0
      %v1311 = vsel %vm991, %v1190, 0.0
      %v1312 = vsel %vm992, %v1192, 0.0
      %v1313 = vsel %vm993, %v1194, 0.0
      %v1314 = vsel %vm994, %v1196, 0.0
      %v1315 = vsel %vm995, %v1198, 0.0
      %v1316 = vsel %vm996, %v1200, 0.0
      %v1317 = vsel %vm997, %v1202, 0.0
      %v1318 = vsel %vm998, %v1204, 0.0
      %v1319 = vsel %vm999, %v1206, 0.0
      %v1320 = vsel %vm1000, %v1208, 0.0
      %v1321 = vsel %vm1001, %v1210, 0.0
      %v1322 = vsel %vm1002, %v1212, 0.0
      %v1323 = vsel %vm1003, %v1214, 0.0
      %v1324 = vsel %vm1004, %v1216, 0.0
      %v1325 = vsel %vm1005, %v1218, 0.0
      %v1326 = vsel %vm1006, %v1220, 0.0
      %v1327 = vsel %vm1007, %v1222, 0.0
      %v1328 = vsel %vm1008, %v1224, 0.0
      %v1329 = vsel %vm1009, %v1226, 0.0
      %v1330 = vsel %vm1010, %v1228, 0.0
      %v1331 = vsel %vm1011, %v1230, 0.0
      %v1332 = vsel %vm1012, %v1232, 0.0
      %v1333 = vsel %vm1013, %v1234, 0.0
      %v1334 = vsel %vm1014, %v1236, 0.0
      %v1335 = vsel %vm1015, %v1238, 0.0
      %v1336 = vsel %vm1016, %v1240, 0.0
      %v1337 = vsel %vm1017, %v1242, 0.0
      %v1338 = vsel %vm1018, %v1244, 0.0
      %v1339 = vsel %vm1019, %v1246, 0.0
      %v1340 = vsel %vm1020, %v1248, 0.0
      %v1341 = vsel %vm1021, %v1250, 0.0
      %v1342 = vsel %vm1022, %v1252, 0.0
      %v1343 = vsel %vm1023, %v1254, 0.0
      %v1344 = vsel %vm1024, %v1256, 0.0
      %v1345 = vsel %vm1025, %v1258, 0.0
      %v1346 = vsel %vm1026, %v1260, 0.0
      %v1347 = vsel %vm1027, %v1262, 0.0
      %v1348 = vsel %vm1028, %v1264, 0.0
      %v1349 = vsel %vm1029, %v1266, 0.0
      %v1350 = vsel %vm1030, %v1268, 0.0
      %v1351 = vsel %vm1031, %v1270, 0.0
      %v1352 = vsel %vm1032, %v1272, 0.0
      %v1353 = vsel %vm1033, %v1274, 0.0
      %v1354 = vsel %vm1034, %v1276, 0.0
      %v1355 = vsel %vm1035, %v1278, 0.0
      %v1356 = vsel %vm1036, %v1280, 0.0
      %v1357 = vsel %vm1037, %v1282, 0.0
      %v1358 = vsel %vm1038, %v1284, 0.0
      %v1359 = vsel %vm1039, %v1286, 0.0
      %v1360 = vsel %vm1040, %v1288, 0.0
      %v1361 = vsel %vm1041, %v1290, 0.0
      %v1362 = vsel %vm1042, %v1292, 0.0
      %v1363 = vsel %vm1043, %v1294, 0.0
      %v1364 = vsel %vm1044, %v1296, 0.0
      %v1365 = vsel %vm1045, %v1298, 0.0
      %v1366 = vsel %vm1046, %v1300, 0.0
      %v1367 = vsel %vm1047, %v1302, 0.0
      %v1368 = vsel %vm1048, %v1304, 0.0
      %v1369 = vadd.f32 %v1305, %v1306
      %v1370 = vadd.f32 %v1369, %v1307
      %v1371 = vadd.f32 %v1370, %v1308
      %v1372 = vrot.slane %v1371, 4
      %v1373 = vadd.f32 %v1371, %v1372
      %v1374 = vrot.slane %v1373, 2
      %v1375 = vadd.f32 %v1373, %v1374
      %v1376 = vrot.slane %v1375, 1
      %v1377 = vadd.f32 %v1375, %v1376
      %v1378 = vadd.f32 %v1309, %v1310
      %v1379 = vadd.f32 %v1378, %v1311
      %v1380 = vadd.f32 %v1379, %v1312
      %v1381 = vrot.slane %v1380, 4
      %v1382 = vadd.f32 %v1380, %v1381
      %v1383 = vrot.slane %v1382, 2
      %v1384 = vadd.f32 %v1382, %v1383
      %v1385 = vrot.slane %v1384, 1
      %v1386 = vadd.f32 %v1384, %v1385
      %v1387 = vadd.f32 %v1313, %v1314
      %v1388 = vadd.f32 %v1387, %v1315
      %v1389 = vadd.f32 %v1388, %v1316
      %v1390 = vrot.slane %v1389, 4
      %v1391 = vadd.f32 %v1389, %v1390
      %v1392 = vrot.slane %v1391, 2
      %v1393 = vadd.f32 %v1391, %v1392
      %v1394 = vrot.slane %v1393, 1
      %v1395 = vadd.f32 %v1393, %v1394
      %v1396 = vadd.f32 %v1317, %v1318
      %v1397 = vadd.f32 %v1396, %v1319
      %v1398 = vadd.f32 %v1397, %v1320
      %v1399 = vrot.slane %v1398, 4
      %v1400 = vadd.f32 %v1398, %v1399
      %v1401 = vrot.slane %v1400, 2
      %v1402 = vadd.f32 %v1400, %v1401
      %v1403 = vrot.slane %v1402, 1
      %v1404 = vadd.f32 %v1402, %v1403
      %v1405 = vadd.f32 %v1321, %v1322
      %v1406 = vadd.f32 %v1405, %v1323
      %v1407 = vadd.f32 %v1406, %v1324
      %v1408 = vrot.slane %v1407, 4
      %v1409 = vadd.f32 %v1407, %v1408
      %v1410 = vrot.slane %v1409, 2
      %v1411 = vadd.f32 %v1409, %v1410
      %v1412 = vrot.slane %v1411, 1
      %v1413 = vadd.f32 %v1411, %v1412
      %v1414 = vadd.f32 %v1325, %v1326
      %v1415 = vadd.f32 %v1414, %v1327
      %v1416 = vadd.f32 %v1415, %v1328
      %v1417 = vrot.slane %v1416, 4
      %v1418 = vadd.f32 %v1416, %v1417
      %v1419 = vrot.slane %v1418, 2
      %v1420 = vadd.f32 %v1418, %v1419
      %v1421 = vrot.slane %v1420, 1
      %v1422 = vadd.f32 %v1420, %v1421
      %v1423 = vadd.f32 %v1329, %v1330
      %v1424 = vadd.f32 %v1423, %v1331
      %v1425 = vadd.f32 %v1424, %v1332
      %v1426 = vrot.slane %v1425, 4
      %v1427 = vadd.f32 %v1425, %v1426
      %v1428 = vrot.slane %v1427, 2
      %v1429 = vadd.f32 %v1427, %v1428
      %v1430 = vrot.slane %v1429, 1
      %v1431 = vadd.f32 %v1429, %v1430
      %v1432 = vadd.f32 %v1333, %v1334
      %v1433 = vadd.f32 %v1432, %v1335
      %v1434 = vadd.f32 %v1433, %v1336
      %v1435 = vrot.slane %v1434, 4
      %v1436 = vadd.f32 %v1434, %v1435
      %v1437 = vrot.slane %v1436, 2
      %v1438 = vadd.f32 %v1436, %v1437
      %v1439 = vrot.slane %v1438, 1
      %v1440 = vadd.f32 %v1438, %v1439
      %v1441 = vadd.f32 %v1337, %v1338
      %v1442 = vadd.f32 %v1441, %v1339
      %v1443 = vadd.f32 %v1442, %v1340
      %v1444 = vrot.slane %v1443, 4
      %v1445 = vadd.f32 %v1443, %v1444
      %v1446 = vrot.slane %v1445, 2
      %v1447 = vadd.f32 %v1445, %v1446
      %v1448 = vrot.slane %v1447, 1
      %v1449 = vadd.f32 %v1447, %v1448
      %v1450 = vadd.f32 %v1341, %v1342
      %v1451 = vadd.f32 %v1450, %v1343
      %v1452 = vadd.f32 %v1451, %v1344
      %v1453 = vrot.slane %v1452, 4
      %v1454 = vadd.f32 %v1452, %v1453
      %v1455 = vrot.slane %v1454, 2
      %v1456 = vadd.f32 %v1454, %v1455
      %v1457 = vrot.slane %v1456, 1
      %v1458 = vadd.f32 %v1456, %v1457
      %v1459 = vadd.f32 %v1345, %v1346
      %v1460 = vadd.f32 %v1459, %v1347
      %v1461 = vadd.f32 %v1460, %v1348
      %v1462 = vrot.slane %v1461, 4
      %v1463 = vadd.f32 %v1461, %v1462
      %v1464 = vrot.slane %v1463, 2
      %v1465 = vadd.f32 %v1463, %v1464
      %v1466 = vrot.slane %v1465, 1
      %v1467 = vadd.f32 %v1465, %v1466
      %v1468 = vadd.f32 %v1349, %v1350
      %v1469 = vadd.f32 %v1468, %v1351
      %v1470 = vadd.f32 %v1469, %v1352
      %v1471 = vrot.slane %v1470, 4
      %v1472 = vadd.f32 %v1470, %v1471
      %v1473 = vrot.slane %v1472, 2
      %v1474 = vadd.f32 %v1472, %v1473
      %v1475 = vrot.slane %v1474, 1
      %v1476 = vadd.f32 %v1474, %v1475
      %v1477 = vadd.f32 %v1353, %v1354
      %v1478 = vadd.f32 %v1477, %v1355
      %v1479 = vadd.f32 %v1478, %v1356
      %v1480 = vrot.slane %v1479, 4
      %v1481 = vadd.f32 %v1479, %v1480
      %v1482 = vrot.slane %v1481, 2
      %v1483 = vadd.f32 %v1481, %v1482
      %v1484 = vrot.slane %v1483, 1
      %v1485 = vadd.f32 %v1483, %v1484
      %v1486 = vadd.f32 %v1357, %v1358
      %v1487 = vadd.f32 %v1486, %v1359
      %v1488 = vadd.f32 %v1487, %v1360
      %v1489 = vrot.slane %v1488, 4
      %v1490 = vadd.f32 %v1488, %v1489
      %v1491 = vrot.slane %v1490, 2
      %v1492 = vadd.f32 %v1490, %v1491
      %v1493 = vrot.slane %v1492, 1
      %v1494 = vadd.f32 %v1492, %v1493
      %v1495 = vadd.f32 %v1361, %v1362
      %v1496 = vadd.f32 %v1495, %v1363
      %v1497 = vadd.f32 %v1496, %v1364
      %v1498 = vrot.slane %v1497, 4
      %v1499 = vadd.f32 %v1497, %v1498
      %v1500 = vrot.slane %v1499, 2
      %v1501 = vadd.f32 %v1499, %v1500
      %v1502 = vrot.slane %v1501, 1
      %v1503 = vadd.f32 %v1501, %v1502
      %v1504 = vadd.f32 %v1365, %v1366
      %v1505 = vadd.f32 %v1504, %v1367
      %v1506 = vadd.f32 %v1505, %v1368
      %v1507 = vrot.slane %v1506, 4
      %v1508 = vadd.f32 %v1506, %v1507
      %v1509 = vrot.slane %v1508, 2
      %v1510 = vadd.f32 %v1508, %v1509
      %v1511 = vrot.slane %v1510, 1
      %v1512 = vadd.f32 %v1510, %v1511
      %1513 = vadd.xlane.f32.xlu0 %v1377
      %v1514 = vpop.xlane.xlu0 %1513
      %1515 = vadd.xlane.f32.xlu0 %v1386
      %v1516 = vpop.xlane.xlu0 %1515
      %1517 = vadd.xlane.f32.xlu0 %v1395
      %v1518 = vpop.xlane.xlu0 %1517
      %1519 = vadd.xlane.f32.xlu0 %v1404
      %v1520 = vpop.xlane.xlu0 %1519
      %1521 = vadd.xlane.f32.xlu0 %v1413
      %v1522 = vpop.xlane.xlu0 %1521
      %1523 = vadd.xlane.f32.xlu0 %v1422
      %v1524 = vpop.xlane.xlu0 %1523
      %1525 = vadd.xlane.f32.xlu0 %v1431
      %v1526 = vpop.xlane.xlu0 %1525
      %1527 = vadd.xlane.f32.xlu0 %v1440
      %v1528 = vpop.xlane.xlu0 %1527
      %1529 = vadd.xlane.f32.xlu0 %v1449
      %v1530 = vpop.xlane.xlu0 %1529
      %1531 = vadd.xlane.f32.xlu0 %v1458
      %v1532 = vpop.xlane.xlu0 %1531
      %1533 = vadd.xlane.f32.xlu0 %v1467
      %v1534 = vpop.xlane.xlu0 %1533
      %1535 = vadd.xlane.f32.xlu0 %v1476
      %v1536 = vpop.xlane.xlu0 %1535
      %1537 = vadd.xlane.f32.xlu0 %v1485
      %v1538 = vpop.xlane.xlu0 %1537
      %1539 = vadd.xlane.f32.xlu0 %v1494
      %v1540 = vpop.xlane.xlu0 %1539
      %1541 = vadd.xlane.f32.xlu0 %v1503
      %v1542 = vpop.xlane.xlu0 %1541
      %1543 = vadd.xlane.f32.xlu0 %v1512
      %v1544 = vpop.xlane.xlu0 %1543
      %v1545 = vrcp.pop %v1514
      %v1546 = vrcp.pop %v1516
      %v1547 = vrcp.pop %v1518
      %v1548 = vrcp.pop %v1520
      %v1549 = vrcp.pop %v1522
      %v1550 = vrcp.pop %v1524
      %v1551 = vrcp.pop %v1526
      %v1552 = vrcp.pop %v1528
      %v1553 = vrcp.pop %v1530
      %v1554 = vrcp.pop %v1532
      %v1555 = vrcp.pop %v1534
      %v1556 = vrcp.pop %v1536
      %v1557 = vrcp.pop %v1538
      %v1558 = vrcp.pop %v1540
      %v1559 = vrcp.pop %v1542
      %v1560 = vrcp.pop %v1544
      %v1561 = vmul.f32 %v1305, %v195
      %v1562 = vmul.f32 %v1306, %v195
      %v1563 = vmul.f32 %v1307, %v195
      %v1564 = vmul.f32 %v1308, %v195
      %v1565 = vmul.f32 %v1309, %v195
      %v1566 = vmul.f32 %v1310, %v195
      %v1567 = vmul.f32 %v1311, %v195
      %v1568 = vmul.f32 %v1312, %v195
      %v1569 = vmul.f32 %v1313, %v195
      %v1570 = vmul.f32 %v1314, %v195
      %v1571 = vmul.f32 %v1315, %v195
      %v1572 = vmul.f32 %v1316, %v195
      %v1573 = vmul.f32 %v1317, %v195
      %v1574 = vmul.f32 %v1318, %v195
      %v1575 = vmul.f32 %v1319, %v195
      %v1576 = vmul.f32 %v1320, %v195
      %v1577 = vmul.f32 %v1321, %v195
      %v1578 = vmul.f32 %v1322, %v195
      %v1579 = vmul.f32 %v1323, %v195
      %v1580 = vmul.f32 %v1324, %v195
      %v1581 = vmul.f32 %v1325, %v195
      %v1582 = vmul.f32 %v1326, %v195
      %v1583 = vmul.f32 %v1327, %v195
      %v1584 = vmul.f32 %v1328, %v195
      %v1585 = vmul.f32 %v1329, %v195
      %v1586 = vmul.f32 %v1330, %v195
      %v1587 = vmul.f32 %v1331, %v195
      %v1588 = vmul.f32 %v1332, %v195
      %v1589 = vmul.f32 %v1333, %v195
      %v1590 = vmul.f32 %v1334, %v195
      %v1591 = vmul.f32 %v1335, %v195
      %v1592 = vmul.f32 %v1336, %v195
      %v1593 = vmul.f32 %v1337, %v195
      %v1594 = vmul.f32 %v1338, %v195
      %v1595 = vmul.f32 %v1339, %v195
      %v1596 = vmul.f32 %v1340, %v195
      %v1597 = vmul.f32 %v1341, %v195
      %v1598 = vmul.f32 %v1342, %v195
      %v1599 = vmul.f32 %v1343, %v195
      %v1600 = vmul.f32 %v1344, %v195
      %v1601 = vmul.f32 %v1345, %v195
      %v1602 = vmul.f32 %v1346, %v195
      %v1603 = vmul.f32 %v1347, %v195
      %v1604 = vmul.f32 %v1348, %v195
      %v1605 = vmul.f32 %v1349, %v195
      %v1606 = vmul.f32 %v1350, %v195
      %v1607 = vmul.f32 %v1351, %v195
      %v1608 = vmul.f32 %v1352, %v195
      %v1609 = vmul.f32 %v1353, %v195
      %v1610 = vmul.f32 %v1354, %v195
      %v1611 = vmul.f32 %v1355, %v195
      %v1612 = vmul.f32 %v1356, %v195
      %v1613 = vmul.f32 %v1357, %v195
      %v1614 = vmul.f32 %v1358, %v195
      %v1615 = vmul.f32 %v1359, %v195
      %v1616 = vmul.f32 %v1360, %v195
      %v1617 = vmul.f32 %v1361, %v195
      %v1618 = vmul.f32 %v1362, %v195
      %v1619 = vmul.f32 %v1363, %v195
      %v1620 = vmul.f32 %v1364, %v195
      %v1621 = vmul.f32 %v1365, %v195
      %v1622 = vmul.f32 %v1366, %v195
      %v1623 = vmul.f32 %v1367, %v195
      %v1624 = vmul.f32 %v1368, %v195
      %v1625 = vadd.f32 %v1561, %v1562
      %v1626 = vadd.f32 %v1625, %v1563
      %v1627 = vadd.f32 %v1626, %v1564
      %v1628 = vrot.slane %v1627, 4
      %v1629 = vadd.f32 %v1627, %v1628
      %v1630 = vrot.slane %v1629, 2
      %v1631 = vadd.f32 %v1629, %v1630
      %v1632 = vrot.slane %v1631, 1
      %v1633 = vadd.f32 %v1631, %v1632
      %v1634 = vadd.f32 %v1565, %v1566
      %v1635 = vadd.f32 %v1634, %v1567
      %v1636 = vadd.f32 %v1635, %v1568
      %v1637 = vrot.slane %v1636, 4
      %v1638 = vadd.f32 %v1636, %v1637
      %v1639 = vrot.slane %v1638, 2
      %v1640 = vadd.f32 %v1638, %v1639
      %v1641 = vrot.slane %v1640, 1
      %v1642 = vadd.f32 %v1640, %v1641
      %v1643 = vadd.f32 %v1569, %v1570
      %v1644 = vadd.f32 %v1643, %v1571
      %v1645 = vadd.f32 %v1644, %v1572
      %v1646 = vrot.slane %v1645, 4
      %v1647 = vadd.f32 %v1645, %v1646
      %v1648 = vrot.slane %v1647, 2
      %v1649 = vadd.f32 %v1647, %v1648
      %v1650 = vrot.slane %v1649, 1
      %v1651 = vadd.f32 %v1649, %v1650
      %v1652 = vadd.f32 %v1573, %v1574
      %v1653 = vadd.f32 %v1652, %v1575
      %v1654 = vadd.f32 %v1653, %v1576
      %v1655 = vrot.slane %v1654, 4
      %v1656 = vadd.f32 %v1654, %v1655
      %v1657 = vrot.slane %v1656, 2
      %v1658 = vadd.f32 %v1656, %v1657
      %v1659 = vrot.slane %v1658, 1
      %v1660 = vadd.f32 %v1658, %v1659
      %v1661 = vadd.f32 %v1577, %v1578
      %v1662 = vadd.f32 %v1661, %v1579
      %v1663 = vadd.f32 %v1662, %v1580
      %v1664 = vrot.slane %v1663, 4
      %v1665 = vadd.f32 %v1663, %v1664
      %v1666 = vrot.slane %v1665, 2
      %v1667 = vadd.f32 %v1665, %v1666
      %v1668 = vrot.slane %v1667, 1
      %v1669 = vadd.f32 %v1667, %v1668
      %v1670 = vadd.f32 %v1581, %v1582
      %v1671 = vadd.f32 %v1670, %v1583
      %v1672 = vadd.f32 %v1671, %v1584
      %v1673 = vrot.slane %v1672, 4
      %v1674 = vadd.f32 %v1672, %v1673
      %v1675 = vrot.slane %v1674, 2
      %v1676 = vadd.f32 %v1674, %v1675
      %v1677 = vrot.slane %v1676, 1
      %v1678 = vadd.f32 %v1676, %v1677
      %v1679 = vadd.f32 %v1585, %v1586
      %v1680 = vadd.f32 %v1679, %v1587
      %v1681 = vadd.f32 %v1680, %v1588
      %v1682 = vrot.slane %v1681, 4
      %v1683 = vadd.f32 %v1681, %v1682
      %v1684 = vrot.slane %v1683, 2
      %v1685 = vadd.f32 %v1683, %v1684
      %v1686 = vrot.slane %v1685, 1
      %v1687 = vadd.f32 %v1685, %v1686
      %v1688 = vadd.f32 %v1589, %v1590
      %v1689 = vadd.f32 %v1688, %v1591
      %v1690 = vadd.f32 %v1689, %v1592
      %v1691 = vrot.slane %v1690, 4
      %v1692 = vadd.f32 %v1690, %v1691
      %v1693 = vrot.slane %v1692, 2
      %v1694 = vadd.f32 %v1692, %v1693
      %v1695 = vrot.slane %v1694, 1
      %v1696 = vadd.f32 %v1694, %v1695
      %v1697 = vadd.f32 %v1593, %v1594
      %v1698 = vadd.f32 %v1697, %v1595
      %v1699 = vadd.f32 %v1698, %v1596
      %v1700 = vrot.slane %v1699, 4
      %v1701 = vadd.f32 %v1699, %v1700
      %v1702 = vrot.slane %v1701, 2
      %v1703 = vadd.f32 %v1701, %v1702
      %v1704 = vrot.slane %v1703, 1
      %v1705 = vadd.f32 %v1703, %v1704
      %v1706 = vadd.f32 %v1597, %v1598
      %v1707 = vadd.f32 %v1706, %v1599
      %v1708 = vadd.f32 %v1707, %v1600
      %v1709 = vrot.slane %v1708, 4
      %v1710 = vadd.f32 %v1708, %v1709
      %v1711 = vrot.slane %v1710, 2
      %v1712 = vadd.f32 %v1710, %v1711
      %v1713 = vrot.slane %v1712, 1
      %v1714 = vadd.f32 %v1712, %v1713
      %v1715 = vadd.f32 %v1601, %v1602
      %v1716 = vadd.f32 %v1715, %v1603
      %v1717 = vadd.f32 %v1716, %v1604
      %v1718 = vrot.slane %v1717, 4
      %v1719 = vadd.f32 %v1717, %v1718
      %v1720 = vrot.slane %v1719, 2
      %v1721 = vadd.f32 %v1719, %v1720
      %v1722 = vrot.slane %v1721, 1
      %v1723 = vadd.f32 %v1721, %v1722
      %v1724 = vadd.f32 %v1605, %v1606
      %v1725 = vadd.f32 %v1724, %v1607
      %v1726 = vadd.f32 %v1725, %v1608
      %v1727 = vrot.slane %v1726, 4
      %v1728 = vadd.f32 %v1726, %v1727
      %v1729 = vrot.slane %v1728, 2
      %v1730 = vadd.f32 %v1728, %v1729
      %v1731 = vrot.slane %v1730, 1
      %v1732 = vadd.f32 %v1730, %v1731
      %v1733 = vadd.f32 %v1609, %v1610
      %v1734 = vadd.f32 %v1733, %v1611
      %v1735 = vadd.f32 %v1734, %v1612
      %v1736 = vrot.slane %v1735, 4
      %v1737 = vadd.f32 %v1735, %v1736
      %v1738 = vrot.slane %v1737, 2
      %v1739 = vadd.f32 %v1737, %v1738
      %v1740 = vrot.slane %v1739, 1
      %v1741 = vadd.f32 %v1739, %v1740
      %v1742 = vadd.f32 %v1613, %v1614
      %v1743 = vadd.f32 %v1742, %v1615
      %v1744 = vadd.f32 %v1743, %v1616
      %v1745 = vrot.slane %v1744, 4
      %v1746 = vadd.f32 %v1744, %v1745
      %v1747 = vrot.slane %v1746, 2
      %v1748 = vadd.f32 %v1746, %v1747
      %v1749 = vrot.slane %v1748, 1
      %v1750 = vadd.f32 %v1748, %v1749
      %v1751 = vadd.f32 %v1617, %v1618
      %v1752 = vadd.f32 %v1751, %v1619
      %v1753 = vadd.f32 %v1752, %v1620
      %v1754 = vrot.slane %v1753, 4
      %v1755 = vadd.f32 %v1753, %v1754
      %v1756 = vrot.slane %v1755, 2
      %v1757 = vadd.f32 %v1755, %v1756
      %v1758 = vrot.slane %v1757, 1
      %v1759 = vadd.f32 %v1757, %v1758
      %v1760 = vadd.f32 %v1621, %v1622
      %v1761 = vadd.f32 %v1760, %v1623
      %v1762 = vadd.f32 %v1761, %v1624
      %v1763 = vrot.slane %v1762, 4
      %v1764 = vadd.f32 %v1762, %v1763
      %v1765 = vrot.slane %v1764, 2
      %v1766 = vadd.f32 %v1764, %v1765
      %v1767 = vrot.slane %v1766, 1
      %v1768 = vadd.f32 %v1766, %v1767
      %1769 = vadd.xlane.f32.xlu0 %v1633
      %v1770 = vpop.xlane.xlu0 %1769
      %1771 = vadd.xlane.f32.xlu0 %v1642
      %v1772 = vpop.xlane.xlu0 %1771
      %1773 = vadd.xlane.f32.xlu0 %v1651
      %v1774 = vpop.xlane.xlu0 %1773
      %1775 = vadd.xlane.f32.xlu0 %v1660
      %v1776 = vpop.xlane.xlu0 %1775
      %1777 = vadd.xlane.f32.xlu0 %v1669
      %v1778 = vpop.xlane.xlu0 %1777
      %1779 = vadd.xlane.f32.xlu0 %v1678
      %v1780 = vpop.xlane.xlu0 %1779
      %1781 = vadd.xlane.f32.xlu0 %v1687
      %v1782 = vpop.xlane.xlu0 %1781
      %1783 = vadd.xlane.f32.xlu0 %v1696
      %v1784 = vpop.xlane.xlu0 %1783
      %1785 = vadd.xlane.f32.xlu0 %v1705
      %v1786 = vpop.xlane.xlu0 %1785
      %1787 = vadd.xlane.f32.xlu0 %v1714
      %v1788 = vpop.xlane.xlu0 %1787
      %1789 = vadd.xlane.f32.xlu0 %v1723
      %v1790 = vpop.xlane.xlu0 %1789
      %1791 = vadd.xlane.f32.xlu0 %v1732
      %v1792 = vpop.xlane.xlu0 %1791
      %1793 = vadd.xlane.f32.xlu0 %v1741
      %v1794 = vpop.xlane.xlu0 %1793
      %1795 = vadd.xlane.f32.xlu0 %v1750
      %v1796 = vpop.xlane.xlu0 %1795
      %1797 = vadd.xlane.f32.xlu0 %v1759
      %v1798 = vpop.xlane.xlu0 %1797
      %1799 = vadd.xlane.f32.xlu0 %v1768
      %v1800 = vpop.xlane.xlu0 %1799
      %v1801 = vmul.f32 %v1770, %v1545
      %v1802 = vmul.f32 %v1772, %v1546
      %v1803 = vmul.f32 %v1774, %v1547
      %v1804 = vmul.f32 %v1776, %v1548
      %v1805 = vmul.f32 %v1778, %v1549
      %v1806 = vmul.f32 %v1780, %v1550
      %v1807 = vmul.f32 %v1782, %v1551
      %v1808 = vmul.f32 %v1784, %v1552
      %v1809 = vmul.f32 %v1786, %v1553
      %v1810 = vmul.f32 %v1788, %v1554
      %v1811 = vmul.f32 %v1790, %v1555
      %v1812 = vmul.f32 %v1792, %v1556
      %v1813 = vmul.f32 %v1794, %v1557
      %v1814 = vmul.f32 %v1796, %v1558
      %v1815 = vmul.f32 %v1798, %v1559
      %v1816 = vmul.f32 %v1800, %v1560
      %v1817 = vmul.f32 %v1305, %v205
      %v1818 = vmul.f32 %v1306, %v206
      %v1819 = vmul.f32 %v1307, %v207
      %v1820 = vmul.f32 %v1308, %v208
      %v1821 = vmul.f32 %v1309, %v205
      %v1822 = vmul.f32 %v1310, %v206
      %v1823 = vmul.f32 %v1311, %v207
      %v1824 = vmul.f32 %v1312, %v208
      %v1825 = vmul.f32 %v1313, %v205
      %v1826 = vmul.f32 %v1314, %v206
      %v1827 = vmul.f32 %v1315, %v207
      %v1828 = vmul.f32 %v1316, %v208
      %v1829 = vmul.f32 %v1317, %v205
      %v1830 = vmul.f32 %v1318, %v206
      %v1831 = vmul.f32 %v1319, %v207
      %v1832 = vmul.f32 %v1320, %v208
      %v1833 = vmul.f32 %v1321, %v205
      %v1834 = vmul.f32 %v1322, %v206
      %v1835 = vmul.f32 %v1323, %v207
      %v1836 = vmul.f32 %v1324, %v208
      %v1837 = vmul.f32 %v1325, %v205
      %v1838 = vmul.f32 %v1326, %v206
      %v1839 = vmul.f32 %v1327, %v207
      %v1840 = vmul.f32 %v1328, %v208
      %v1841 = vmul.f32 %v1329, %v205
      %v1842 = vmul.f32 %v1330, %v206
      %v1843 = vmul.f32 %v1331, %v207
      %v1844 = vmul.f32 %v1332, %v208
      %v1845 = vmul.f32 %v1333, %v205
      %v1846 = vmul.f32 %v1334, %v206
      %v1847 = vmul.f32 %v1335, %v207
      %v1848 = vmul.f32 %v1336, %v208
      %v1849 = vmul.f32 %v1337, %v205
      %v1850 = vmul.f32 %v1338, %v206
      %v1851 = vmul.f32 %v1339, %v207
      %v1852 = vmul.f32 %v1340, %v208
      %v1853 = vmul.f32 %v1341, %v205
      %v1854 = vmul.f32 %v1342, %v206
      %v1855 = vmul.f32 %v1343, %v207
      %v1856 = vmul.f32 %v1344, %v208
      %v1857 = vmul.f32 %v1345, %v205
      %v1858 = vmul.f32 %v1346, %v206
      %v1859 = vmul.f32 %v1347, %v207
      %v1860 = vmul.f32 %v1348, %v208
      %v1861 = vmul.f32 %v1349, %v205
      %v1862 = vmul.f32 %v1350, %v206
      %v1863 = vmul.f32 %v1351, %v207
      %v1864 = vmul.f32 %v1352, %v208
      %v1865 = vmul.f32 %v1353, %v205
      %v1866 = vmul.f32 %v1354, %v206
      %v1867 = vmul.f32 %v1355, %v207
      %v1868 = vmul.f32 %v1356, %v208
      %v1869 = vmul.f32 %v1357, %v205
      %v1870 = vmul.f32 %v1358, %v206
      %v1871 = vmul.f32 %v1359, %v207
      %v1872 = vmul.f32 %v1360, %v208
      %v1873 = vmul.f32 %v1361, %v205
      %v1874 = vmul.f32 %v1362, %v206
      %v1875 = vmul.f32 %v1363, %v207
      %v1876 = vmul.f32 %v1364, %v208
      %v1877 = vmul.f32 %v1365, %v205
      %v1878 = vmul.f32 %v1366, %v206
      %v1879 = vmul.f32 %v1367, %v207
      %v1880 = vmul.f32 %v1368, %v208
      %v1881 = vadd.f32 %v1817, %v1818
      %v1882 = vadd.f32 %v1881, %v1819
      %v1883 = vadd.f32 %v1882, %v1820
      %v1884 = vrot.slane %v1883, 4
      %v1885 = vadd.f32 %v1883, %v1884
      %v1886 = vrot.slane %v1885, 2
      %v1887 = vadd.f32 %v1885, %v1886
      %v1888 = vrot.slane %v1887, 1
      %v1889 = vadd.f32 %v1887, %v1888
      %v1890 = vadd.f32 %v1821, %v1822
      %v1891 = vadd.f32 %v1890, %v1823
      %v1892 = vadd.f32 %v1891, %v1824
      %v1893 = vrot.slane %v1892, 4
      %v1894 = vadd.f32 %v1892, %v1893
      %v1895 = vrot.slane %v1894, 2
      %v1896 = vadd.f32 %v1894, %v1895
      %v1897 = vrot.slane %v1896, 1
      %v1898 = vadd.f32 %v1896, %v1897
      %v1899 = vadd.f32 %v1825, %v1826
      %v1900 = vadd.f32 %v1899, %v1827
      %v1901 = vadd.f32 %v1900, %v1828
      %v1902 = vrot.slane %v1901, 4
      %v1903 = vadd.f32 %v1901, %v1902
      %v1904 = vrot.slane %v1903, 2
      %v1905 = vadd.f32 %v1903, %v1904
      %v1906 = vrot.slane %v1905, 1
      %v1907 = vadd.f32 %v1905, %v1906
      %v1908 = vadd.f32 %v1829, %v1830
      %v1909 = vadd.f32 %v1908, %v1831
      %v1910 = vadd.f32 %v1909, %v1832
      %v1911 = vrot.slane %v1910, 4
      %v1912 = vadd.f32 %v1910, %v1911
      %v1913 = vrot.slane %v1912, 2
      %v1914 = vadd.f32 %v1912, %v1913
      %v1915 = vrot.slane %v1914, 1
      %v1916 = vadd.f32 %v1914, %v1915
      %v1917 = vadd.f32 %v1833, %v1834
      %v1918 = vadd.f32 %v1917, %v1835
      %v1919 = vadd.f32 %v1918, %v1836
      %v1920 = vrot.slane %v1919, 4
      %v1921 = vadd.f32 %v1919, %v1920
      %v1922 = vrot.slane %v1921, 2
      %v1923 = vadd.f32 %v1921, %v1922
      %v1924 = vrot.slane %v1923, 1
      %v1925 = vadd.f32 %v1923, %v1924
      %v1926 = vadd.f32 %v1837, %v1838
      %v1927 = vadd.f32 %v1926, %v1839
      %v1928 = vadd.f32 %v1927, %v1840
      %v1929 = vrot.slane %v1928, 4
      %v1930 = vadd.f32 %v1928, %v1929
      %v1931 = vrot.slane %v1930, 2
      %v1932 = vadd.f32 %v1930, %v1931
      %v1933 = vrot.slane %v1932, 1
      %v1934 = vadd.f32 %v1932, %v1933
      %v1935 = vadd.f32 %v1841, %v1842
      %v1936 = vadd.f32 %v1935, %v1843
      %v1937 = vadd.f32 %v1936, %v1844
      %v1938 = vrot.slane %v1937, 4
      %v1939 = vadd.f32 %v1937, %v1938
      %v1940 = vrot.slane %v1939, 2
      %v1941 = vadd.f32 %v1939, %v1940
      %v1942 = vrot.slane %v1941, 1
      %v1943 = vadd.f32 %v1941, %v1942
      %v1944 = vadd.f32 %v1845, %v1846
      %v1945 = vadd.f32 %v1944, %v1847
      %v1946 = vadd.f32 %v1945, %v1848
      %v1947 = vrot.slane %v1946, 4
      %v1948 = vadd.f32 %v1946, %v1947
      %v1949 = vrot.slane %v1948, 2
      %v1950 = vadd.f32 %v1948, %v1949
      %v1951 = vrot.slane %v1950, 1
      %v1952 = vadd.f32 %v1950, %v1951
      %v1953 = vadd.f32 %v1849, %v1850
      %v1954 = vadd.f32 %v1953, %v1851
      %v1955 = vadd.f32 %v1954, %v1852
      %v1956 = vrot.slane %v1955, 4
      %v1957 = vadd.f32 %v1955, %v1956
      %v1958 = vrot.slane %v1957, 2
      %v1959 = vadd.f32 %v1957, %v1958
      %v1960 = vrot.slane %v1959, 1
      %v1961 = vadd.f32 %v1959, %v1960
      %v1962 = vadd.f32 %v1853, %v1854
      %v1963 = vadd.f32 %v1962, %v1855
      %v1964 = vadd.f32 %v1963, %v1856
      %v1965 = vrot.slane %v1964, 4
      %v1966 = vadd.f32 %v1964, %v1965
      %v1967 = vrot.slane %v1966, 2
      %v1968 = vadd.f32 %v1966, %v1967
      %v1969 = vrot.slane %v1968, 1
      %v1970 = vadd.f32 %v1968, %v1969
      %v1971 = vadd.f32 %v1857, %v1858
      %v1972 = vadd.f32 %v1971, %v1859
      %v1973 = vadd.f32 %v1972, %v1860
      %v1974 = vrot.slane %v1973, 4
      %v1975 = vadd.f32 %v1973, %v1974
      %v1976 = vrot.slane %v1975, 2
      %v1977 = vadd.f32 %v1975, %v1976
      %v1978 = vrot.slane %v1977, 1
      %v1979 = vadd.f32 %v1977, %v1978
      %v1980 = vadd.f32 %v1861, %v1862
      %v1981 = vadd.f32 %v1980, %v1863
      %v1982 = vadd.f32 %v1981, %v1864
      %v1983 = vrot.slane %v1982, 4
      %v1984 = vadd.f32 %v1982, %v1983
      %v1985 = vrot.slane %v1984, 2
      %v1986 = vadd.f32 %v1984, %v1985
      %v1987 = vrot.slane %v1986, 1
      %v1988 = vadd.f32 %v1986, %v1987
      %v1989 = vadd.f32 %v1865, %v1866
      %v1990 = vadd.f32 %v1989, %v1867
      %v1991 = vadd.f32 %v1990, %v1868
      %v1992 = vrot.slane %v1991, 4
      %v1993 = vadd.f32 %v1991, %v1992
      %v1994 = vrot.slane %v1993, 2
      %v1995 = vadd.f32 %v1993, %v1994
      %v1996 = vrot.slane %v1995, 1
      %v1997 = vadd.f32 %v1995, %v1996
      %v1998 = vadd.f32 %v1869, %v1870
      %v1999 = vadd.f32 %v1998, %v1871
      %v2000 = vadd.f32 %v1999, %v1872
      %v2001 = vrot.slane %v2000, 4
      %v2002 = vadd.f32 %v2000, %v2001
      %v2003 = vrot.slane %v2002, 2
      %v2004 = vadd.f32 %v2002, %v2003
      %v2005 = vrot.slane %v2004, 1
      %v2006 = vadd.f32 %v2004, %v2005
      %v2007 = vadd.f32 %v1873, %v1874
      %v2008 = vadd.f32 %v2007, %v1875
      %v2009 = vadd.f32 %v2008, %v1876
      %v2010 = vrot.slane %v2009, 4
      %v2011 = vadd.f32 %v2009, %v2010
      %v2012 = vrot.slane %v2011, 2
      %v2013 = vadd.f32 %v2011, %v2012
      %v2014 = vrot.slane %v2013, 1
      %v2015 = vadd.f32 %v2013, %v2014
      %v2016 = vadd.f32 %v1877, %v1878
      %v2017 = vadd.f32 %v2016, %v1879
      %v2018 = vadd.f32 %v2017, %v1880
      %v2019 = vrot.slane %v2018, 4
      %v2020 = vadd.f32 %v2018, %v2019
      %v2021 = vrot.slane %v2020, 2
      %v2022 = vadd.f32 %v2020, %v2021
      %v2023 = vrot.slane %v2022, 1
      %v2024 = vadd.f32 %v2022, %v2023
      %2025 = vadd.xlane.f32.xlu0 %v1889
      %v2026 = vpop.xlane.xlu0 %2025
      %2027 = vadd.xlane.f32.xlu0 %v1898
      %v2028 = vpop.xlane.xlu0 %2027
      %2029 = vadd.xlane.f32.xlu0 %v1907
      %v2030 = vpop.xlane.xlu0 %2029
      %2031 = vadd.xlane.f32.xlu0 %v1916
      %v2032 = vpop.xlane.xlu0 %2031
      %2033 = vadd.xlane.f32.xlu0 %v1925
      %v2034 = vpop.xlane.xlu0 %2033
      %2035 = vadd.xlane.f32.xlu0 %v1934
      %v2036 = vpop.xlane.xlu0 %2035
      %2037 = vadd.xlane.f32.xlu0 %v1943
      %v2038 = vpop.xlane.xlu0 %2037
      %2039 = vadd.xlane.f32.xlu0 %v1952
      %v2040 = vpop.xlane.xlu0 %2039
      %2041 = vadd.xlane.f32.xlu0 %v1961
      %v2042 = vpop.xlane.xlu0 %2041
      %2043 = vadd.xlane.f32.xlu0 %v1970
      %v2044 = vpop.xlane.xlu0 %2043
      %2045 = vadd.xlane.f32.xlu0 %v1979
      %v2046 = vpop.xlane.xlu0 %2045
      %2047 = vadd.xlane.f32.xlu0 %v1988
      %v2048 = vpop.xlane.xlu0 %2047
      %2049 = vadd.xlane.f32.xlu0 %v1997
      %v2050 = vpop.xlane.xlu0 %2049
      %2051 = vadd.xlane.f32.xlu0 %v2006
      %v2052 = vpop.xlane.xlu0 %2051
      %2053 = vadd.xlane.f32.xlu0 %v2015
      %v2054 = vpop.xlane.xlu0 %2053
      %2055 = vadd.xlane.f32.xlu0 %v2024
      %v2056 = vpop.xlane.xlu0 %2055
      %v2057 = vmul.f32 %v2026, %v1545
      %v2058 = vmul.f32 %v2028, %v1546
      %v2059 = vmul.f32 %v2030, %v1547
      %v2060 = vmul.f32 %v2032, %v1548
      %v2061 = vmul.f32 %v2034, %v1549
      %v2062 = vmul.f32 %v2036, %v1550
      %v2063 = vmul.f32 %v2038, %v1551
      %v2064 = vmul.f32 %v2040, %v1552
      %v2065 = vmul.f32 %v2042, %v1553
      %v2066 = vmul.f32 %v2044, %v1554
      %v2067 = vmul.f32 %v2046, %v1555
      %v2068 = vmul.f32 %v2048, %v1556
      %v2069 = vmul.f32 %v2050, %v1557
      %v2070 = vmul.f32 %v2052, %v1558
      %v2071 = vmul.f32 %v2054, %v1559
      %v2072 = vmul.f32 %v2056, %v1560
      %vm2073 = vcmp.gt.f32.partialorder %v354, 0.01
      %vm2074 = vcmp.gt.f32.partialorder %v356, 0.01
      %vm2075 = vcmp.gt.f32.partialorder %v358, 0.01
      %vm2076 = vcmp.gt.f32.partialorder %v360, 0.01
      %vm2077 = vcmp.gt.f32.partialorder %v362, 0.01
      %vm2078 = vcmp.gt.f32.partialorder %v364, 0.01
      %vm2079 = vcmp.gt.f32.partialorder %v366, 0.01
      %vm2080 = vcmp.gt.f32.partialorder %v368, 0.01
      %vm2081 = vcmp.gt.f32.partialorder %v370, 0.01
      %vm2082 = vcmp.gt.f32.partialorder %v372, 0.01
      %vm2083 = vcmp.gt.f32.partialorder %v374, 0.01
      %vm2084 = vcmp.gt.f32.partialorder %v376, 0.01
      %vm2085 = vcmp.gt.f32.partialorder %v378, 0.01
      %vm2086 = vcmp.gt.f32.partialorder %v380, 0.01
      %vm2087 = vcmp.gt.f32.partialorder %v382, 0.01
      %vm2088 = vcmp.gt.f32.partialorder %v384, 0.01
      %v2089 = vsel %vm2073, %v1801, 0.0
      %v2090 = vsel %vm2074, %v1802, 0.0
      %v2091 = vsel %vm2075, %v1803, 0.0
      %v2092 = vsel %vm2076, %v1804, 0.0
      %v2093 = vsel %vm2077, %v1805, 0.0
      %v2094 = vsel %vm2078, %v1806, 0.0
      %v2095 = vsel %vm2079, %v1807, 0.0
      %v2096 = vsel %vm2080, %v1808, 0.0
      %v2097 = vsel %vm2081, %v1809, 0.0
      %v2098 = vsel %vm2082, %v1810, 0.0
      %v2099 = vsel %vm2083, %v1811, 0.0
      %v2100 = vsel %vm2084, %v1812, 0.0
      %v2101 = vsel %vm2085, %v1813, 0.0
      %v2102 = vsel %vm2086, %v1814, 0.0
      %v2103 = vsel %vm2087, %v1815, 0.0
      %v2104 = vsel %vm2088, %v1816, 0.0
      %v2105 = vmul.f32 %v2089, 4.0
      %v2106 = vmul.f32 %v2090, 4.0
      %v2107 = vmul.f32 %v2091, 4.0
      %v2108 = vmul.f32 %v2092, 4.0
      %v2109 = vmul.f32 %v2093, 4.0
      %v2110 = vmul.f32 %v2094, 4.0
      %v2111 = vmul.f32 %v2095, 4.0
      %v2112 = vmul.f32 %v2096, 4.0
      %v2113 = vmul.f32 %v2097, 4.0
      %v2114 = vmul.f32 %v2098, 4.0
      %v2115 = vmul.f32 %v2099, 4.0
      %v2116 = vmul.f32 %v2100, 4.0
      %v2117 = vmul.f32 %v2101, 4.0
      %v2118 = vmul.f32 %v2102, 4.0
      %v2119 = vmul.f32 %v2103, 4.0
      %v2120 = vmul.f32 %v2104, 4.0
      %v2121 = vsel %vm2073, %v2057, 0.0
      %v2122 = vsel %vm2074, %v2058, 0.0
      %v2123 = vsel %vm2075, %v2059, 0.0
      %v2124 = vsel %vm2076, %v2060, 0.0
      %v2125 = vsel %vm2077, %v2061, 0.0
      %v2126 = vsel %vm2078, %v2062, 0.0
      %v2127 = vsel %vm2079, %v2063, 0.0
      %v2128 = vsel %vm2080, %v2064, 0.0
      %v2129 = vsel %vm2081, %v2065, 0.0
      %v2130 = vsel %vm2082, %v2066, 0.0
      %v2131 = vsel %vm2083, %v2067, 0.0
      %v2132 = vsel %vm2084, %v2068, 0.0
      %v2133 = vsel %vm2085, %v2069, 0.0
      %v2134 = vsel %vm2086, %v2070, 0.0
      %v2135 = vsel %vm2087, %v2071, 0.0
      %v2136 = vsel %vm2088, %v2072, 0.0
      %v2137 = vmul.f32 %v2121, 4.0
      %v2138 = vmul.f32 %v2122, 4.0
      %v2139 = vmul.f32 %v2123, 4.0
      %v2140 = vmul.f32 %v2124, 4.0
      %v2141 = vmul.f32 %v2125, 4.0
      %v2142 = vmul.f32 %v2126, 4.0
      %v2143 = vmul.f32 %v2127, 4.0
      %v2144 = vmul.f32 %v2128, 4.0
      %v2145 = vmul.f32 %v2129, 4.0
      %v2146 = vmul.f32 %v2130, 4.0
      %v2147 = vmul.f32 %v2131, 4.0
      %v2148 = vmul.f32 %v2132, 4.0
      %v2149 = vmul.f32 %v2133, 4.0
      %v2150 = vmul.f32 %v2134, 4.0
      %v2151 = vmul.f32 %v2135, 4.0
      %v2152 = vmul.f32 %v2136, 4.0
      %vm2153 = vcmp.lt.f32.partialorder %v354, 0.1
      %vm2154 = vcmp.lt.f32.partialorder %v356, 0.1
      %vm2155 = vcmp.lt.f32.partialorder %v358, 0.1
      %vm2156 = vcmp.lt.f32.partialorder %v360, 0.1
      %vm2157 = vcmp.lt.f32.partialorder %v362, 0.1
      %vm2158 = vcmp.lt.f32.partialorder %v364, 0.1
      %vm2159 = vcmp.lt.f32.partialorder %v366, 0.1
      %vm2160 = vcmp.lt.f32.partialorder %v368, 0.1
      %vm2161 = vcmp.lt.f32.partialorder %v370, 0.1
      %vm2162 = vcmp.lt.f32.partialorder %v372, 0.1
      %vm2163 = vcmp.lt.f32.partialorder %v374, 0.1
      %vm2164 = vcmp.lt.f32.partialorder %v376, 0.1
      %vm2165 = vcmp.lt.f32.partialorder %v378, 0.1
      %vm2166 = vcmp.lt.f32.partialorder %v380, 0.1
      %vm2167 = vcmp.lt.f32.partialorder %v382, 0.1
      %vm2168 = vcmp.lt.f32.partialorder %v384, 0.1
      %v2169 = vsel %vm2153, 0.0, %v354
      %v2170 = vsel %vm2154, 0.0, %v356
      %v2171 = vsel %vm2155, 0.0, %v358
      %v2172 = vsel %vm2156, 0.0, %v360
      %v2173 = vsel %vm2157, 0.0, %v362
      %v2174 = vsel %vm2158, 0.0, %v364
      %v2175 = vsel %vm2159, 0.0, %v366
      %v2176 = vsel %vm2160, 0.0, %v368
      %v2177 = vsel %vm2161, 0.0, %v370
      %v2178 = vsel %vm2162, 0.0, %v372
      %v2179 = vsel %vm2163, 0.0, %v374
      %v2180 = vsel %vm2164, 0.0, %v376
      %v2181 = vsel %vm2165, 0.0, %v378
      %v2182 = vsel %vm2166, 0.0, %v380
      %v2183 = vsel %vm2167, 0.0, %v382
      %v2184 = vsel %vm2168, 0.0, %v384
      %vm2185 = vcmp.eq.s32.totalorder %v188, 0
      %vm2186 = vcmp.eq.s32.totalorder %v188, 1
      %vm2187 = vcmp.eq.s32.totalorder %v188, 2
      %vm2204 = vcmask 1041409
      %v2205 = vsel %vm2204, %v2170, %v2169
      %vm2206 = vcmask 1042434
      %v2207 = vsel %vm2206, %v2171, %v2205
      %vm2208 = vcmask 1043459
      %v2209 = vsel %vm2208, %v2172, %v2207
      %vm2210 = vcmask 1044484
      %v2211 = vsel %vm2210, %v2173, %v2209
      %vm2212 = vcmask 1045509
      %v2213 = vsel %vm2212, %v2174, %v2211
      %vm2214 = vcmask 1046534
      %v2215 = vsel %vm2214, %v2175, %v2213
      %vm2216 = vcmask 1047559
      %v2217 = vsel %vm2216, %v2176, %v2215
      %v2218 = vsel %vm2204, %v2178, %v2177
      %v2219 = vsel %vm2206, %v2179, %v2218
      %v2220 = vsel %vm2208, %v2180, %v2219
      %v2221 = vsel %vm2210, %v2181, %v2220
      %v2222 = vsel %vm2212, %v2182, %v2221
      %v2223 = vsel %vm2214, %v2183, %v2222
      %v2224 = vsel %vm2216, %v2184, %v2223
      %v2227 = vsel %vm2187, %v2217, 0.0
      %v2228 = vsel %vm2187, %v2224, 0.0
      %v2245 = vsel %vm2204, %v2138, %v2137
      %v2246 = vsel %vm2206, %v2139, %v2245
      %v2247 = vsel %vm2208, %v2140, %v2246
      %v2248 = vsel %vm2210, %v2141, %v2247
      %v2249 = vsel %vm2212, %v2142, %v2248
      %v2250 = vsel %vm2214, %v2143, %v2249
      %v2251 = vsel %vm2216, %v2144, %v2250
      %v2252 = vsel %vm2204, %v2146, %v2145
      %v2253 = vsel %vm2206, %v2147, %v2252
      %v2254 = vsel %vm2208, %v2148, %v2253
      %v2255 = vsel %vm2210, %v2149, %v2254
      %v2256 = vsel %vm2212, %v2150, %v2255
      %v2257 = vsel %vm2214, %v2151, %v2256
      %v2258 = vsel %vm2216, %v2152, %v2257
      %v2261 = vsel %vm2186, %v2251, %v2227
      %v2262 = vsel %vm2186, %v2258, %v2228
      %v2279 = vsel %vm2204, %v2106, %v2105
      %v2280 = vsel %vm2206, %v2107, %v2279
      %v2281 = vsel %vm2208, %v2108, %v2280
      %v2282 = vsel %vm2210, %v2109, %v2281
      %v2283 = vsel %vm2212, %v2110, %v2282
      %v2284 = vsel %vm2214, %v2111, %v2283
      %v2285 = vsel %vm2216, %v2112, %v2284
      %v2286 = vsel %vm2204, %v2114, %v2113
      %v2287 = vsel %vm2206, %v2115, %v2286
      %v2288 = vsel %vm2208, %v2116, %v2287
      %v2289 = vsel %vm2210, %v2117, %v2288
      %v2290 = vsel %vm2212, %v2118, %v2289
      %v2291 = vsel %vm2214, %v2119, %v2290
      %v2292 = vsel %vm2216, %v2120, %v2291
      %v2295 = vsel %vm2185, %v2285, %v2261
      %v2296 = vsel %vm2185, %v2292, %v2262
      %2297 = vst [vmem:[%s121] sm:$0xff] %v2295
      %2298 = vst [vmem:[%s121 + $0x8] sm:$0xff] %v2296
      %s2299 = smul.u32 2, %s12
      %p2300 = scmp.lt.s32.totalorder %s2299, 3
      %s2301 = scalar_select %p2300, %s2299, 3
      %s2302 = smul.addr %s2301, 8
      %s2303 = scalar_lea.vmem %s1, %s2302
      // Predicated region
      $region25: #{triangulate_head_forward.1} parent=23 // pred_check
        %p2304 = pneg %p56
      $region26: #{triangulate_head_forward.1} parent=23 // pred_check_branch
        %2306 = sbr.rel (%p2304) target = $region28
      $region27: #{triangulate_head_forward.1} parent=23 // pred_region
        %s2307 = smul.u32 2, %s12
      $region28: #{triangulate_head_forward.1} parent=23 // pred_fallthru
        _
    $region24: #{triangulate_head_forward.1} parent=5 // pred_fallthru
      _
    %p2308 = scmp.le.s32.totalorder 2, %s7
    // Predicated region
    $region29: #{triangulate_head_forward.1} parent=5 // pred_check
      %p2309 = pneg %p2308
    $region30: #{triangulate_head_forward.1} parent=5 // pred_check_branch
      %2311 = sbr.rel (%p2309) target = $region32
    $region31: #{triangulate_head_forward.1} parent=5 // pred_region
      %s2312 = ssub.s32 %s7, 2
      // Predicated region
      $region33: #{triangulate_head_forward.1} parent=31 // pred_check
        %p2313 = pneg %p62
      $region34: #{triangulate_head_forward.1} parent=31 // pred_check_branch
        %2315 = sbr.rel (%p2313) target = $region36
      $region35: #{triangulate_head_forward.1} parent=31 // pred_region
        %s2316 = smul.u32 2, %s13
        %p2317 = scmp.lt.s32.totalorder %s2316, 3
        %s2318 = scalar_select %p2317, %s2316, 3
        %s2319 = smul.addr %s2318, 8
        %s2320 = scalar_lea.vmem %s1, %s2319
      $region36: #{triangulate_head_forward.1} parent=31 // pred_fallthru
        _
    $region32: #{triangulate_head_forward.1} parent=5 // pred_fallthru
      _
  $region6: #{triangulate_head_forward.1} parent=0 // loop_footer
    %s11 = sadd.s32 1, %s7
  $region7: #{triangulate_head_forward.1} parent=0 // loop_footer_branch
    %6 = sbr.rel target = $region3
  $region8: #{triangulate_head_forward.1} parent=0 // loop_exit
    _

// kernel: custom-call.40
$region0: #{custom-call.40}
  %s0 = inlined_call_operand.vmem [shape: f32[8,1,4,4], index: 0, kind: input, shape index: {}]
  %s1 = inlined_call_operand.vmem [shape: f32[8,1,4,4], index: 1, kind: output, shape index: {}]
  $region1: #{custom-call.40} parent=0
    #allocation0 [shape = 'u8[4096]{0}', space=vmem, size = 0x1000, scoped, tag = 'operand span for operand 0']
    #allocation1 [shape = 'u8[4096]{0}', space=vmem, size = 0x1000, scoped, tag = 'packed  for operand 0']
    #allocation2 [shape = 'u8[4096]{0}', space=vmem, size = 0x1000, scoped, tag = 'operand span for operand 1']
    #allocation3 [shape = 'u8[4096]{0}', space=vmem, size = 0x1000, scoped, tag = 'packed  for operand 1']
    loop: start=0, step=1, limit=10
    $region2: #{custom-call.40} parent=1 // loop_pre_header
      _
    $region3: #{custom-call.40} parent=1 // loop_header
      %s3 = sphi 0, %s7
      %p4 = scmp.ge.s32.totalorder %s3, 10
      %s10 = sphi 0, %s36
      %s11 = sphi 0, %s32
      %s12 = sphi 0, %s28
      %s13 = sphi 0, %s24
      %s14 = sphi 0, %s10
      %s15 = sphi 0, %s11
      %s16 = sphi 0, %s12
      %s17 = sphi 0, %s13
      %s18 = sphi 0, %s14
      %s19 = sphi 0, %s15
      %s20 = sphi 0, %s16
      %s21 = sphi 0, %s17
    $region4: #{custom-call.40} parent=1 // loop_header_branch
      %6 = sbr.rel (%p4) target = $region8
    $region5: #{custom-call.40} parent=1 // loop_body
      %s8 = ssub.s32 %s3, 1
      %s9 = ssub.s32 %s3, 2
      %s22 = sadd.s32 1, %s13
      %p23 = scmp.ge.s32.totalorder %s22, 1
      %s24 = scalar_select %p23, 0, %s22
      %s25 = sadd.s32 1, %s12
      %s26 = scalar_select %p23, %s25, %s12
      %p27 = scmp.ge.s32.totalorder %s26, 1
      %s28 = scalar_select %p27, 0, %s26
      %s29 = sadd.s32 1, %s11
      %s30 = scalar_select %p27, %s29, %s11
      %p31 = scmp.ge.s32.totalorder %s30, 1
      %s32 = scalar_select %p31, 0, %s30
      %s33 = sadd.s32 1, %s10
      %s34 = scalar_select %p31, %s33, %s10
      %p35 = scmp.ge.s32.totalorder %s34, 8
      %s36 = scalar_select %p35, 0, %s34
      %p37 = scmp.le.s32.totalorder 1, %s3
      %p38 = scmp.lt.s32.totalorder %s3, 9
      %p39 = pnand %p37, %p38
      %p40 = pneg %p39
      // Predicated region
      $region9: #{custom-call.40} parent=5 // pred_check
        _
      $region10: #{custom-call.40} parent=5 // pred_check_branch
        %42 = sbr.rel (%p39) target = $region12
      $region11: #{custom-call.40} parent=5 // pred_region
        %s43 = ssub.s32 %s3, 1
      $region12: #{custom-call.40} parent=5 // pred_fallthru
        _
      %p44 = scmp.lt.s32.totalorder %s3, 8
      // Predicated region
      $region13: #{custom-call.40} parent=5 // pred_check
        %p45 = pneg %p44
      $region14: #{custom-call.40} parent=5 // pred_check_branch
        %47 = sbr.rel (%p45) target = $region16
      $region15: #{custom-call.40} parent=5 // pred_region
        %s48 = sand.u32 %s3, 1
        %s49 = sand.u32 %s3, 1
        %s50 = smul.addr %s49, 4
        %s51 = scalar_lea.vmem [#allocation1], %s50
        %s52 = sadd.s32 %s13, %s12
        %s53 = sadd.s32 %s52, %s11
        %s54 = sadd.s32 %s53, %s10
        %s55 = smul.addr %s54, 4
        %s56 = scalar_lea.vmem %s0, %s55
        // Predicated region
        $region17: #{custom-call.40} parent=15 // pred_check
          _
        $region18: #{custom-call.40} parent=15 // pred_check_branch
          %58 = sbr.rel (0) target = $region20
        $region19: #{custom-call.40} parent=15 // pred_region
          // Predicated region
          $region21: #{custom-call.40} parent=19 // pred_check
            _
          $region22: #{custom-call.40} parent=19 // pred_check_branch
            %60 = sbr.rel target = $region24
          $region23: #{custom-call.40} parent=19 // pred_region
            // Predicated region
            $region36: #{custom-call.40} parent=23 // pred_check
              _
            $region37: #{custom-call.40} parent=23 // pred_check_branch
              %76 = sbr.rel (0) target = $region39
            $region38: #{custom-call.40} parent=23 // pred_region
              %s78 = ssub.s32 16, 1
              loop: start=0, step=1, limit=1
              $region40: #{custom-call.40} parent=38 // loop_pre_header
                _
              $region41: #{custom-call.40} parent=38 // loop_header
                %s80 = sphi 0, %s84
                %p81 = scmp.ge.s32.totalorder %s80, 1
                %s85 = sphi %s56, %s56
                %s86 = sphi %s51, %s51
              $region42: #{custom-call.40} parent=38 // loop_header_branch
                %83 = sbr.rel (%p81) target = $region46
              $region43: #{custom-call.40} parent=38 // loop_body
                %v87 = vld [vmem:[%s85] sm:%s78]
                %88 = vst [vmem:[%s86] sm:%s78] %v87
              $region44: #{custom-call.40} parent=38 // loop_footer
                %s84 = sadd.s32 1, %s80
              $region45: #{custom-call.40} parent=38 // loop_footer_branch
                %79 = sbr.rel target = $region41
              $region46: #{custom-call.40} parent=38 // loop_exit
                _
            $region39: #{custom-call.40} parent=23 // pred_fallthru
              _
          $region24: #{custom-call.40} parent=19 // pred_fallthru
            _
          // Predicated region
          $region25: #{custom-call.40} parent=19 // pred_check
            _
          $region26: #{custom-call.40} parent=19 // pred_check_branch
            %62 = sbr.rel (0) target = $region28
          $region27: #{custom-call.40} parent=19 // pred_region
            %s64 = ssub.s32 16, 1
            loop: start=0, step=1, limit=1
            $region29: #{custom-call.40} parent=27 // loop_pre_header
              _
            $region30: #{custom-call.40} parent=27 // loop_header
              %s66 = sphi 0, %s70
              %p67 = scmp.ge.s32.totalorder %s66, 1
              %s71 = sphi %s56, %s56
              %s72 = sphi %s51, %s51
            $region31: #{custom-call.40} parent=27 // loop_header_branch
              %69 = sbr.rel (%p67) target = $region35
            $region32: #{custom-call.40} parent=27 // loop_body
              %v73 = vld [vmem:[%s71] sm:%s64]
              %74 = vst [vmem:[%s72] sm:%s64] %v73
            $region33: #{custom-call.40} parent=27 // loop_footer
              %s70 = sadd.s32 1, %s66
            $region34: #{custom-call.40} parent=27 // loop_footer_branch
              %65 = sbr.rel target = $region30
            $region35: #{custom-call.40} parent=27 // loop_exit
              _
          $region28: #{custom-call.40} parent=19 // pred_fallthru
            _
        $region20: #{custom-call.40} parent=15 // pred_fallthru
          _
        %89 = vnop
      $region16: #{custom-call.40} parent=5 // pred_fallthru
        _
      %p90 = scmp.le.s32.totalorder 1, %s3
      %p91 = scmp.lt.s32.totalorder %s3, 9
      %p92 = pnand %p90, %p91
      %p93 = pneg %p92
      // Predicated region
      $region47: #{custom-call.40} parent=5 // pred_check
        _
      $region48: #{custom-call.40} parent=5 // pred_check_branch
        %95 = sbr.rel (%p92) target = $region50
      $region49: #{custom-call.40} parent=5 // pred_region
        #allocation4 [shape = 'f32[4,4]{1,0}', space=vmem, size = 0x1000, scoped, tag = 'rescaled input a']
        %s96 = ssub.s32 %s3, 1
        %s97 = sand.u32 %s8, 1
        %s98 = sand.u32 %s8, 1
        %s99 = smul.addr %s98, 4
        %s100 = scalar_lea.vmem [#allocation1], %s99
        %s101 = sand.u32 %s8, 1
        %s102 = sand.u32 %s8, 1
        %s103 = smul.addr %s102, 4
        %s104 = scalar_lea.vmem [#allocation1], %s103
        %s105 = sand.u32 %s8, 1
        %s106 = sand.u32 %s8, 1
        %s107 = smul.addr %s106, 4
        %s108 = scalar_lea.vmem [#allocation3], %s107
        %s110 = ssub.s32 16, 1
        %v111 = vld [vmem:[%s104] sm:%s110]
        %112 = vst [vmem:[#allocation0] sm:%s110] %v111
        %v113 = vlaneseq
        %v114 = vand.u32 %v113, 127
        %vm115 = vcmp.lt.s32.totalorder %v114, 4
        %v116 = vlaneseq
        %v117 = vshrl.u32 %v116, 7
        %vm119 = vcmp.eq.s32.totalorder %v117, %v114
        %v120 = vld [vmem:[#allocation0] sm:$0xff]
        %v121 = vsel %vm119, %v120, 0.0
        %122 = vadd.xlane.f32.xlu0 %v121
        %v123 = vpop.xlane.xlu0 %122
        %vm124 = vcmp.ge.s32.totalorder %v117, %v114
        %vm125 = vmand %vm124, %vm115
        %v126 = vsel %vm125, %v120, 0.0
        %v127 = vrcp.pop %v123
        %v128 = vmul.f32 %v123, %v127
        %v129 = vsub.f32 1.0, %v128
        %v130 = vmul.f32 %v127, %v129
        %v131 = vadd.f32 %v127, %v130
        %vm132 = vweird.f32 %v123
        %vm133 = vweird.f32 %v127
        %vm134 = vmor %vm132, %vm133
        %v135 = vsel %vm134, %v127, %v131
        %v136 = vand.u32 2147483647, %v123
        %vm137 = vcmp.eq.f32.partialorder %v136, 8.507059e+37
        %v138 = vand.u32 %v123, 2147483648
        %v139 = vor.u32 1.1754944e-38, %v138
        %v140 = vsel %vm137, %v139, %v135
        %v141 = vmul.f32 %v126, %v140
        %142 = vst [vmem:[#allocation4] sm:$0xff] %v141
        %v143 = vlaneseq
        %v144 = vand.u32 %v143, 127
        %v145 = vlaneseq
        %v146 = vshrl.u32 %v145, 7
        %vm148 = vcmp.eq.s32.totalorder %v144, %v146
        %v149 = vlaneseq
        %v150 = vand.u32 %v149, 127
        %vm151 = vcmp.eq.s32.totalorder %v150, 0
        %v152 = vsel %vm151, 1.0, -1.0
        %v153 = vsel %vm148, %v152, 0.0
        %s154 = scalar_lea.vmem [#allocation4], 1
        %v155 = vld [vmem:[%s154] ss:$0 sm:$0xff]
        %v156 = vxor.u32 %v155, 2147483648
        %v157 = vlaneseq
        %v158 = vand.u32 %v157, 127
        %vm159 = vcmp.eq.s32.totalorder %v158, 1
        %v160 = vmul.f32 %v156, %v153
        %161 = vadd.xlane.f32.xlu0 %v160
        %v162 = vpop.xlane.xlu0 %161
        %v163 = vsel %vm159, %v162, %v153
        %s164 = scalar_lea.vmem [#allocation4], 2
        %v165 = vld [vmem:[%s164] ss:$0 sm:$0xff]
        %v166 = vxor.u32 %v165, 2147483648
        %v167 = vlaneseq
        %v168 = vand.u32 %v167, 127
        %vm169 = vcmp.eq.s32.totalorder %v168, 2
        %v170 = vmul.f32 %v166, %v163
        %171 = vadd.xlane.f32.xlu0 %v170
        %v172 = vpop.xlane.xlu0 %171
        %v173 = vsel %vm169, %v172, %v163
        %s174 = scalar_lea.vmem [#allocation4], 3
        %v175 = vld [vmem:[%s174] ss:$0 sm:$0xff]
        %v176 = vxor.u32 %v175, 2147483648
        %v177 = vlaneseq
        %v178 = vand.u32 %v177, 127
        %vm179 = vcmp.eq.s32.totalorder %v178, 3
        %v180 = vmul.f32 %v176, %v173
        %181 = vadd.xlane.f32.xlu0 %v180
        %v182 = vpop.xlane.xlu0 %181
        %v183 = vsel %vm179, %v182, %v173
        %v184 = vrcp.pop %v123
        %v185 = vmul.f32 %v123, %v184
        %v186 = vsub.f32 1.0, %v185
        %v187 = vmul.f32 %v184, %v186
        %v188 = vadd.f32 %v184, %v187
        %vm189 = vweird.f32 %v123
        %vm190 = vweird.f32 %v184
        %vm191 = vmor %vm189, %vm190
        %v192 = vsel %vm191, %v184, %v188
        %v193 = vand.u32 2147483647, %v123
        %vm194 = vcmp.eq.f32.partialorder %v193, 8.507059e+37
        %v195 = vand.u32 %v123, 2147483648
        %v196 = vor.u32 1.1754944e-38, %v195
        %v197 = vsel %vm194, %v196, %v192
        %v198 = vmul.f32 %v183, %v197
        %vm199 = vweird.f32 %v123
        %v200 = vsel %vm199, %v183, %v198
        %201 = vst [vmem:[#allocation2] sm:$0xff] %v200
        %s203 = ssub.s32 16, 1
        %v204 = vld [vmem:[#allocation2] sm:%s203]
        %s206 = ssub.s32 16, 1
        %207 = vst [vmem:[%s108] sm:%s206] %v204
        %s208 = sand.u32 %s8, 1
        %s209 = sand.u32 %s8, 1
        %s210 = smul.addr %s209, 4
        %s211 = scalar_lea.vmem [#allocation3], %s210
        %s212 = sadd.s32 %s17, %s16
        %s213 = sadd.s32 %s212, %s15
        %s214 = sadd.s32 %s213, %s14
        %s215 = smul.addr %s214, 4
        %s216 = scalar_lea.vmem %s1, %s215
        // Predicated region
        $region51: #{custom-call.40} parent=49 // pred_check
          _
        $region52: #{custom-call.40} parent=49 // pred_check_branch
          %218 = sbr.rel (0) target = $region54
        $region53: #{custom-call.40} parent=49 // pred_region
          // Predicated region
          $region55: #{custom-call.40} parent=53 // pred_check
            _
          $region56: #{custom-call.40} parent=53 // pred_check_branch
            %220 = sbr.rel target = $region58
          $region57: #{custom-call.40} parent=53 // pred_region
            // Predicated region
            $region70: #{custom-call.40} parent=57 // pred_check
              _
            $region71: #{custom-call.40} parent=57 // pred_check_branch
              %236 = sbr.rel (0) target = $region73
            $region72: #{custom-call.40} parent=57 // pred_region
              %s238 = ssub.s32 16, 1
              loop: start=0, step=1, limit=1
              $region74: #{custom-call.40} parent=72 // loop_pre_header
                _
              $region75: #{custom-call.40} parent=72 // loop_header
                %s240 = sphi 0, %s244
                %p241 = scmp.ge.s32.totalorder %s240, 1
                %s245 = sphi %s211, %s211
                %s246 = sphi %s216, %s216
              $region76: #{custom-call.40} parent=72 // loop_header_branch
                %243 = sbr.rel (%p241) target = $region80
              $region77: #{custom-call.40} parent=72 // loop_body
                %v247 = vld [vmem:[%s245] sm:%s238]
                %248 = vst [vmem:[%s246] sm:%s238] %v247
              $region78: #{custom-call.40} parent=72 // loop_footer
                %s244 = sadd.s32 1, %s240
              $region79: #{custom-call.40} parent=72 // loop_footer_branch
                %239 = sbr.rel target = $region75
              $region80: #{custom-call.40} parent=72 // loop_exit
                _
            $region73: #{custom-call.40} parent=57 // pred_fallthru
              _
          $region58: #{custom-call.40} parent=53 // pred_fallthru
            _
          // Predicated region
          $region59: #{custom-call.40} parent=53 // pred_check
            _
          $region60: #{custom-call.40} parent=53 // pred_check_branch
            %222 = sbr.rel (0) target = $region62
          $region61: #{custom-call.40} parent=53 // pred_region
            %s224 = ssub.s32 16, 1
            loop: start=0, step=1, limit=1
            $region63: #{custom-call.40} parent=61 // loop_pre_header
              _
            $region64: #{custom-call.40} parent=61 // loop_header
              %s226 = sphi 0, %s230
              %p227 = scmp.ge.s32.totalorder %s226, 1
              %s231 = sphi %s211, %s211
              %s232 = sphi %s216, %s216
            $region65: #{custom-call.40} parent=61 // loop_header_branch
              %229 = sbr.rel (%p227) target = $region69
            $region66: #{custom-call.40} parent=61 // loop_body
              %v233 = vld [vmem:[%s231] sm:%s224]
              %234 = vst [vmem:[%s232] sm:%s224] %v233
            $region67: #{custom-call.40} parent=61 // loop_footer
              %s230 = sadd.s32 1, %s226
            $region68: #{custom-call.40} parent=61 // loop_footer_branch
              %225 = sbr.rel target = $region64
            $region69: #{custom-call.40} parent=61 // loop_exit
              _
          $region62: #{custom-call.40} parent=53 // pred_fallthru
            _
        $region54: #{custom-call.40} parent=49 // pred_fallthru
          _
        %249 = vnop
      $region50: #{custom-call.40} parent=5 // pred_fallthru
        _
      %p250 = scmp.le.s32.totalorder 2, %s3
      // Predicated region
      $region81: #{custom-call.40} parent=5 // pred_check
        %p251 = pneg %p250
      $region82: #{custom-call.40} parent=5 // pred_check_branch
        %253 = sbr.rel (%p251) target = $region84
      $region83: #{custom-call.40} parent=5 // pred_region
        %s254 = ssub.s32 %s3, 2
        %s255 = sand.u32 %s9, 1
        %s256 = sand.u32 %s9, 1
        %s257 = smul.addr %s256, 4
        %s258 = scalar_lea.vmem [#allocation3], %s257
      $region84: #{custom-call.40} parent=5 // pred_fallthru
        _
    $region6: #{custom-call.40} parent=1 // loop_footer
      %s7 = sadd.s32 1, %s3
    $region7: #{custom-call.40} parent=1 // loop_footer_branch
      %2 = sbr.rel target = $region3
    $region8: #{custom-call.40} parent=1 // loop_exit
      _

// kernel: custom-call.16
$region0: #{custom-call.16}
  %s0 = inlined_call_operand.vmem [shape: f32[8,2,2], index: 0, kind: input, shape index: {}]
  %s1 = inlined_call_operand.vmem [shape: f32[8,2,2], index: 1, kind: input, shape index: {}]
  %s2 = inlined_call_operand.vmem [shape: f32[8,2,2], index: 2, kind: input, shape index: {}]
  %s3 = inlined_call_operand.vmem [shape: f32[8,2,2], index: 3, kind: input, shape index: {}]
  %s4 = inlined_call_operand.vmem [shape: f32[8,2], index: 4, kind: output, shape index: {0}]
  %s5 = inlined_call_operand.vmem [shape: f32[8,2], index: 5, kind: output, shape index: {1}]
  %s6 = inlined_call_operand.vmem [shape: f32[8,2,2], index: 6, kind: output, shape index: {2}]
  %s7 = inlined_call_operand.vmem [shape: f32[8,2,2], index: 7, kind: output, shape index: {3}]
  %s8 = inlined_call_operand.vmem [shape: f32[8,2,2], index: 8, kind: output, shape index: {4}]
  %s9 = inlined_call_operand.vmem [shape: f32[8,2,2], index: 9, kind: output, shape index: {5}]
  %10 = xla_tuple %s4, %s5, %s6, %s7, %s8, %s9
  $region1: #{custom-call.16} parent=0
    #allocation0 [shape = 'u8[4096]{0}', space=vmem, size = 0x1000, scoped, tag = 'operand span for operand 0']
    #allocation1 [shape = 'u8[2048]{0}', space=vmem, size = 0x800, scoped, tag = 'packed  for operand 0']
    #allocation2 [shape = 'u8[4096]{0}', space=vmem, size = 0x1000, scoped, tag = 'operand span for operand 1']
    #allocation3 [shape = 'u8[2048]{0}', space=vmem, size = 0x800, scoped, tag = 'packed  for operand 1']
    #allocation4 [shape = 'u8[4096]{0}', space=vmem, size = 0x1000, scoped, tag = 'operand span for operand 2']
    #allocation5 [shape = 'u8[2048]{0}', space=vmem, size = 0x800, scoped, tag = 'packed  for operand 2']
    #allocation6 [shape = 'u8[4096]{0}', space=vmem, size = 0x1000, scoped, tag = 'operand span for operand 3']
    #allocation7 [shape = 'u8[2048]{0}', space=vmem, size = 0x800, scoped, tag = 'packed  for operand 3']
    #allocation8 [shape = 'u8[8192]{0}', space=vmem, size = 0x2000, scoped, tag = 'operand span for operand 4']
    #allocation9 [shape = 'u8[8192]{0}', space=vmem, size = 0x2000, scoped, tag = 'operand span for operand 5']
    #allocation10 [shape = 'u8[4096]{0}', space=vmem, size = 0x1000, scoped, tag = 'operand span for operand 6']
    #allocation11 [shape = 'u8[2048]{0}', space=vmem, size = 0x800, scoped, tag = 'packed  for operand 6']
    #allocation12 [shape = 'u8[4096]{0}', space=vmem, size = 0x1000, scoped, tag = 'operand span for operand 7']
    #allocation13 [shape = 'u8[2048]{0}', space=vmem, size = 0x800, scoped, tag = 'packed  for operand 7']
    #allocation14 [shape = 'u8[4096]{0}', space=vmem, size = 0x1000, scoped, tag = 'operand span for operand 8']
    #allocation15 [shape = 'u8[2048]{0}', space=vmem, size = 0x800, scoped, tag = 'packed  for operand 8']
    #allocation16 [shape = 'u8[4096]{0}', space=vmem, size = 0x1000, scoped, tag = 'operand span for operand 9']
    #allocation17 [shape = 'u8[2048]{0}', space=vmem, size = 0x800, scoped, tag = 'packed  for operand 9']
    loop: start=0, step=1, limit=10
    $region2: #{custom-call.16} parent=1 // loop_pre_header
      _
    $region3: #{custom-call.16} parent=1 // loop_header
      %s12 = sphi 0, %s16
      %p13 = scmp.ge.s32.totalorder %s12, 10
      %s24 = sphi 0, %s26
      %s27 = sphi 0, %s24
      %s28 = sphi 0, %s27
      %s44 = sphi 0, %s28
      %s52 = sphi 0, %s54
      %s55 = sphi 0, %s52
      %s56 = sphi 0, %s55
      %s72 = sphi 0, %s56
    $region4: #{custom-call.16} parent=1 // loop_header_branch
      %15 = sbr.rel (%p13) target = $region8
    $region5: #{custom-call.16} parent=1 // loop_body
      %s17 = ssub.s32 %s12, 1
      %s18 = ssub.s32 %s12, 2
      %s19 = sadd.s32 %s12, 1
      %s20 = sshrl.u32 %s12, 3
      %s21 = sshrl.u32 %s19, 3
      %s22 = ssub.s32 %s20, %s21
      %p23 = scmp.eq.s32.totalorder %s22, 0
      %s25 = sadd.s32 %s24, 1
      %s26 = scalar_select %p23, %s24, %s25
      %p29 = pneg %p23
      %p30 = scmp.eq.s32.totalorder %s12, 7
      %p31 = por %p29, %p30
      %p32 = scmp.ne.s32.totalorder %s24, %s27
      %p33 = scmp.eq.s32.totalorder %s12, 0
      %p34 = por %p32, %p33
      %p35 = scmp.ne.s32.totalorder %s24, %s27
      %p36 = scmp.eq.s32.totalorder %s17, 7
      %p37 = por %p35, %p36
      %p38 = scmp.ne.s32.totalorder %s27, %s28
      %p39 = scmp.eq.s32.totalorder %s17, 0
      %p40 = por %p38, %p39
      %p41 = scmp.ne.s32.totalorder %s27, %s28
      %p42 = scmp.eq.s32.totalorder %s18, 7
      %p43 = por %p41, %p42
      %p45 = scmp.ne.s32.totalorder %s28, %s44
      %p46 = scmp.eq.s32.totalorder %s18, 0
      %p47 = por %p45, %p46
      %s48 = sshrl.u32 %s12, 3
      %s49 = sshrl.u32 %s19, 3
      %s50 = ssub.s32 %s48, %s49
      %p51 = scmp.eq.s32.totalorder %s50, 0
      %s53 = sadd.s32 %s52, 1
      %s54 = scalar_select %p51, %s52, %s53
      %p57 = pneg %p51
      %p58 = scmp.eq.s32.totalorder %s12, 7
      %p59 = por %p57, %p58
      %p60 = scmp.ne.s32.totalorder %s52, %s55
      %p61 = scmp.eq.s32.totalorder %s12, 0
      %p62 = por %p60, %p61
      %p63 = scmp.ne.s32.totalorder %s52, %s55
      %p64 = scmp.eq.s32.totalorder %s17, 7
      %p65 = por %p63, %p64
      %p66 = scmp.ne.s32.totalorder %s55, %s56
      %p67 = scmp.eq.s32.totalorder %s17, 0
      %p68 = por %p66, %p67
      %p69 = scmp.ne.s32.totalorder %s55, %s56
      %p70 = scmp.eq.s32.totalorder %s18, 7
      %p71 = por %p69, %p70
      %p73 = scmp.ne.s32.totalorder %s56, %s72
      %p74 = scmp.eq.s32.totalorder %s18, 0
      %p75 = por %p73, %p74
      %p76 = scmp.le.s32.totalorder 1, %s12
      %p77 = scmp.lt.s32.totalorder %s12, 9
      %p78 = pnand %p76, %p77
      %p79 = pneg %p78
      // Predicated region
      $region9: #{custom-call.16} parent=5 // pred_check
        _
      $region10: #{custom-call.16} parent=5 // pred_check_branch
        %81 = sbr.rel (%p78) target = $region12
      $region11: #{custom-call.16} parent=5 // pred_region
        %s82 = ssub.s32 %s12, 1
      $region12: #{custom-call.16} parent=5 // pred_fallthru
        _
      %p83 = scmp.lt.s32.totalorder %s12, 8
      // Predicated region
      $region13: #{custom-call.16} parent=5 // pred_check
        %p84 = pneg %p83
      $region14: #{custom-call.16} parent=5 // pred_check_branch
        %86 = sbr.rel (%p84) target = $region16
      $region15: #{custom-call.16} parent=5 // pred_region
        %s87 = sand.u32 %s12, 1
        %s88 = sand.u32 %s12, 1
        %s89 = smul.addr %s88, 2
        %s90 = scalar_lea.vmem [#allocation1], %s89
        %s91 = smul.addr %s12, 2
        %s92 = scalar_lea.vmem %s0, %s91
        // Predicated region
        $region17: #{custom-call.16} parent=15 // pred_check
          _
        $region18: #{custom-call.16} parent=15 // pred_check_branch
          %94 = sbr.rel (0) target = $region20
        $region19: #{custom-call.16} parent=15 // pred_region
          // Predicated region
          $region21: #{custom-call.16} parent=19 // pred_check
            _
          $region22: #{custom-call.16} parent=19 // pred_check_branch
            %96 = sbr.rel target = $region24
          $region23: #{custom-call.16} parent=19 // pred_region
            // Predicated region
            $region36: #{custom-call.16} parent=23 // pred_check
              _
            $region37: #{custom-call.16} parent=23 // pred_check_branch
              %112 = sbr.rel (0) target = $region39
            $region38: #{custom-call.16} parent=23 // pred_region
              %s114 = ssub.s32 4, 1
              loop: start=0, step=1, limit=1
              $region40: #{custom-call.16} parent=38 // loop_pre_header
                _
              $region41: #{custom-call.16} parent=38 // loop_header
                %s116 = sphi 0, %s120
                %p117 = scmp.ge.s32.totalorder %s116, 1
                %s121 = sphi %s92, %s92
                %s122 = sphi %s90, %s90
              $region42: #{custom-call.16} parent=38 // loop_header_branch
                %119 = sbr.rel (%p117) target = $region46
              $region43: #{custom-call.16} parent=38 // loop_body
                %v123 = vld [vmem:[%s121] sm:%s114]
                %124 = vst [vmem:[%s122] sm:%s114] %v123
              $region44: #{custom-call.16} parent=38 // loop_footer
                %s120 = sadd.s32 1, %s116
              $region45: #{custom-call.16} parent=38 // loop_footer_branch
                %115 = sbr.rel target = $region41
              $region46: #{custom-call.16} parent=38 // loop_exit
                _
            $region39: #{custom-call.16} parent=23 // pred_fallthru
              _
          $region24: #{custom-call.16} parent=19 // pred_fallthru
            _
          // Predicated region
          $region25: #{custom-call.16} parent=19 // pred_check
            _
          $region26: #{custom-call.16} parent=19 // pred_check_branch
            %98 = sbr.rel (0) target = $region28
          $region27: #{custom-call.16} parent=19 // pred_region
            %s100 = ssub.s32 4, 1
            loop: start=0, step=1, limit=1
            $region29: #{custom-call.16} parent=27 // loop_pre_header
              _
            $region30: #{custom-call.16} parent=27 // loop_header
              %s102 = sphi 0, %s106
              %p103 = scmp.ge.s32.totalorder %s102, 1
              %s107 = sphi %s92, %s92
              %s108 = sphi %s90, %s90
            $region31: #{custom-call.16} parent=27 // loop_header_branch
              %105 = sbr.rel (%p103) target = $region35
            $region32: #{custom-call.16} parent=27 // loop_body
              %v109 = vld [vmem:[%s107] sm:%s100]
              %110 = vst [vmem:[%s108] sm:%s100] %v109
            $region33: #{custom-call.16} parent=27 // loop_footer
              %s106 = sadd.s32 1, %s102
            $region34: #{custom-call.16} parent=27 // loop_footer_branch
              %101 = sbr.rel target = $region30
            $region35: #{custom-call.16} parent=27 // loop_exit
              _
          $region28: #{custom-call.16} parent=19 // pred_fallthru
            _
        $region20: #{custom-call.16} parent=15 // pred_fallthru
          _
        %125 = vnop
        %s126 = sand.u32 %s12, 1
        %s127 = sand.u32 %s12, 1
        %s128 = smul.addr %s127, 2
        %s129 = scalar_lea.vmem [#allocation3], %s128
        %s130 = smul.addr %s12, 2
        %s131 = scalar_lea.vmem %s1, %s130
        // Predicated region
        $region47: #{custom-call.16} parent=15 // pred_check
          _
        $region48: #{custom-call.16} parent=15 // pred_check_branch
          %133 = sbr.rel (0) target = $region50
        $region49: #{custom-call.16} parent=15 // pred_region
          // Predicated region
          $region51: #{custom-call.16} parent=49 // pred_check
            _
          $region52: #{custom-call.16} parent=49 // pred_check_branch
            %135 = sbr.rel target = $region54
          $region53: #{custom-call.16} parent=49 // pred_region
            // Predicated region
            $region66: #{custom-call.16} parent=53 // pred_check
              _
            $region67: #{custom-call.16} parent=53 // pred_check_branch
              %151 = sbr.rel (0) target = $region69
            $region68: #{custom-call.16} parent=53 // pred_region
              %s153 = ssub.s32 4, 1
              loop: start=0, step=1, limit=1
              $region70: #{custom-call.16} parent=68 // loop_pre_header
                _
              $region71: #{custom-call.16} parent=68 // loop_header
                %s155 = sphi 0, %s159
                %p156 = scmp.ge.s32.totalorder %s155, 1
                %s160 = sphi %s131, %s131
                %s161 = sphi %s129, %s129
              $region72: #{custom-call.16} parent=68 // loop_header_branch
                %158 = sbr.rel (%p156) target = $region76
              $region73: #{custom-call.16} parent=68 // loop_body
                %v162 = vld [vmem:[%s160] sm:%s153]
                %163 = vst [vmem:[%s161] sm:%s153] %v162
              $region74: #{custom-call.16} parent=68 // loop_footer
                %s159 = sadd.s32 1, %s155
              $region75: #{custom-call.16} parent=68 // loop_footer_branch
                %154 = sbr.rel target = $region71
              $region76: #{custom-call.16} parent=68 // loop_exit
                _
            $region69: #{custom-call.16} parent=53 // pred_fallthru
              _
          $region54: #{custom-call.16} parent=49 // pred_fallthru
            _
          // Predicated region
          $region55: #{custom-call.16} parent=49 // pred_check
            _
          $region56: #{custom-call.16} parent=49 // pred_check_branch
            %137 = sbr.rel (0) target = $region58
          $region57: #{custom-call.16} parent=49 // pred_region
            %s139 = ssub.s32 4, 1
            loop: start=0, step=1, limit=1
            $region59: #{custom-call.16} parent=57 // loop_pre_header
              _
            $region60: #{custom-call.16} parent=57 // loop_header
              %s141 = sphi 0, %s145
              %p142 = scmp.ge.s32.totalorder %s141, 1
              %s146 = sphi %s131, %s131
              %s147 = sphi %s129, %s129
            $region61: #{custom-call.16} parent=57 // loop_header_branch
              %144 = sbr.rel (%p142) target = $region65
            $region62: #{custom-call.16} parent=57 // loop_body
              %v148 = vld [vmem:[%s146] sm:%s139]
              %149 = vst [vmem:[%s147] sm:%s139] %v148
            $region63: #{custom-call.16} parent=57 // loop_footer
              %s145 = sadd.s32 1, %s141
            $region64: #{custom-call.16} parent=57 // loop_footer_branch
              %140 = sbr.rel target = $region60
            $region65: #{custom-call.16} parent=57 // loop_exit
              _
          $region58: #{custom-call.16} parent=49 // pred_fallthru
            _
        $region50: #{custom-call.16} parent=15 // pred_fallthru
          _
        %164 = vnop
        %s165 = sand.u32 %s12, 1
        %s166 = sand.u32 %s12, 1
        %s167 = smul.addr %s166, 2
        %s168 = scalar_lea.vmem [#allocation5], %s167
        %s169 = smul.addr %s12, 2
        %s170 = scalar_lea.vmem %s2, %s169
        // Predicated region
        $region77: #{custom-call.16} parent=15 // pred_check
          _
        $region78: #{custom-call.16} parent=15 // pred_check_branch
          %172 = sbr.rel (0) target = $region80
        $region79: #{custom-call.16} parent=15 // pred_region
          // Predicated region
          $region81: #{custom-call.16} parent=79 // pred_check
            _
          $region82: #{custom-call.16} parent=79 // pred_check_branch
            %174 = sbr.rel target = $region84
          $region83: #{custom-call.16} parent=79 // pred_region
            // Predicated region
            $region96: #{custom-call.16} parent=83 // pred_check
              _
            $region97: #{custom-call.16} parent=83 // pred_check_branch
              %190 = sbr.rel (0) target = $region99
            $region98: #{custom-call.16} parent=83 // pred_region
              %s192 = ssub.s32 4, 1
              loop: start=0, step=1, limit=1
              $region100: #{custom-call.16} parent=98 // loop_pre_header
                _
              $region101: #{custom-call.16} parent=98 // loop_header
                %s194 = sphi 0, %s198
                %p195 = scmp.ge.s32.totalorder %s194, 1
                %s199 = sphi %s170, %s170
                %s200 = sphi %s168, %s168
              $region102: #{custom-call.16} parent=98 // loop_header_branch
                %197 = sbr.rel (%p195) target = $region106
              $region103: #{custom-call.16} parent=98 // loop_body
                %v201 = vld [vmem:[%s199] sm:%s192]
                %202 = vst [vmem:[%s200] sm:%s192] %v201
              $region104: #{custom-call.16} parent=98 // loop_footer
                %s198 = sadd.s32 1, %s194
              $region105: #{custom-call.16} parent=98 // loop_footer_branch
                %193 = sbr.rel target = $region101
              $region106: #{custom-call.16} parent=98 // loop_exit
                _
            $region99: #{custom-call.16} parent=83 // pred_fallthru
              _
          $region84: #{custom-call.16} parent=79 // pred_fallthru
            _
          // Predicated region
          $region85: #{custom-call.16} parent=79 // pred_check
            _
          $region86: #{custom-call.16} parent=79 // pred_check_branch
            %176 = sbr.rel (0) target = $region88
          $region87: #{custom-call.16} parent=79 // pred_region
            %s178 = ssub.s32 4, 1
            loop: start=0, step=1, limit=1
            $region89: #{custom-call.16} parent=87 // loop_pre_header
              _
            $region90: #{custom-call.16} parent=87 // loop_header
              %s180 = sphi 0, %s184
              %p181 = scmp.ge.s32.totalorder %s180, 1
              %s185 = sphi %s170, %s170
              %s186 = sphi %s168, %s168
            $region91: #{custom-call.16} parent=87 // loop_header_branch
              %183 = sbr.rel (%p181) target = $region95
            $region92: #{custom-call.16} parent=87 // loop_body
              %v187 = vld [vmem:[%s185] sm:%s178]
              %188 = vst [vmem:[%s186] sm:%s178] %v187
            $region93: #{custom-call.16} parent=87 // loop_footer
              %s184 = sadd.s32 1, %s180
            $region94: #{custom-call.16} parent=87 // loop_footer_branch
              %179 = sbr.rel target = $region90
            $region95: #{custom-call.16} parent=87 // loop_exit
              _
          $region88: #{custom-call.16} parent=79 // pred_fallthru
            _
        $region80: #{custom-call.16} parent=15 // pred_fallthru
          _
        %203 = vnop
        %s204 = sand.u32 %s12, 1
        %s205 = sand.u32 %s12, 1
        %s206 = smul.addr %s205, 2
        %s207 = scalar_lea.vmem [#allocation7], %s206
        %s208 = smul.addr %s12, 2
        %s209 = scalar_lea.vmem %s3, %s208
        // Predicated region
        $region107: #{custom-call.16} parent=15 // pred_check
          _
        $region108: #{custom-call.16} parent=15 // pred_check_branch
          %211 = sbr.rel (0) target = $region110
        $region109: #{custom-call.16} parent=15 // pred_region
          // Predicated region
          $region111: #{custom-call.16} parent=109 // pred_check
            _
          $region112: #{custom-call.16} parent=109 // pred_check_branch
            %213 = sbr.rel target = $region114
          $region113: #{custom-call.16} parent=109 // pred_region
            // Predicated region
            $region126: #{custom-call.16} parent=113 // pred_check
              _
            $region127: #{custom-call.16} parent=113 // pred_check_branch
              %229 = sbr.rel (0) target = $region129
            $region128: #{custom-call.16} parent=113 // pred_region
              %s231 = ssub.s32 4, 1
              loop: start=0, step=1, limit=1
              $region130: #{custom-call.16} parent=128 // loop_pre_header
                _
              $region131: #{custom-call.16} parent=128 // loop_header
                %s233 = sphi 0, %s237
                %p234 = scmp.ge.s32.totalorder %s233, 1
                %s238 = sphi %s209, %s209
                %s239 = sphi %s207, %s207
              $region132: #{custom-call.16} parent=128 // loop_header_branch
                %236 = sbr.rel (%p234) target = $region136
              $region133: #{custom-call.16} parent=128 // loop_body
                %v240 = vld [vmem:[%s238] sm:%s231]
                %241 = vst [vmem:[%s239] sm:%s231] %v240
              $region134: #{custom-call.16} parent=128 // loop_footer
                %s237 = sadd.s32 1, %s233
              $region135: #{custom-call.16} parent=128 // loop_footer_branch
                %232 = sbr.rel target = $region131
              $region136: #{custom-call.16} parent=128 // loop_exit
                _
            $region129: #{custom-call.16} parent=113 // pred_fallthru
              _
          $region114: #{custom-call.16} parent=109 // pred_fallthru
            _
          // Predicated region
          $region115: #{custom-call.16} parent=109 // pred_check
            _
          $region116: #{custom-call.16} parent=109 // pred_check_branch
            %215 = sbr.rel (0) target = $region118
          $region117: #{custom-call.16} parent=109 // pred_region
            %s217 = ssub.s32 4, 1
            loop: start=0, step=1, limit=1
            $region119: #{custom-call.16} parent=117 // loop_pre_header
              _
            $region120: #{custom-call.16} parent=117 // loop_header
              %s219 = sphi 0, %s223
              %p220 = scmp.ge.s32.totalorder %s219, 1
              %s224 = sphi %s209, %s209
              %s225 = sphi %s207, %s207
            $region121: #{custom-call.16} parent=117 // loop_header_branch
              %222 = sbr.rel (%p220) target = $region125
            $region122: #{custom-call.16} parent=117 // loop_body
              %v226 = vld [vmem:[%s224] sm:%s217]
              %227 = vst [vmem:[%s225] sm:%s217] %v226
            $region123: #{custom-call.16} parent=117 // loop_footer
              %s223 = sadd.s32 1, %s219
            $region124: #{custom-call.16} parent=117 // loop_footer_branch
              %218 = sbr.rel target = $region120
            $region125: #{custom-call.16} parent=117 // loop_exit
              _
          $region118: #{custom-call.16} parent=109 // pred_fallthru
            _
        $region110: #{custom-call.16} parent=15 // pred_fallthru
          _
        %242 = vnop
      $region16: #{custom-call.16} parent=5 // pred_fallthru
        _
      %p243 = scmp.le.s32.totalorder 1, %s12
      %p244 = scmp.lt.s32.totalorder %s12, 9
      %p245 = pnand %p243, %p244
      %p246 = pneg %p245
      // Predicated region
      $region137: #{custom-call.16} parent=5 // pred_check
        _
      $region138: #{custom-call.16} parent=5 // pred_check_branch
        %248 = sbr.rel (%p245) target = $region140
      $region139: #{custom-call.16} parent=5 // pred_region
        #allocation18 [shape = 'f32[2,2]{1,0}', space=vmem, size = 0x1000, scoped, tag = 'a top-left matrix']
        #allocation19 [shape = 'f32[2,2]{1,0}', space=vmem, size = 0x1000, scoped, tag = 'a top-right matrix']
        #allocation20 [shape = 'f32[2,2]{1,0}', space=vmem, size = 0x1000, scoped, tag = 'a bottom-left matrix']
        #allocation21 [shape = 'f32[2,2]{1,0}', space=vmem, size = 0x1000, scoped, tag = 'a bottom-right matrix']
        %s249 = ssub.s32 %s12, 1
        %s250 = sand.u32 %s17, 1
        %s251 = sand.u32 %s17, 1
        %s252 = smul.addr %s251, 2
        %s253 = scalar_lea.vmem [#allocation1], %s252
        %s254 = sand.u32 %s17, 1
        %s255 = sand.u32 %s17, 1
        %s256 = smul.addr %s255, 2
        %s257 = scalar_lea.vmem [#allocation3], %s256
        %s258 = sand.u32 %s17, 1
        %s259 = sand.u32 %s17, 1
        %s260 = smul.addr %s259, 2
        %s261 = scalar_lea.vmem [#allocation5], %s260
        %s262 = sand.u32 %s17, 1
        %s263 = sand.u32 %s17, 1
        %s264 = smul.addr %s263, 2
        %s265 = scalar_lea.vmem [#allocation7], %s264
        %s266 = sand.u32 %s17, 1
        %s267 = sand.u32 %s17, 1
        %s268 = smul.addr %s267, 2
        %s269 = scalar_lea.vmem [#allocation1], %s268
        %s270 = sand.u32 %s17, 1
        %s271 = sand.u32 %s17, 1
        %s272 = smul.addr %s271, 2
        %s273 = scalar_lea.vmem [#allocation3], %s272
        %s274 = sand.u32 %s17, 1
        %s275 = sand.u32 %s17, 1
        %s276 = smul.addr %s275, 2
        %s277 = scalar_lea.vmem [#allocation5], %s276
        %s278 = sand.u32 %s17, 1
        %s279 = sand.u32 %s17, 1
        %s280 = smul.addr %s279, 2
        %s281 = scalar_lea.vmem [#allocation7], %s280
        %p282 = pneg %p40
        %p283 = pneg %p37
        %s284 = sand.u32 %s27, 1
        %s285 = sand.u32 %s27, 1
        %s286 = smul.addr %s285, 8
        %s287 = scalar_lea.vmem [#allocation8], %s286
        %p288 = pneg %p68
        %p289 = pneg %p65
        %s290 = sand.u32 %s55, 1
        %s291 = sand.u32 %s55, 1
        %s292 = smul.addr %s291, 8
        %s293 = scalar_lea.vmem [#allocation9], %s292
        %s294 = sand.u32 %s17, 1
        %s295 = sand.u32 %s17, 1
        %s296 = smul.addr %s295, 2
        %s297 = scalar_lea.vmem [#allocation11], %s296
        %s298 = sand.u32 %s17, 1
        %s299 = sand.u32 %s17, 1
        %s300 = smul.addr %s299, 2
        %s301 = scalar_lea.vmem [#allocation13], %s300
        %s302 = sand.u32 %s17, 1
        %s303 = sand.u32 %s17, 1
        %s304 = smul.addr %s303, 2
        %s305 = scalar_lea.vmem [#allocation15], %s304
        %s306 = sand.u32 %s17, 1
        %s307 = sand.u32 %s17, 1
        %s308 = smul.addr %s307, 2
        %s309 = scalar_lea.vmem [#allocation17], %s308
        %s311 = ssub.s32 4, 1
        %v312 = vld [vmem:[%s269] sm:%s311]
        %313 = vst [vmem:[#allocation0] sm:%s311] %v312
        %s315 = ssub.s32 4, 1
        %v316 = vld [vmem:[%s273] sm:%s315]
        %317 = vst [vmem:[#allocation2] sm:%s315] %v316
        %s319 = ssub.s32 4, 1
        %v320 = vld [vmem:[%s277] sm:%s319]
        %321 = vst [vmem:[#allocation4] sm:%s319] %v320
        %s323 = ssub.s32 4, 1
        %v324 = vld [vmem:[%s281] sm:%s323]
        %325 = vst [vmem:[#allocation6] sm:%s323] %v324
        %s326 = sshrl.u32 %s17, 3
        %s327 = sshrl.u32 %s17, 3
        %s328 = smov [#allocation18]
        %v329 = vld [vmem:[#allocation0] sm:$0xff]
        %330 = vst [vmem:[%s328] sm:$0xff] %v329
        %s331 = smov [#allocation19]
        %v332 = vld [vmem:[#allocation2] sm:$0xff]
        %333 = vst [vmem:[%s331] sm:$0xff] %v332
        %s334 = smov [#allocation20]
        %v335 = vld [vmem:[#allocation4] sm:$0xff]
        %336 = vst [vmem:[%s334] sm:$0xff] %v335
        %s337 = smov [#allocation21]
        %v338 = vld [vmem:[#allocation6] sm:$0xff]
        %339 = vst [vmem:[%s337] sm:$0xff] %v338
        %340 = vst [vmem:[#allocation10] sm:$0xff] 0.0
        %341 = vst [vmem:[#allocation12] sm:$0xff] 0.0
        %342 = vst [vmem:[#allocation14] sm:$0xff] 0.0
        %343 = vst [vmem:[#allocation16] sm:$0xff] 0.0
        %s344 = smov [#allocation10]
        %v345 = vlaneseq
        %v346 = vand.u32 %v345, 127
        %v347 = vmov %v346
        %v348 = vlaneseq
        %v349 = vshrl.u32 %v348, 7
        %v350 = vmov %v349
        %v351 = vld [vmem:[%s344] sm:$0x3]
        %vm354 = vcmp.eq.s32.totalorder %v350, %v347
        %v355 = vsel %vm354, 1.0, %v351
        %356 = vst [vmem:[%s344] sm:$0x3] %v355
        %s357 = smov [#allocation16]
        %v358 = vlaneseq
        %v359 = vand.u32 %v358, 127
        %v360 = vmov %v359
        %v361 = vlaneseq
        %v362 = vshrl.u32 %v361, 7
        %v363 = vmov %v362
        %v364 = vld [vmem:[%s357] sm:$0x3]
        %vm367 = vcmp.eq.s32.totalorder %v363, %v360
        %v368 = vsel %vm367, 1.0, %v364
        %369 = vst [vmem:[%s357] sm:$0x3] %v368
        // While loop
        $region141: #{custom-call.16} parent=139 // loop_pre_header
          _
        $region142: #{custom-call.16} parent=139 // loop_header
          %s371 = sphi 0, %s953
          %v372 = vlaneseq
          %v373 = vand.u32 %v372, 127
          %v374 = vmov %v373
          %v375 = vlaneseq
          %v376 = vshrl.u32 %v375, 7
          %v377 = vmov %v376
          %s378 = smov [#allocation18]
          %v379 = vlaneseq
          %v380 = vand.u32 %v379, 127
          %vm381 = vcmp.ge.s32.totalorder %v380, 0
          %vm382 = vcmp.lt.s32.totalorder %v380, 2
          %vm383 = vmand %vm381, %vm382
          %v384 = vld [vmem:[%s378] sm:$0x3]
          %v385 = vsel %vm383, %v384, 0.0
          %v386 = vmul.f32 %v385, %v385
          %vm389 = vcmp.eq.s32.totalorder %v377, %v374
          %v390 = vsel %vm389, 0.0, %v386
          %v391 = vlaneseq
          %v392 = vand.u32 %v391, 127
          %v393 = vmov %v392
          %v394 = vlaneseq
          %v395 = vshrl.u32 %v394, 7
          %v396 = vmov %v395
          %s397 = smov [#allocation19]
          %v398 = vlaneseq
          %v399 = vand.u32 %v398, 127
          %vm400 = vcmp.ge.s32.totalorder %v399, 0
          %vm401 = vcmp.lt.s32.totalorder %v399, 2
          %vm402 = vmand %vm400, %vm401
          %v403 = vld [vmem:[%s397] sm:$0x3]
          %v404 = vsel %vm402, %v403, 0.0
          %v405 = vmul.f32 %v404, %v404
          %v406 = vadd.f32 %v390, %v405
          %v407 = vadd.f32 %v386, %v405
          %v408 = vlaneseq
          %v409 = vand.u32 %v408, 127
          %v410 = vmov %v409
          %v411 = vlaneseq
          %v412 = vshrl.u32 %v411, 7
          %v413 = vmov %v412
          %s414 = smov [#allocation20]
          %v415 = vlaneseq
          %v416 = vand.u32 %v415, 127
          %vm417 = vcmp.ge.s32.totalorder %v416, 0
          %vm418 = vcmp.lt.s32.totalorder %v416, 2
          %vm419 = vmand %vm417, %vm418
          %v420 = vld [vmem:[%s414] sm:$0x3]
          %v421 = vsel %vm419, %v420, 0.0
          %v422 = vmul.f32 %v421, %v421
          %v423 = vadd.f32 %v406, %v422
          %v424 = vadd.f32 %v407, %v422
          %v425 = vlaneseq
          %v426 = vand.u32 %v425, 127
          %v427 = vmov %v426
          %v428 = vlaneseq
          %v429 = vshrl.u32 %v428, 7
          %v430 = vmov %v429
          %s431 = smov [#allocation21]
          %v432 = vlaneseq
          %v433 = vand.u32 %v432, 127
          %vm434 = vcmp.ge.s32.totalorder %v433, 0
          %vm435 = vcmp.lt.s32.totalorder %v433, 2
          %vm436 = vmand %vm434, %vm435
          %v437 = vld [vmem:[%s431] sm:$0x3]
          %v438 = vsel %vm436, %v437, 0.0
          %v439 = vmul.f32 %v438, %v438
          %vm442 = vcmp.eq.s32.totalorder %v430, %v427
          %v443 = vsel %vm442, 0.0, %v439
          %v444 = vadd.f32 %v423, %v443
          %v445 = vadd.f32 %v424, %v439
          %446 = vadd.xlane.f32.xlu0 %v445
          %v447 = vpop.xlane.xlu0 %446
          %v448 = vrot.slane %v447, 4
          %v449 = vadd.f32 %v447, %v448
          %v450 = vrot.slane %v449, 2
          %v451 = vadd.f32 %v449, %v450
          %v452 = vrot.slane %v451, 1
          %v453 = vadd.f32 %v451, %v452
          %454 = vadd.xlane.f32.xlu0 %v444
          %v455 = vpop.xlane.xlu0 %454
          %v456 = vrot.slane %v455, 4
          %v457 = vadd.f32 %v455, %v456
          %v458 = vrot.slane %v457, 2
          %v459 = vadd.f32 %v457, %v458
          %v460 = vrot.slane %v459, 1
          %v461 = vadd.f32 %v459, %v460
          %s462 = vtos %v461
          %s463 = vtos %v453
          %s464 = smul.f32 1e-10, %s463
          %p465 = scmp.le.f32.partialorder %s462, %s464
          %p466 = scmp.ge.s32.totalorder %s371, 15
          %p467 = por %p465, %p466
        $region143: #{custom-call.16} parent=139 // loop_header_branch
          %955 = sbr.rel (%p467) target = $region147
        $region144: #{custom-call.16} parent=139 // loop_body
          loop: start=0, step=1, limit=3
          $region148: #{custom-call.16} parent=144 // loop_pre_header
            _
          $region149: #{custom-call.16} parent=144 // loop_header
            %s469 = sphi 0, %s473
            %p470 = scmp.ge.s32.totalorder %s469, 3
          $region150: #{custom-call.16} parent=144 // loop_header_branch
            %472 = sbr.rel (%p470) target = $region154
          $region151: #{custom-call.16} parent=144 // loop_body
            #allocation22 [shape = 'f32[1024]{0}', space=vmem, size = 0x1000, scoped, tag = 'a_tl_diag vmem']
            #allocation23 [shape = 'f32[1024]{0}', space=vmem, size = 0x1000, scoped, tag = 'a_tr_diag vmem']
            #allocation24 [shape = 'f32[1024]{0}', space=vmem, size = 0x1000, scoped, tag = 'a_br_diag vmem']
            #allocation25 [shape = 'f32[1024]{0}', space=vmem, size = 0x1000, scoped, tag = 'rt1 vmem']
            #allocation26 [shape = 'f32[1024]{0}', space=vmem, size = 0x1000, scoped, tag = 'rt2 vmem']
            #allocation27 [shape = 'f32[1024]{0}', space=vmem, size = 0x1000, scoped, tag = 'c vmem']
            #allocation28 [shape = 'f32[1024]{0}', space=vmem, size = 0x1000, scoped, tag = 's vmem']
            #allocation29 [shape = 'f32[4096]{0}', space=vmem, size = 0x4000, scoped, tag = 'c broadcast']
            #allocation30 [shape = 'f32[4096]{0}', space=vmem, size = 0x4000, scoped, tag = 's broadcast']
            %s474 = smov [#allocation18]
            %s475 = smov [#allocation22]
            %v476 = vlaneseq
            %v477 = vand.u32 %v476, 127
            %v478 = vmov %v477
            %v479 = vlaneseq
            %v480 = vshrl.u32 %v479, 7
            %v481 = vmov %v480
            %v482 = vld [vmem:[%s474] sm:$0x3]
            %vm485 = vcmp.eq.s32.totalorder %v481, %v478
            %v486 = vsel %vm485, %v482, 0.0
            %v487 = vrot.slane %v486, 4
            %v488 = vadd.f32 %v486, %v487
            %v489 = vrot.slane %v488, 2
            %v490 = vadd.f32 %v488, %v489
            %v491 = vrot.slane %v490, 1
            %v492 = vadd.f32 %v490, %v491
            %493 = vst [vmem:[%s475] sm:$0x1] %v492
            %s494 = smov [#allocation19]
            %s495 = smov [#allocation23]
            %v496 = vlaneseq
            %v497 = vand.u32 %v496, 127
            %v498 = vmov %v497
            %v499 = vlaneseq
            %v500 = vshrl.u32 %v499, 7
            %v501 = vmov %v500
            %v502 = vld [vmem:[%s494] sm:$0x3]
            %vm505 = vcmp.eq.s32.totalorder %v501, %v498
            %v506 = vsel %vm505, %v502, 0.0
            %v507 = vrot.slane %v506, 4
            %v508 = vadd.f32 %v506, %v507
            %v509 = vrot.slane %v508, 2
            %v510 = vadd.f32 %v508, %v509
            %v511 = vrot.slane %v510, 1
            %v512 = vadd.f32 %v510, %v511
            %513 = vst [vmem:[%s495] sm:$0x1] %v512
            %s514 = smov [#allocation21]
            %s515 = smov [#allocation24]
            %v516 = vlaneseq
            %v517 = vand.u32 %v516, 127
            %v518 = vmov %v517
            %v519 = vlaneseq
            %v520 = vshrl.u32 %v519, 7
            %v521 = vmov %v520
            %v522 = vld [vmem:[%s514] sm:$0x3]
            %vm525 = vcmp.eq.s32.totalorder %v521, %v518
            %v526 = vsel %vm525, %v522, 0.0
            %v527 = vrot.slane %v526, 4
            %v528 = vadd.f32 %v526, %v527
            %v529 = vrot.slane %v528, 2
            %v530 = vadd.f32 %v528, %v529
            %v531 = vrot.slane %v530, 1
            %v532 = vadd.f32 %v530, %v531
            %533 = vst [vmem:[%s515] sm:$0x1] %v532
            %s534 = smov [#allocation27]
            %s535 = smov [#allocation28]
            %s536 = smov [#allocation22]
            %v537 = vld [vmem:[%s536] sm:$0xff]
            %s538 = smov [#allocation23]
            %v539 = vld [vmem:[%s538] sm:$0xff]
            %s540 = smov [#allocation24]
            %v541 = vld [vmem:[%s540] sm:$0xff]
            %v542 = vsub.f32 %v541, %v537
            %v543 = vmul.f32 2.0, %v539
            %v544 = vrcp.pop %v543
            %v545 = vmul.f32 %v543, %v544
            %v546 = vsub.f32 1.0, %v545
            %v547 = vmul.f32 %v544, %v546
            %v548 = vadd.f32 %v544, %v547
            %vm549 = vweird.f32 %v543
            %vm550 = vweird.f32 %v544
            %vm551 = vmor %vm549, %vm550
            %v552 = vsel %vm551, %v544, %v548
            %v553 = vand.u32 2147483647, %v543
            %vm554 = vcmp.eq.f32.partialorder %v553, 8.507059e+37
            %v555 = vand.u32 %v543, 2147483648
            %v556 = vor.u32 1.1754944e-38, %v555
            %v557 = vsel %vm554, %v556, %v552
            %v558 = vmul.f32 %v542, %v557
            %vm559 = vcmp.ge.f32.partialorder %v558, 0.0
            %v560 = vmul.f32 %v558, %v558
            %v561 = vadd.f32 1.0, %v560
            %v562 = vrsqrt.pop %v561
            %v563 = vmul.f32 %v562, %v561
            %v564 = vmul.f32 %v563, %v562
            %v565 = vmul.f32 0.5, %v564
            %v566 = vsub.f32 1.5, %v565
            %v567 = vmul.f32 %v562, %v566
            %v568 = vmul.f32 %v561, %v567
            %vm569 = vcmp.eq.f32.partialorder %v561, inf
            %v570 = vsel %vm569, %v561, %v568
            %vm571 = vcmp.eq.f32.partialorder %v561, 0.0
            %v572 = vand.u32 %v561, 2147483648
            %v573 = vsel %vm571, %v572, %v570
            %v574 = vxor.u32 %v573, 2147483648
            %v575 = vsel %vm559, %v573, %v574
            %v576 = vadd.f32 %v558, %v575
            %v577 = vrcp.pop %v576
            %v578 = vmul.f32 %v576, %v577
            %v579 = vsub.f32 1.0, %v578
            %v580 = vmul.f32 %v577, %v579
            %v581 = vadd.f32 %v577, %v580
            %vm582 = vweird.f32 %v576
            %vm583 = vweird.f32 %v577
            %vm584 = vmor %vm582, %vm583
            %v585 = vsel %vm584, %v577, %v581
            %v586 = vand.u32 2147483647, %v576
            %vm587 = vcmp.eq.f32.partialorder %v586, 8.507059e+37
            %v588 = vand.u32 %v576, 2147483648
            %v589 = vor.u32 1.1754944e-38, %v588
            %v590 = vsel %vm587, %v589, %v585
            %v591 = vand.u32 2147483647, %v537
            %v592 = vand.u32 2147483647, %v539
            %v593 = vand.u32 2147483647, %v541
            %v594 = vmin.f32 %v591, %v593
            %v595 = vmul.f32 1.1920929e-08, %v594
            %vm596 = vcmp.le.f32.partialorder %v592, %v595
            %v597 = vsel %vm596, 0.0, %v590
            %v598 = vmul.f32 %v597, %v597
            %v599 = vadd.f32 1.0, %v598
            %v600 = vrsqrt.pop %v599
            %v601 = vmul.f32 %v600, %v599
            %v602 = vmul.f32 %v601, %v600
            %v603 = vmul.f32 0.5, %v602
            %v604 = vsub.f32 1.5, %v603
            %v605 = vmul.f32 %v600, %v604
            %vm606 = vweird.f32 %v599
            %vm607 = vweird.f32 %v600
            %vm608 = vmor %vm606, %vm607
            %v609 = vsel %vm608, %v600, %v605
            %v610 = vmul.f32 %v597, %v609
            %v611 = vmul.f32 %v597, %v539
            %v612 = vsub.f32 %v537, %v611
            %v613 = vmul.f32 %v597, %v539
            %v614 = vadd.f32 %v541, %v613
            %s615 = smov [#allocation25]
            %616 = vst [vmem:[%s615] sm:$0xff] %v612
            %s617 = smov [#allocation26]
            %618 = vst [vmem:[%s617] sm:$0xff] %v614
            %s619 = smov %s534
            %620 = vst [vmem:[%s619] sm:$0xff] %v609
            %s621 = smov %s535
            %622 = vst [vmem:[%s621] sm:$0xff] %v610
            %s623 = smov [#allocation27]
            %v624 = vld [vmem:[%s623] ss:$0 sm:$0xff]
            %v625 = vlaneseq
            %v626 = vand.u32 %v625, 127
            %v627 = vmov %v626
            %v628 = vlaneseq
            %v629 = vshrl.u32 %v628, 7
            %v630 = vmov %v629
            %vm632 = vcmp.eq.s32.totalorder %v630, %v627
            %v633 = vsel %vm632, %v624, 0.0
            %634 = vadd.xlane.f32.xlu0 %v633
            %v635 = vpop.xlane.xlu0 %634
            %s636 = smov [#allocation29]
            %637 = vst [vmem:[%s636] sm:$0xff] %v635
            %s638 = smov [#allocation28]
            %v639 = vld [vmem:[%s638] ss:$0 sm:$0xff]
            %v640 = vlaneseq
            %v641 = vand.u32 %v640, 127
            %v642 = vmov %v641
            %v643 = vlaneseq
            %v644 = vshrl.u32 %v643, 7
            %v645 = vmov %v644
            %vm647 = vcmp.eq.s32.totalorder %v645, %v642
            %v648 = vsel %vm647, %v639, 0.0
            %649 = vadd.xlane.f32.xlu0 %v648
            %v650 = vpop.xlane.xlu0 %649
            %s651 = smov [#allocation30]
            %652 = vst [vmem:[%s651] sm:$0xff] %v650
            %s653 = smov [#allocation29]
            %v654 = vld [vmem:[%s653] sm:$0xff]
            %s655 = smov [#allocation30]
            %v656 = vld [vmem:[%s655] sm:$0xff]
            %s657 = smov [#allocation18]
            %s658 = smov [#allocation19]
            %s659 = smov [#allocation20]
            %s660 = smov [#allocation21]
            %v661 = vld [vmem:[%s657] sm:$0x3]
            %v662 = vld [vmem:[%s658] sm:$0x3]
            %v663 = vld [vmem:[%s659] sm:$0x3]
            %v664 = vld [vmem:[%s660] sm:$0x3]
            %v665 = vmul.f32 %v654, %v661
            %v666 = vmul.f32 %v656, %v663
            %v667 = vsub.f32 %v665, %v666
            %v668 = vmul.f32 %v654, %v662
            %v669 = vmul.f32 %v656, %v664
            %v670 = vsub.f32 %v668, %v669
            %v671 = vmul.f32 %v656, %v661
            %v672 = vmul.f32 %v654, %v663
            %v673 = vadd.f32 %v671, %v672
            %v674 = vmul.f32 %v656, %v662
            %v675 = vmul.f32 %v654, %v664
            %v676 = vadd.f32 %v674, %v675
            %677 = vst [vmem:[%s657] sm:$0x3] %v667
            %678 = vst [vmem:[%s658] sm:$0x3] %v670
            %679 = vst [vmem:[%s659] sm:$0x3] %v673
            %680 = vst [vmem:[%s660] sm:$0x3] %v676
            %s681 = smov [#allocation27]
            %v682 = vld [vmem:[%s681] ss:$0 sm:$0xff]
            %s683 = smov [#allocation28]
            %v684 = vld [vmem:[%s683] ss:$0 sm:$0xff]
            %s685 = smov [#allocation18]
            %s686 = smov [#allocation19]
            %s687 = smov [#allocation20]
            %s688 = smov [#allocation21]
            %v689 = vld [vmem:[%s685] sm:$0x3]
            %v690 = vld [vmem:[%s686] sm:$0x3]
            %v691 = vld [vmem:[%s687] sm:$0x3]
            %v692 = vld [vmem:[%s688] sm:$0x3]
            %v693 = vmul.f32 %v682, %v689
            %v694 = vmul.f32 %v684, %v690
            %v695 = vsub.f32 %v693, %v694
            %v696 = vmul.f32 %v684, %v689
            %v697 = vmul.f32 %v682, %v690
            %v698 = vadd.f32 %v696, %v697
            %v699 = vmul.f32 %v682, %v691
            %v700 = vmul.f32 %v684, %v692
            %v701 = vsub.f32 %v699, %v700
            %v702 = vmul.f32 %v684, %v691
            %v703 = vmul.f32 %v682, %v692
            %v704 = vadd.f32 %v702, %v703
            %705 = vst [vmem:[%s685] sm:$0x3] %v695
            %706 = vst [vmem:[%s686] sm:$0x3] %v698
            %707 = vst [vmem:[%s687] sm:$0x3] %v701
            %708 = vst [vmem:[%s688] sm:$0x3] %v704
            %s709 = smov [#allocation18]
            %s710 = smov [#allocation25]
            %v711 = vlaneseq
            %v712 = vand.u32 %v711, 127
            %v713 = vmov %v712
            %v714 = vlaneseq
            %v715 = vshrl.u32 %v714, 7
            %v716 = vmov %v715
            %v717 = vld [vmem:[%s710] ss:$0 sm:$0xff]
            %v718 = vld [vmem:[%s709] sm:$0x3]
            %vm721 = vcmp.eq.s32.totalorder %v716, %v713
            %v722 = vsel %vm721, %v717, %v718
            %723 = vst [vmem:[%s709] sm:$0x3] %v722
            %s724 = smov [#allocation19]
            %v725 = vlaneseq
            %v726 = vand.u32 %v725, 127
            %v727 = vmov %v726
            %v728 = vlaneseq
            %v729 = vshrl.u32 %v728, 7
            %v730 = vmov %v729
            %v731 = vld [vmem:[%s724] sm:$0x3]
            %vm734 = vcmp.eq.s32.totalorder %v730, %v727
            %v735 = vsel %vm734, 0.0, %v731
            %736 = vst [vmem:[%s724] sm:$0x3] %v735
            %s737 = smov [#allocation20]
            %v738 = vlaneseq
            %v739 = vand.u32 %v738, 127
            %v740 = vmov %v739
            %v741 = vlaneseq
            %v742 = vshrl.u32 %v741, 7
            %v743 = vmov %v742
            %v744 = vld [vmem:[%s737] sm:$0x3]
            %vm747 = vcmp.eq.s32.totalorder %v743, %v740
            %v748 = vsel %vm747, 0.0, %v744
            %749 = vst [vmem:[%s737] sm:$0x3] %v748
            %s750 = smov [#allocation21]
            %s751 = smov [#allocation26]
            %v752 = vlaneseq
            %v753 = vand.u32 %v752, 127
            %v754 = vmov %v753
            %v755 = vlaneseq
            %v756 = vshrl.u32 %v755, 7
            %v757 = vmov %v756
            %v758 = vld [vmem:[%s751] ss:$0 sm:$0xff]
            %v759 = vld [vmem:[%s750] sm:$0x3]
            %vm762 = vcmp.eq.s32.totalorder %v757, %v754
            %v763 = vsel %vm762, %v758, %v759
            %764 = vst [vmem:[%s750] sm:$0x3] %v763
            %s765 = smov [#allocation18]
            %s766 = smov [#allocation19]
            %v767 = vld [vmem:[%s766] sm:$0x3]
            %768 = vrot.lane.b32.xlu0 %v767, 1
            %v769 = vpop.permute.xlu0 %768
            %v770 = vld [vmem:[%s765] sm:$0x3]
            %v771 = vld [vmem:[%s765] sm:$0x3]
            %772 = vrot.lane.b32.xlu0 %v771, 1
            %v773 = vpop.permute.xlu0 %772
            %v774 = vlaneseq
            %v775 = vand.u32 %v774, 127
            %vm776 = vcmp.eq.s32.totalorder %v775, 0
            %v777 = vsel %vm776, %v771, %v773
            %v778 = vlaneseq
            %v779 = vand.u32 %v778, 127
            %vm780 = vcmp.eq.s32.totalorder %v779, 1
            %v781 = vsel %vm780, %v769, %v777
            %v782 = vlaneseq
            %v783 = vand.u32 %v782, 127
            %vm784 = vcmp.ge.s32.totalorder %v783, 0
            %vm785 = vcmp.lt.s32.totalorder %v783, 2
            %vm786 = vmand %vm784, %vm785
            %v787 = vsel %vm786, %v781, 0.0
            %v788 = vld [vmem:[%s766] sm:$0x3]
            %789 = vrot.lane.b32.xlu0 %v788, 127
            %v790 = vpop.permute.xlu0 %789
            %v791 = vlaneseq
            %v792 = vand.u32 %v791, 127
            %vm793 = vcmp.eq.s32.totalorder %v792, 1
            %v794 = vsel %vm793, %v770, %v790
            %795 = vst [vmem:[%s765] sm:$0x3] %v787
            %796 = vst [vmem:[%s766] sm:$0x3] %v794
            %s797 = smov [#allocation20]
            %s798 = smov [#allocation21]
            %v799 = vld [vmem:[%s798] sm:$0x3]
            %800 = vrot.lane.b32.xlu0 %v799, 1
            %v801 = vpop.permute.xlu0 %800
            %v802 = vld [vmem:[%s797] sm:$0x3]
            %v803 = vld [vmem:[%s797] sm:$0x3]
            %804 = vrot.lane.b32.xlu0 %v803, 1
            %v805 = vpop.permute.xlu0 %804
            %v806 = vlaneseq
            %v807 = vand.u32 %v806, 127
            %vm808 = vcmp.eq.s32.totalorder %v807, 0
            %v809 = vsel %vm808, %v803, %v805
            %v810 = vlaneseq
            %v811 = vand.u32 %v810, 127
            %vm812 = vcmp.eq.s32.totalorder %v811, 1
            %v813 = vsel %vm812, %v801, %v809
            %v814 = vlaneseq
            %v815 = vand.u32 %v814, 127
            %vm816 = vcmp.ge.s32.totalorder %v815, 0
            %vm817 = vcmp.lt.s32.totalorder %v815, 2
            %vm818 = vmand %vm816, %vm817
            %v819 = vsel %vm818, %v813, 0.0
            %v820 = vld [vmem:[%s798] sm:$0x3]
            %821 = vrot.lane.b32.xlu0 %v820, 127
            %v822 = vpop.permute.xlu0 %821
            %v823 = vlaneseq
            %v824 = vand.u32 %v823, 127
            %vm825 = vcmp.eq.s32.totalorder %v824, 1
            %v826 = vsel %vm825, %v802, %v822
            %827 = vst [vmem:[%s797] sm:$0x3] %v819
            %828 = vst [vmem:[%s798] sm:$0x3] %v826
            %s829 = smov [#allocation18]
            %s830 = smov [#allocation20]
            %v831 = vld [vmem:[%s829] ss:$0 sm:$0xff]
            %s833 = scalar_lea.vmem %s829, 4294967295
            %v834 = vld [vmem:[%s833] sm:$0x2]
            %v835 = vlaneseq
            %v836 = vshrl.u32 %v835, 7
            %vm837 = vcmp.eq.s32.totalorder %v836, 0
            %v838 = vsel %vm837, %v831, %v834
            %s839 = scalar_lea.vmem %s829, 1
            %v840 = vld [vmem:[%s839] ss:$0 sm:$0xff]
            %841 = vst [vmem:[%s829] sm:$0x3] %v838
            %v842 = vld [vmem:[%s830] ss:$0 sm:$0xff]
            %s843 = scalar_lea.vmem %s829, 1
            %844 = vst [vmem:[%s843] sm:$0x1] %v842
            %s845 = scalar_lea.vmem %s830, 1
            %v846 = vld [vmem:[%s845] sm:$0x1]
            %v847 = vlaneseq
            %v848 = vshrl.u32 %v847, 7
            %vm849 = vcmp.eq.s32.totalorder %v848, 1
            %v850 = vsel %vm849, %v840, %v846
            %v851 = vld [vmem:[%s830] ss:$0 sm:$0xff]
            %852 = vst [vmem:[%s830] sm:$0x3] %v850
            %s853 = smov [#allocation19]
            %s854 = smov [#allocation21]
            %v855 = vld [vmem:[%s853] ss:$0 sm:$0xff]
            %s857 = scalar_lea.vmem %s853, 4294967295
            %v858 = vld [vmem:[%s857] sm:$0x2]
            %v859 = vlaneseq
            %v860 = vshrl.u32 %v859, 7
            %vm861 = vcmp.eq.s32.totalorder %v860, 0
            %v862 = vsel %vm861, %v855, %v858
            %s863 = scalar_lea.vmem %s853, 1
            %v864 = vld [vmem:[%s863] ss:$0 sm:$0xff]
            %865 = vst [vmem:[%s853] sm:$0x3] %v862
            %v866 = vld [vmem:[%s854] ss:$0 sm:$0xff]
            %s867 = scalar_lea.vmem %s853, 1
            %868 = vst [vmem:[%s867] sm:$0x1] %v866
            %s869 = scalar_lea.vmem %s854, 1
            %v870 = vld [vmem:[%s869] sm:$0x1]
            %v871 = vlaneseq
            %v872 = vshrl.u32 %v871, 7
            %vm873 = vcmp.eq.s32.totalorder %v872, 1
            %v874 = vsel %vm873, %v864, %v870
            %v875 = vld [vmem:[%s854] ss:$0 sm:$0xff]
            %876 = vst [vmem:[%s854] sm:$0x3] %v874
            %s877 = smov [#allocation29]
            %v878 = vld [vmem:[%s877] sm:$0xff]
            %s879 = smov [#allocation30]
            %v880 = vld [vmem:[%s879] sm:$0xff]
            %s881 = smov [#allocation10]
            %s882 = smov [#allocation12]
            %s883 = smov [#allocation14]
            %s884 = smov [#allocation16]
            %v885 = vld [vmem:[%s881] sm:$0x3]
            %v886 = vld [vmem:[%s882] sm:$0x3]
            %v887 = vld [vmem:[%s883] sm:$0x3]
            %v888 = vld [vmem:[%s884] sm:$0x3]
            %v889 = vmul.f32 %v878, %v885
            %v890 = vmul.f32 %v880, %v887
            %v891 = vsub.f32 %v889, %v890
            %v892 = vmul.f32 %v878, %v886
            %v893 = vmul.f32 %v880, %v888
            %v894 = vsub.f32 %v892, %v893
            %v895 = vmul.f32 %v880, %v885
            %v896 = vmul.f32 %v878, %v887
            %v897 = vadd.f32 %v895, %v896
            %v898 = vmul.f32 %v880, %v886
            %v899 = vmul.f32 %v878, %v888
            %v900 = vadd.f32 %v898, %v899
            %901 = vst [vmem:[%s881] sm:$0x3] %v891
            %902 = vst [vmem:[%s882] sm:$0x3] %v894
            %903 = vst [vmem:[%s883] sm:$0x3] %v897
            %904 = vst [vmem:[%s884] sm:$0x3] %v900
            %s905 = smov [#allocation10]
            %s906 = smov [#allocation14]
            %v907 = vld [vmem:[%s905] ss:$0 sm:$0xff]
            %s909 = scalar_lea.vmem %s905, 4294967295
            %v910 = vld [vmem:[%s909] sm:$0x2]
            %v911 = vlaneseq
            %v912 = vshrl.u32 %v911, 7
            %vm913 = vcmp.eq.s32.totalorder %v912, 0
            %v914 = vsel %vm913, %v907, %v910
            %s915 = scalar_lea.vmem %s905, 1
            %v916 = vld [vmem:[%s915] ss:$0 sm:$0xff]
            %917 = vst [vmem:[%s905] sm:$0x3] %v914
            %v918 = vld [vmem:[%s906] ss:$0 sm:$0xff]
            %s919 = scalar_lea.vmem %s905, 1
            %920 = vst [vmem:[%s919] sm:$0x1] %v918
            %s921 = scalar_lea.vmem %s906, 1
            %v922 = vld [vmem:[%s921] sm:$0x1]
            %v923 = vlaneseq
            %v924 = vshrl.u32 %v923, 7
            %vm925 = vcmp.eq.s32.totalorder %v924, 1
            %v926 = vsel %vm925, %v916, %v922
            %v927 = vld [vmem:[%s906] ss:$0 sm:$0xff]
            %928 = vst [vmem:[%s906] sm:$0x3] %v926
            %s929 = smov [#allocation12]
            %s930 = smov [#allocation16]
            %v931 = vld [vmem:[%s929] ss:$0 sm:$0xff]
            %s933 = scalar_lea.vmem %s929, 4294967295
            %v934 = vld [vmem:[%s933] sm:$0x2]
            %v935 = vlaneseq
            %v936 = vshrl.u32 %v935, 7
            %vm937 = vcmp.eq.s32.totalorder %v936, 0
            %v938 = vsel %vm937, %v931, %v934
            %s939 = scalar_lea.vmem %s929, 1
            %v940 = vld [vmem:[%s939] ss:$0 sm:$0xff]
            %941 = vst [vmem:[%s929] sm:$0x3] %v938
            %v942 = vld [vmem:[%s930] ss:$0 sm:$0xff]
            %s943 = scalar_lea.vmem %s929, 1
            %944 = vst [vmem:[%s943] sm:$0x1] %v942
            %s945 = scalar_lea.vmem %s930, 1
            %v946 = vld [vmem:[%s945] sm:$0x1]
            %v947 = vlaneseq
            %v948 = vshrl.u32 %v947, 7
            %vm949 = vcmp.eq.s32.totalorder %v948, 1
            %v950 = vsel %vm949, %v940, %v946
            %v951 = vld [vmem:[%s930] ss:$0 sm:$0xff]
            %952 = vst [vmem:[%s930] sm:$0x3] %v950
          $region152: #{custom-call.16} parent=144 // loop_footer
            %s473 = sadd.s32 1, %s469
          $region153: #{custom-call.16} parent=144 // loop_footer_branch
            %468 = sbr.rel target = $region149
          $region154: #{custom-call.16} parent=144 // loop_exit
            _
          %s953 = sadd.s32 %s371, 1
        $region145: #{custom-call.16} parent=139 // loop_footer
          _
        $region146: #{custom-call.16} parent=139 // loop_footer_branch
          %370 = sbr.rel target = $region142
        $region147: #{custom-call.16} parent=139 // loop_exit
          _
        %s956 = sand.u32 %s17, 7
        %s957 = scalar_lea.vmem %s287, %s956 [#allocation8]
        %s958 = sand.u32 %s17, 7
        %s959 = scalar_lea.vmem %s293, %s958 [#allocation9]
        %s960 = smov [#allocation18]
        %s961 = smov %s957
        %v962 = vlaneseq
        %v963 = vand.u32 %v962, 127
        %v964 = vmov %v963
        %v965 = vlaneseq
        %v966 = vshrl.u32 %v965, 7
        %v967 = vmov %v966
        %v968 = vld [vmem:[%s960] sm:$0x3]
        %vm971 = vcmp.eq.s32.totalorder %v967, %v964
        %v972 = vsel %vm971, %v968, 0.0
        %v973 = vrot.slane %v972, 4
        %v974 = vadd.f32 %v972, %v973
        %v975 = vrot.slane %v974, 2
        %v976 = vadd.f32 %v974, %v975
        %v977 = vrot.slane %v976, 1
        %v978 = vadd.f32 %v976, %v977
        %979 = vst [vmem:[%s961] sm:$0x1] %v978
        %s980 = smov [#allocation21]
        %s981 = smov %s959
        %v982 = vlaneseq
        %v983 = vand.u32 %v982, 127
        %v984 = vmov %v983
        %v985 = vlaneseq
        %v986 = vshrl.u32 %v985, 7
        %v987 = vmov %v986
        %v988 = vld [vmem:[%s980] sm:$0x3]
        %vm991 = vcmp.eq.s32.totalorder %v987, %v984
        %v992 = vsel %vm991, %v988, 0.0
        %v993 = vrot.slane %v992, 4
        %v994 = vadd.f32 %v992, %v993
        %v995 = vrot.slane %v994, 2
        %v996 = vadd.f32 %v994, %v995
        %v997 = vrot.slane %v996, 1
        %v998 = vadd.f32 %v996, %v997
        %999 = vst [vmem:[%s981] sm:$0x1] %v998
        %s1001 = ssub.s32 4, 1
        %v1002 = vld [vmem:[#allocation10] sm:%s1001]
        %s1004 = ssub.s32 4, 1
        %1005 = vst [vmem:[%s297] sm:%s1004] %v1002
        %s1007 = ssub.s32 4, 1
        %v1008 = vld [vmem:[#allocation12] sm:%s1007]
        %s1010 = ssub.s32 4, 1
        %1011 = vst [vmem:[%s301] sm:%s1010] %v1008
        %s1013 = ssub.s32 4, 1
        %v1014 = vld [vmem:[#allocation14] sm:%s1013]
        %s1016 = ssub.s32 4, 1
        %1017 = vst [vmem:[%s305] sm:%s1016] %v1014
        %s1019 = ssub.s32 4, 1
        %v1020 = vld [vmem:[#allocation16] sm:%s1019]
        %s1022 = ssub.s32 4, 1
        %1023 = vst [vmem:[%s309] sm:%s1022] %v1020
        %s1024 = sand.u32 %s27, 1
        %s1025 = sand.u32 %s27, 1
        %s1026 = smul.addr %s1025, 8
        %s1027 = scalar_lea.vmem [#allocation8], %s1026
        %s1028 = sand.u32 %s55, 1
        %s1029 = sand.u32 %s55, 1
        %s1030 = smul.addr %s1029, 8
        %s1031 = scalar_lea.vmem [#allocation9], %s1030
        %s1032 = sand.u32 %s17, 1
        %s1033 = sand.u32 %s17, 1
        %s1034 = smul.addr %s1033, 2
        %s1035 = scalar_lea.vmem [#allocation11], %s1034
        %s1036 = sand.u32 %s17, 1
        %s1037 = sand.u32 %s17, 1
        %s1038 = smul.addr %s1037, 2
        %s1039 = scalar_lea.vmem [#allocation13], %s1038
        %s1040 = sand.u32 %s17, 1
        %s1041 = sand.u32 %s17, 1
        %s1042 = smul.addr %s1041, 2
        %s1043 = scalar_lea.vmem [#allocation15], %s1042
        %s1044 = sand.u32 %s17, 1
        %s1045 = sand.u32 %s17, 1
        %s1046 = smul.addr %s1045, 2
        %s1047 = scalar_lea.vmem [#allocation17], %s1046
        // Predicated region
        $region155: #{custom-call.16} parent=139 // pred_check
          %p1048 = pneg %p37
        $region156: #{custom-call.16} parent=139 // pred_check_branch
          %1050 = sbr.rel (%p1048) target = $region158
        $region157: #{custom-call.16} parent=139 // pred_region
          %s1051 = sshrl.u32 %s17, 3
          %s1052 = smul.addr %s1051, 8
          %s1053 = scalar_lea.vmem %s4, %s1052
          // Predicated region
          $region159: #{custom-call.16} parent=157 // pred_check
            _
          $region160: #{custom-call.16} parent=157 // pred_check_branch
            %1055 = sbr.rel (0) target = $region162
          $region161: #{custom-call.16} parent=157 // pred_region
            // Predicated region
            $region163: #{custom-call.16} parent=161 // pred_check
              _
            $region164: #{custom-call.16} parent=161 // pred_check_branch
              %1057 = sbr.rel (0) target = $region166
            $region165: #{custom-call.16} parent=161 // pred_region
              // Predicated region
              $region178: #{custom-call.16} parent=165 // pred_check
                _
              $region179: #{custom-call.16} parent=165 // pred_check_branch
                %1073 = sbr.rel (0) target = $region181
              $region180: #{custom-call.16} parent=165 // pred_region
                loop: start=0, step=1, limit=1
                $region182: #{custom-call.16} parent=180 // loop_pre_header
                  _
                $region183: #{custom-call.16} parent=180 // loop_header
                  %s1075 = sphi 0, %s1079
                  %p1076 = scmp.ge.s32.totalorder %s1075, 1
                  %s1080 = sphi %s1027, %s1027
                  %s1081 = sphi %s1053, %s1053
                $region184: #{custom-call.16} parent=180 // loop_header_branch
                  %1078 = sbr.rel (%p1076) target = $region188
                $region185: #{custom-call.16} parent=180 // loop_body
                  %v1082 = vld [vmem:[%s1080] sm:$0xff]
                  %1083 = vst [vmem:[%s1081] sm:$0xff] %v1082
                $region186: #{custom-call.16} parent=180 // loop_footer
                  %s1079 = sadd.s32 1, %s1075
                $region187: #{custom-call.16} parent=180 // loop_footer_branch
                  %1074 = sbr.rel target = $region183
                $region188: #{custom-call.16} parent=180 // loop_exit
                  _
              $region181: #{custom-call.16} parent=165 // pred_fallthru
                _
              // Predicated region
              $region189: #{custom-call.16} parent=165 // pred_check
                _
              $region190: #{custom-call.16} parent=165 // pred_check_branch
                %1085 = sbr.rel target = $region192
              $region191: #{custom-call.16} parent=165 // pred_region
                _
              $region192: #{custom-call.16} parent=165 // pred_fallthru
                _
            $region166: #{custom-call.16} parent=161 // pred_fallthru
              _
            // Predicated region
            $region167: #{custom-call.16} parent=161 // pred_check
              _
            $region168: #{custom-call.16} parent=161 // pred_check_branch
              %1059 = sbr.rel target = $region170
            $region169: #{custom-call.16} parent=161 // pred_region
              %s1061 = ssub.s32 256, 1
              loop: start=0, step=1, limit=1
              $region171: #{custom-call.16} parent=169 // loop_pre_header
                _
              $region172: #{custom-call.16} parent=169 // loop_header
                %s1063 = sphi 0, %s1067
                %p1064 = scmp.ge.s32.totalorder %s1063, 1
                %s1068 = sphi %s1027, %s1027
                %s1069 = sphi %s1053, %s1053
              $region173: #{custom-call.16} parent=169 // loop_header_branch
                %1066 = sbr.rel (%p1064) target = $region177
              $region174: #{custom-call.16} parent=169 // loop_body
                %v1070 = vld [vmem:[%s1068] sm:%s1061]
                %1071 = vst [vmem:[%s1069] sm:%s1061] %v1070
              $region175: #{custom-call.16} parent=169 // loop_footer
                %s1067 = sadd.s32 1, %s1063
              $region176: #{custom-call.16} parent=169 // loop_footer_branch
                %1062 = sbr.rel target = $region172
              $region177: #{custom-call.16} parent=169 // loop_exit
                _
            $region170: #{custom-call.16} parent=161 // pred_fallthru
              _
          $region162: #{custom-call.16} parent=157 // pred_fallthru
            _
          %1086 = vnop
        $region158: #{custom-call.16} parent=139 // pred_fallthru
          _
        // Predicated region
        $region193: #{custom-call.16} parent=139 // pred_check
          %p1087 = pneg %p65
        $region194: #{custom-call.16} parent=139 // pred_check_branch
          %1089 = sbr.rel (%p1087) target = $region196
        $region195: #{custom-call.16} parent=139 // pred_region
          %s1090 = sshrl.u32 %s17, 3
          %s1091 = smul.addr %s1090, 8
          %s1092 = scalar_lea.vmem %s5, %s1091
          // Predicated region
          $region197: #{custom-call.16} parent=195 // pred_check
            _
          $region198: #{custom-call.16} parent=195 // pred_check_branch
            %1094 = sbr.rel (0) target = $region200
          $region199: #{custom-call.16} parent=195 // pred_region
            // Predicated region
            $region201: #{custom-call.16} parent=199 // pred_check
              _
            $region202: #{custom-call.16} parent=199 // pred_check_branch
              %1096 = sbr.rel (0) target = $region204
            $region203: #{custom-call.16} parent=199 // pred_region
              // Predicated region
              $region216: #{custom-call.16} parent=203 // pred_check
                _
              $region217: #{custom-call.16} parent=203 // pred_check_branch
                %1112 = sbr.rel (0) target = $region219
              $region218: #{custom-call.16} parent=203 // pred_region
                loop: start=0, step=1, limit=1
                $region220: #{custom-call.16} parent=218 // loop_pre_header
                  _
                $region221: #{custom-call.16} parent=218 // loop_header
                  %s1114 = sphi 0, %s1118
                  %p1115 = scmp.ge.s32.totalorder %s1114, 1
                  %s1119 = sphi %s1031, %s1031
                  %s1120 = sphi %s1092, %s1092
                $region222: #{custom-call.16} parent=218 // loop_header_branch
                  %1117 = sbr.rel (%p1115) target = $region226
                $region223: #{custom-call.16} parent=218 // loop_body
                  %v1121 = vld [vmem:[%s1119] sm:$0xff]
                  %1122 = vst [vmem:[%s1120] sm:$0xff] %v1121
                $region224: #{custom-call.16} parent=218 // loop_footer
                  %s1118 = sadd.s32 1, %s1114
                $region225: #{custom-call.16} parent=218 // loop_footer_branch
                  %1113 = sbr.rel target = $region221
                $region226: #{custom-call.16} parent=218 // loop_exit
                  _
              $region219: #{custom-call.16} parent=203 // pred_fallthru
                _
              // Predicated region
              $region227: #{custom-call.16} parent=203 // pred_check
                _
              $region228: #{custom-call.16} parent=203 // pred_check_branch
                %1124 = sbr.rel target = $region230
              $region229: #{custom-call.16} parent=203 // pred_region
                _
              $region230: #{custom-call.16} parent=203 // pred_fallthru
                _
            $region204: #{custom-call.16} parent=199 // pred_fallthru
              _
            // Predicated region
            $region205: #{custom-call.16} parent=199 // pred_check
              _
            $region206: #{custom-call.16} parent=199 // pred_check_branch
              %1098 = sbr.rel target = $region208
            $region207: #{custom-call.16} parent=199 // pred_region
              %s1100 = ssub.s32 256, 1
              loop: start=0, step=1, limit=1
              $region209: #{custom-call.16} parent=207 // loop_pre_header
                _
              $region210: #{custom-call.16} parent=207 // loop_header
                %s1102 = sphi 0, %s1106
                %p1103 = scmp.ge.s32.totalorder %s1102, 1
                %s1107 = sphi %s1031, %s1031
                %s1108 = sphi %s1092, %s1092
              $region211: #{custom-call.16} parent=207 // loop_header_branch
                %1105 = sbr.rel (%p1103) target = $region215
              $region212: #{custom-call.16} parent=207 // loop_body
                %v1109 = vld [vmem:[%s1107] sm:%s1100]
                %1110 = vst [vmem:[%s1108] sm:%s1100] %v1109
              $region213: #{custom-call.16} parent=207 // loop_footer
                %s1106 = sadd.s32 1, %s1102
              $region214: #{custom-call.16} parent=207 // loop_footer_branch
                %1101 = sbr.rel target = $region210
              $region215: #{custom-call.16} parent=207 // loop_exit
                _
            $region208: #{custom-call.16} parent=199 // pred_fallthru
              _
          $region200: #{custom-call.16} parent=195 // pred_fallthru
            _
          %1125 = vnop
        $region196: #{custom-call.16} parent=139 // pred_fallthru
          _
        %s1126 = smul.addr %s17, 2
        %s1127 = scalar_lea.vmem %s6, %s1126
        // Predicated region
        $region231: #{custom-call.16} parent=139 // pred_check
          _
        $region232: #{custom-call.16} parent=139 // pred_check_branch
          %1129 = sbr.rel (0) target = $region234
        $region233: #{custom-call.16} parent=139 // pred_region
          // Predicated region
          $region235: #{custom-call.16} parent=233 // pred_check
            _
          $region236: #{custom-call.16} parent=233 // pred_check_branch
            %1131 = sbr.rel target = $region238
          $region237: #{custom-call.16} parent=233 // pred_region
            // Predicated region
            $region250: #{custom-call.16} parent=237 // pred_check
              _
            $region251: #{custom-call.16} parent=237 // pred_check_branch
              %1147 = sbr.rel (0) target = $region253
            $region252: #{custom-call.16} parent=237 // pred_region
              %s1149 = ssub.s32 4, 1
              loop: start=0, step=1, limit=1
              $region254: #{custom-call.16} parent=252 // loop_pre_header
                _
              $region255: #{custom-call.16} parent=252 // loop_header
                %s1151 = sphi 0, %s1155
                %p1152 = scmp.ge.s32.totalorder %s1151, 1
                %s1156 = sphi %s1035, %s1035
                %s1157 = sphi %s1127, %s1127
              $region256: #{custom-call.16} parent=252 // loop_header_branch
                %1154 = sbr.rel (%p1152) target = $region260
              $region257: #{custom-call.16} parent=252 // loop_body
                %v1158 = vld [vmem:[%s1156] sm:%s1149]
                %1159 = vst [vmem:[%s1157] sm:%s1149] %v1158
              $region258: #{custom-call.16} parent=252 // loop_footer
                %s1155 = sadd.s32 1, %s1151
              $region259: #{custom-call.16} parent=252 // loop_footer_branch
                %1150 = sbr.rel target = $region255
              $region260: #{custom-call.16} parent=252 // loop_exit
                _
            $region253: #{custom-call.16} parent=237 // pred_fallthru
              _
          $region238: #{custom-call.16} parent=233 // pred_fallthru
            _
          // Predicated region
          $region239: #{custom-call.16} parent=233 // pred_check
            _
          $region240: #{custom-call.16} parent=233 // pred_check_branch
            %1133 = sbr.rel (0) target = $region242
          $region241: #{custom-call.16} parent=233 // pred_region
            %s1135 = ssub.s32 4, 1
            loop: start=0, step=1, limit=1
            $region243: #{custom-call.16} parent=241 // loop_pre_header
              _
            $region244: #{custom-call.16} parent=241 // loop_header
              %s1137 = sphi 0, %s1141
              %p1138 = scmp.ge.s32.totalorder %s1137, 1
              %s1142 = sphi %s1035, %s1035
              %s1143 = sphi %s1127, %s1127
            $region245: #{custom-call.16} parent=241 // loop_header_branch
              %1140 = sbr.rel (%p1138) target = $region249
            $region246: #{custom-call.16} parent=241 // loop_body
              %v1144 = vld [vmem:[%s1142] sm:%s1135]
              %1145 = vst [vmem:[%s1143] sm:%s1135] %v1144
            $region247: #{custom-call.16} parent=241 // loop_footer
              %s1141 = sadd.s32 1, %s1137
            $region248: #{custom-call.16} parent=241 // loop_footer_branch
              %1136 = sbr.rel target = $region244
            $region249: #{custom-call.16} parent=241 // loop_exit
              _
          $region242: #{custom-call.16} parent=233 // pred_fallthru
            _
        $region234: #{custom-call.16} parent=139 // pred_fallthru
          _
        %1160 = vnop
        %s1161 = smul.addr %s17, 2
        %s1162 = scalar_lea.vmem %s7, %s1161
        // Predicated region
        $region261: #{custom-call.16} parent=139 // pred_check
          _
        $region262: #{custom-call.16} parent=139 // pred_check_branch
          %1164 = sbr.rel (0) target = $region264
        $region263: #{custom-call.16} parent=139 // pred_region
          // Predicated region
          $region265: #{custom-call.16} parent=263 // pred_check
            _
          $region266: #{custom-call.16} parent=263 // pred_check_branch
            %1166 = sbr.rel target = $region268
          $region267: #{custom-call.16} parent=263 // pred_region
            // Predicated region
            $region280: #{custom-call.16} parent=267 // pred_check
              _
            $region281: #{custom-call.16} parent=267 // pred_check_branch
              %1182 = sbr.rel (0) target = $region283
            $region282: #{custom-call.16} parent=267 // pred_region
              %s1184 = ssub.s32 4, 1
              loop: start=0, step=1, limit=1
              $region284: #{custom-call.16} parent=282 // loop_pre_header
                _
              $region285: #{custom-call.16} parent=282 // loop_header
                %s1186 = sphi 0, %s1190
                %p1187 = scmp.ge.s32.totalorder %s1186, 1
                %s1191 = sphi %s1039, %s1039
                %s1192 = sphi %s1162, %s1162
              $region286: #{custom-call.16} parent=282 // loop_header_branch
                %1189 = sbr.rel (%p1187) target = $region290
              $region287: #{custom-call.16} parent=282 // loop_body
                %v1193 = vld [vmem:[%s1191] sm:%s1184]
                %1194 = vst [vmem:[%s1192] sm:%s1184] %v1193
              $region288: #{custom-call.16} parent=282 // loop_footer
                %s1190 = sadd.s32 1, %s1186
              $region289: #{custom-call.16} parent=282 // loop_footer_branch
                %1185 = sbr.rel target = $region285
              $region290: #{custom-call.16} parent=282 // loop_exit
                _
            $region283: #{custom-call.16} parent=267 // pred_fallthru
              _
          $region268: #{custom-call.16} parent=263 // pred_fallthru
            _
          // Predicated region
          $region269: #{custom-call.16} parent=263 // pred_check
            _
          $region270: #{custom-call.16} parent=263 // pred_check_branch
            %1168 = sbr.rel (0) target = $region272
          $region271: #{custom-call.16} parent=263 // pred_region
            %s1170 = ssub.s32 4, 1
            loop: start=0, step=1, limit=1
            $region273: #{custom-call.16} parent=271 // loop_pre_header
              _
            $region274: #{custom-call.16} parent=271 // loop_header
              %s1172 = sphi 0, %s1176
              %p1173 = scmp.ge.s32.totalorder %s1172, 1
              %s1177 = sphi %s1039, %s1039
              %s1178 = sphi %s1162, %s1162
            $region275: #{custom-call.16} parent=271 // loop_header_branch
              %1175 = sbr.rel (%p1173) target = $region279
            $region276: #{custom-call.16} parent=271 // loop_body
              %v1179 = vld [vmem:[%s1177] sm:%s1170]
              %1180 = vst [vmem:[%s1178] sm:%s1170] %v1179
            $region277: #{custom-call.16} parent=271 // loop_footer
              %s1176 = sadd.s32 1, %s1172
            $region278: #{custom-call.16} parent=271 // loop_footer_branch
              %1171 = sbr.rel target = $region274
            $region279: #{custom-call.16} parent=271 // loop_exit
              _
          $region272: #{custom-call.16} parent=263 // pred_fallthru
            _
        $region264: #{custom-call.16} parent=139 // pred_fallthru
          _
        %1195 = vnop
        %s1196 = smul.addr %s17, 2
        %s1197 = scalar_lea.vmem %s8, %s1196
        // Predicated region
        $region291: #{custom-call.16} parent=139 // pred_check
          _
        $region292: #{custom-call.16} parent=139 // pred_check_branch
          %1199 = sbr.rel (0) target = $region294
        $region293: #{custom-call.16} parent=139 // pred_region
          // Predicated region
          $region295: #{custom-call.16} parent=293 // pred_check
            _
          $region296: #{custom-call.16} parent=293 // pred_check_branch
            %1201 = sbr.rel target = $region298
          $region297: #{custom-call.16} parent=293 // pred_region
            // Predicated region
            $region310: #{custom-call.16} parent=297 // pred_check
              _
            $region311: #{custom-call.16} parent=297 // pred_check_branch
              %1217 = sbr.rel (0) target = $region313
            $region312: #{custom-call.16} parent=297 // pred_region
              %s1219 = ssub.s32 4, 1
              loop: start=0, step=1, limit=1
              $region314: #{custom-call.16} parent=312 // loop_pre_header
                _
              $region315: #{custom-call.16} parent=312 // loop_header
                %s1221 = sphi 0, %s1225
                %p1222 = scmp.ge.s32.totalorder %s1221, 1
                %s1226 = sphi %s1043, %s1043
                %s1227 = sphi %s1197, %s1197
              $region316: #{custom-call.16} parent=312 // loop_header_branch
                %1224 = sbr.rel (%p1222) target = $region320
              $region317: #{custom-call.16} parent=312 // loop_body
                %v1228 = vld [vmem:[%s1226] sm:%s1219]
                %1229 = vst [vmem:[%s1227] sm:%s1219] %v1228
              $region318: #{custom-call.16} parent=312 // loop_footer
                %s1225 = sadd.s32 1, %s1221
              $region319: #{custom-call.16} parent=312 // loop_footer_branch
                %1220 = sbr.rel target = $region315
              $region320: #{custom-call.16} parent=312 // loop_exit
                _
            $region313: #{custom-call.16} parent=297 // pred_fallthru
              _
          $region298: #{custom-call.16} parent=293 // pred_fallthru
            _
          // Predicated region
          $region299: #{custom-call.16} parent=293 // pred_check
            _
          $region300: #{custom-call.16} parent=293 // pred_check_branch
            %1203 = sbr.rel (0) target = $region302
          $region301: #{custom-call.16} parent=293 // pred_region
            %s1205 = ssub.s32 4, 1
            loop: start=0, step=1, limit=1
            $region303: #{custom-call.16} parent=301 // loop_pre_header
              _
            $region304: #{custom-call.16} parent=301 // loop_header
              %s1207 = sphi 0, %s1211
              %p1208 = scmp.ge.s32.totalorder %s1207, 1
              %s1212 = sphi %s1043, %s1043
              %s1213 = sphi %s1197, %s1197
            $region305: #{custom-call.16} parent=301 // loop_header_branch
              %1210 = sbr.rel (%p1208) target = $region309
            $region306: #{custom-call.16} parent=301 // loop_body
              %v1214 = vld [vmem:[%s1212] sm:%s1205]
              %1215 = vst [vmem:[%s1213] sm:%s1205] %v1214
            $region307: #{custom-call.16} parent=301 // loop_footer
              %s1211 = sadd.s32 1, %s1207
            $region308: #{custom-call.16} parent=301 // loop_footer_branch
              %1206 = sbr.rel target = $region304
            $region309: #{custom-call.16} parent=301 // loop_exit
              _
          $region302: #{custom-call.16} parent=293 // pred_fallthru
            _
        $region294: #{custom-call.16} parent=139 // pred_fallthru
          _
        %1230 = vnop
        %s1231 = smul.addr %s17, 2
        %s1232 = scalar_lea.vmem %s9, %s1231
        // Predicated region
        $region321: #{custom-call.16} parent=139 // pred_check
          _
        $region322: #{custom-call.16} parent=139 // pred_check_branch
          %1234 = sbr.rel (0) target = $region324
        $region323: #{custom-call.16} parent=139 // pred_region
          // Predicated region
          $region325: #{custom-call.16} parent=323 // pred_check
            _
          $region326: #{custom-call.16} parent=323 // pred_check_branch
            %1236 = sbr.rel target = $region328
          $region327: #{custom-call.16} parent=323 // pred_region
            // Predicated region
            $region340: #{custom-call.16} parent=327 // pred_check
              _
            $region341: #{custom-call.16} parent=327 // pred_check_branch
              %1252 = sbr.rel (0) target = $region343
            $region342: #{custom-call.16} parent=327 // pred_region
              %s1254 = ssub.s32 4, 1
              loop: start=0, step=1, limit=1
              $region344: #{custom-call.16} parent=342 // loop_pre_header
                _
              $region345: #{custom-call.16} parent=342 // loop_header
                %s1256 = sphi 0, %s1260
                %p1257 = scmp.ge.s32.totalorder %s1256, 1
                %s1261 = sphi %s1047, %s1047
                %s1262 = sphi %s1232, %s1232
              $region346: #{custom-call.16} parent=342 // loop_header_branch
                %1259 = sbr.rel (%p1257) target = $region350
              $region347: #{custom-call.16} parent=342 // loop_body
                %v1263 = vld [vmem:[%s1261] sm:%s1254]
                %1264 = vst [vmem:[%s1262] sm:%s1254] %v1263
              $region348: #{custom-call.16} parent=342 // loop_footer
                %s1260 = sadd.s32 1, %s1256
              $region349: #{custom-call.16} parent=342 // loop_footer_branch
                %1255 = sbr.rel target = $region345
              $region350: #{custom-call.16} parent=342 // loop_exit
                _
            $region343: #{custom-call.16} parent=327 // pred_fallthru
              _
          $region328: #{custom-call.16} parent=323 // pred_fallthru
            _
          // Predicated region
          $region329: #{custom-call.16} parent=323 // pred_check
            _
          $region330: #{custom-call.16} parent=323 // pred_check_branch
            %1238 = sbr.rel (0) target = $region332
          $region331: #{custom-call.16} parent=323 // pred_region
            %s1240 = ssub.s32 4, 1
            loop: start=0, step=1, limit=1
            $region333: #{custom-call.16} parent=331 // loop_pre_header
              _
            $region334: #{custom-call.16} parent=331 // loop_header
              %s1242 = sphi 0, %s1246
              %p1243 = scmp.ge.s32.totalorder %s1242, 1
              %s1247 = sphi %s1047, %s1047
              %s1248 = sphi %s1232, %s1232
            $region335: #{custom-call.16} parent=331 // loop_header_branch
              %1245 = sbr.rel (%p1243) target = $region339
            $region336: #{custom-call.16} parent=331 // loop_body
              %v1249 = vld [vmem:[%s1247] sm:%s1240]
              %1250 = vst [vmem:[%s1248] sm:%s1240] %v1249
            $region337: #{custom-call.16} parent=331 // loop_footer
              %s1246 = sadd.s32 1, %s1242
            $region338: #{custom-call.16} parent=331 // loop_footer_branch
              %1241 = sbr.rel target = $region334
            $region339: #{custom-call.16} parent=331 // loop_exit
              _
          $region332: #{custom-call.16} parent=323 // pred_fallthru
            _
        $region324: #{custom-call.16} parent=139 // pred_fallthru
          _
        %1265 = vnop
      $region140: #{custom-call.16} parent=5 // pred_fallthru
        _
      %p1266 = scmp.le.s32.totalorder 2, %s12
      // Predicated region
      $region351: #{custom-call.16} parent=5 // pred_check
        %p1267 = pneg %p1266
      $region352: #{custom-call.16} parent=5 // pred_check_branch
        %1269 = sbr.rel (%p1267) target = $region354
      $region353: #{custom-call.16} parent=5 // pred_region
        %s1270 = ssub.s32 %s12, 2
        // Predicated region
        $region355: #{custom-call.16} parent=353 // pred_check
          %p1271 = pneg %p43
        $region356: #{custom-call.16} parent=353 // pred_check_branch
          %1273 = sbr.rel (%p1271) target = $region358
        $region357: #{custom-call.16} parent=353 // pred_region
          %s1274 = sand.u32 %s28, 1
          %s1275 = sand.u32 %s28, 1
          %s1276 = smul.addr %s1275, 8
          %s1277 = scalar_lea.vmem [#allocation8], %s1276
        $region358: #{custom-call.16} parent=353 // pred_fallthru
          _
        // Predicated region
        $region359: #{custom-call.16} parent=353 // pred_check
          %p1278 = pneg %p71
        $region360: #{custom-call.16} parent=353 // pred_check_branch
          %1280 = sbr.rel (%p1278) target = $region362
        $region361: #{custom-call.16} parent=353 // pred_region
          %s1281 = sand.u32 %s56, 1
          %s1282 = sand.u32 %s56, 1
          %s1283 = smul.addr %s1282, 8
          %s1284 = scalar_lea.vmem [#allocation9], %s1283
        $region362: #{custom-call.16} parent=353 // pred_fallthru
          _
        %s1285 = sand.u32 %s18, 1
        %s1286 = sand.u32 %s18, 1
        %s1287 = smul.addr %s1286, 2
        %s1288 = scalar_lea.vmem [#allocation11], %s1287
        %s1289 = sand.u32 %s18, 1
        %s1290 = sand.u32 %s18, 1
        %s1291 = smul.addr %s1290, 2
        %s1292 = scalar_lea.vmem [#allocation13], %s1291
        %s1293 = sand.u32 %s18, 1
        %s1294 = sand.u32 %s18, 1
        %s1295 = smul.addr %s1294, 2
        %s1296 = scalar_lea.vmem [#allocation15], %s1295
        %s1297 = sand.u32 %s18, 1
        %s1298 = sand.u32 %s18, 1
        %s1299 = smul.addr %s1298, 2
        %s1300 = scalar_lea.vmem [#allocation17], %s1299
      $region354: #{custom-call.16} parent=5 // pred_fallthru
        _
    $region6: #{custom-call.16} parent=1 // loop_footer
      %s16 = sadd.s32 1, %s12
    $region7: #{custom-call.16} parent=1 // loop_footer_branch
      %11 = sbr.rel target = $region3
    $region8: #{custom-call.16} parent=1 // loop_exit
      _

// kernel: reverse
$region0: #{reverse}
  %s0 = inlined_call_operand.vmem [shape: f32[8,4], index: 0, kind: input, shape index: {}]
  %s1 = inlined_call_operand.vmem [shape: f32[8,4], index: 1, kind: output, shape index: {}]
  %v2 = vlaneseq
  %v3 = vsub.s32 3, %v2
  %4 = vset.pattern.permute.xlu0 %v3
  $region1: #{reverse} parent=0
    #allocation0 [shape = 'u8[4096]{0}', space=vmem, size = 0x1000, scoped, tag = 'operand span for operand 0']
    #allocation1 [shape = 'u8[4096]{0}', space=vmem, size = 0x1000, scoped, tag = 'operand span for operand 1']
    // Predicated region
    $region2: #{reverse} parent=1 // pred_check
      _
    $region3: #{reverse} parent=1 // pred_check_branch
      %6 = sbr.rel (0) target = $region5
    $region4: #{reverse} parent=1 // pred_region
      // Predicated region
      $region6: #{reverse} parent=4 // pred_check
        _
      $region7: #{reverse} parent=4 // pred_check_branch
        %8 = sbr.rel (0) target = $region9
      $region8: #{reverse} parent=4 // pred_region
        // Predicated region
        $region21: #{reverse} parent=8 // pred_check
          _
        $region22: #{reverse} parent=8 // pred_check_branch
          %24 = sbr.rel (0) target = $region24
        $region23: #{reverse} parent=8 // pred_region
          loop: start=0, step=1, limit=1
          $region25: #{reverse} parent=23 // loop_pre_header
            _
          $region26: #{reverse} parent=23 // loop_header
            %s26 = sphi 0, %s30
            %p27 = scmp.ge.s32.totalorder %s26, 1
            %s31 = sphi %s0, %s0
            %s32 = sphi [#allocation0], [#allocation0]
          $region27: #{reverse} parent=23 // loop_header_branch
            %29 = sbr.rel (%p27) target = $region31
          $region28: #{reverse} parent=23 // loop_body
            %v33 = vld [vmem:[%s31] sm:$0xff]
            %34 = vst [vmem:[%s32] sm:$0xff] %v33
          $region29: #{reverse} parent=23 // loop_footer
            %s30 = sadd.s32 1, %s26
          $region30: #{reverse} parent=23 // loop_footer_branch
            %25 = sbr.rel target = $region26
          $region31: #{reverse} parent=23 // loop_exit
            _
        $region24: #{reverse} parent=8 // pred_fallthru
          _
        // Predicated region
        $region32: #{reverse} parent=8 // pred_check
          _
        $region33: #{reverse} parent=8 // pred_check_branch
          %36 = sbr.rel target = $region35
        $region34: #{reverse} parent=8 // pred_region
          _
        $region35: #{reverse} parent=8 // pred_fallthru
          _
      $region9: #{reverse} parent=4 // pred_fallthru
        _
      // Predicated region
      $region10: #{reverse} parent=4 // pred_check
        _
      $region11: #{reverse} parent=4 // pred_check_branch
        %10 = sbr.rel target = $region13
      $region12: #{reverse} parent=4 // pred_region
        %s12 = ssub.s32 256, 1
        loop: start=0, step=1, limit=1
        $region14: #{reverse} parent=12 // loop_pre_header
          _
        $region15: #{reverse} parent=12 // loop_header
          %s14 = sphi 0, %s18
          %p15 = scmp.ge.s32.totalorder %s14, 1
          %s19 = sphi %s0, %s0
          %s20 = sphi [#allocation0], [#allocation0]
        $region16: #{reverse} parent=12 // loop_header_branch
          %17 = sbr.rel (%p15) target = $region20
        $region17: #{reverse} parent=12 // loop_body
          %v21 = vld [vmem:[%s19] sm:%s12]
          %22 = vst [vmem:[%s20] sm:%s12] %v21
        $region18: #{reverse} parent=12 // loop_footer
          %s18 = sadd.s32 1, %s14
        $region19: #{reverse} parent=12 // loop_footer_branch
          %13 = sbr.rel target = $region15
        $region20: #{reverse} parent=12 // loop_exit
          _
      $region13: #{reverse} parent=4 // pred_fallthru
        _
    $region5: #{reverse} parent=1 // pred_fallthru
      _
    %37 = vnop
    %v38 = vld [vmem:[#allocation0] sm:$0xff]
    %39 = vperm.xlu0 %4, %v38
    %v40 = vpop.permute.xlu0 %39
    %41 = vst [vmem:[#allocation1] sm:$0xff] %v40
    // Predicated region
    $region36: #{reverse} parent=1 // pred_check
      _
    $region37: #{reverse} parent=1 // pred_check_branch
      %43 = sbr.rel (0) target = $region39
    $region38: #{reverse} parent=1 // pred_region
      // Predicated region
      $region40: #{reverse} parent=38 // pred_check
        _
      $region41: #{reverse} parent=38 // pred_check_branch
        %45 = sbr.rel (0) target = $region43
      $region42: #{reverse} parent=38 // pred_region
        // Predicated region
        $region55: #{reverse} parent=42 // pred_check
          _
        $region56: #{reverse} parent=42 // pred_check_branch
          %61 = sbr.rel (0) target = $region58
        $region57: #{reverse} parent=42 // pred_region
          loop: start=0, step=1, limit=1
          $region59: #{reverse} parent=57 // loop_pre_header
            _
          $region60: #{reverse} parent=57 // loop_header
            %s63 = sphi 0, %s67
            %p64 = scmp.ge.s32.totalorder %s63, 1
            %s68 = sphi [#allocation1], [#allocation1]
            %s69 = sphi %s1, %s1
          $region61: #{reverse} parent=57 // loop_header_branch
            %66 = sbr.rel (%p64) target = $region65
          $region62: #{reverse} parent=57 // loop_body
            %v70 = vld [vmem:[%s68] sm:$0xff]
            %71 = vst [vmem:[%s69] sm:$0xff] %v70
          $region63: #{reverse} parent=57 // loop_footer
            %s67 = sadd.s32 1, %s63
          $region64: #{reverse} parent=57 // loop_footer_branch
            %62 = sbr.rel target = $region60
          $region65: #{reverse} parent=57 // loop_exit
            _
        $region58: #{reverse} parent=42 // pred_fallthru
          _
        // Predicated region
        $region66: #{reverse} parent=42 // pred_check
          _
        $region67: #{reverse} parent=42 // pred_check_branch
          %73 = sbr.rel target = $region69
        $region68: #{reverse} parent=42 // pred_region
          _
        $region69: #{reverse} parent=42 // pred_fallthru
          _
      $region43: #{reverse} parent=38 // pred_fallthru
        _
      // Predicated region
      $region44: #{reverse} parent=38 // pred_check
        _
      $region45: #{reverse} parent=38 // pred_check_branch
        %47 = sbr.rel target = $region47
      $region46: #{reverse} parent=38 // pred_region
        %s49 = ssub.s32 256, 1
        loop: start=0, step=1, limit=1
        $region48: #{reverse} parent=46 // loop_pre_header
          _
        $region49: #{reverse} parent=46 // loop_header
          %s51 = sphi 0, %s55
          %p52 = scmp.ge.s32.totalorder %s51, 1
          %s56 = sphi [#allocation1], [#allocation1]
          %s57 = sphi %s1, %s1
        $region50: #{reverse} parent=46 // loop_header_branch
          %54 = sbr.rel (%p52) target = $region54
        $region51: #{reverse} parent=46 // loop_body
          %v58 = vld [vmem:[%s56] sm:%s49]
          %59 = vst [vmem:[%s57] sm:%s49] %v58
        $region52: #{reverse} parent=46 // loop_footer
          %s55 = sadd.s32 1, %s51
        $region53: #{reverse} parent=46 // loop_footer_branch
          %50 = sbr.rel target = $region49
        $region54: #{reverse} parent=46 // loop_exit
          _
      $region47: #{reverse} parent=38 // pred_fallthru
        _
    $region39: #{reverse} parent=1 // pred_fallthru
      _
    %74 = vnop

</llo_original>
